<compile_context>
chip_gen: v7x
topology: tpu7x:2x2x1
jax: 0.10.0
libtpu: 0.0.40
codegen_flags: <defaults>
</compile_context>

<pallas_src>
import functools

import jax
import jax.numpy as jnp
from jax.experimental import pallas as pl
from jax.experimental.pallas import tpu as pltpu

K_IN = 784           # MNIST 28 * 28
H1, H2, H3 = 1024, 512, 256


def _round_up(x, m):
    return (x + m - 1) // m * m


def _cdiv(a, b):
    return -(-a // b)


def _leaky_relu(x, slope=0.2):
    return jnp.where(x > 0, x, slope * x)


def _tile_cap():
    """Generation-aware batch-tile cap: 1024 on v6e/v7x, 256 on v5e."""
    try:
        kind = jax.devices()[0].device_kind.lower()
    except Exception:
        return 1024
    if "v5 lite" in kind or "v5e" in kind or "v5lite" in kind:
        return 256
    return 1024


def _choose_tile(B, cap):
    """Pick tile_b so that (a) padding waste is small, (b) there are >= 2 tiles
    for large B (v7x megacore), (c) multi-tile sizes are multiples of 128 so
    the lane-dense out block stays (8,128)-legal."""
    if B <= 128:
        # Tiny batch: a single minimally padded tile; grid-step overhead would
        # dominate any split and megacore gains are irrelevant at this size.
        return _round_up(B, 16)
    n_tiles = max(2, _cdiv(B, cap))
    return min(_round_up(_cdiv(B, n_tiles), 128), cap)


def discriminator_kernel(x_ref,
                         w1_ref, b1_ref,
                         w2_ref, b2_ref,
                         w3_ref, b3_ref,
                         w4_ref, b4_ref,
                         o_ref):
    # x arrives as raw f32 straight from HBM (no wrapper pad/cast pass); the
    # f32 -> bf16 cast runs on the VPU and hides under the MXU work.
    x = x_ref[...].astype(jnp.bfloat16)

    # Layer 1: (tb, 784)bf16 @ (784, 1024)bf16 -> f32 accumulate (Mosaic pads
    # K=784 to lane tiles internally; explicit padding buys nothing).
    h = jnp.dot(x, w1_ref[...], preferred_element_type=jnp.float32)
    h = _leaky_relu(h + b1_ref[...])
    # Dropout(0.3): identity in eval mode.

    # Layer 2: (tb, 1024) @ (1024, 512)
    h = jnp.dot(h.astype(jnp.bfloat16), w2_ref[...],
                preferred_element_type=jnp.float32)
    h = _leaky_relu(h + b2_ref[...])

    # Layer 3: (tb, 512) @ (512, 256)
    h = jnp.dot(h.astype(jnp.bfloat16), w3_ref[...],
                preferred_element_type=jnp.float32)
    h = _leaky_relu(h + b3_ref[...])

    # Head Linear(256,1) + Sigmoid, emitted lane-dense as a (1, tile_b) row:
    # w4(1,256) . h(tb,256)^T -> (1, tb)   (q.k^T-style dimension numbers).
    # This is negligible MXU work and avoids the (tb,1) masked-store column.
    logit = jax.lax.dot_general(
        w4_ref[...], h.astype(jnp.bfloat16),
        dimension_numbers=(((1,), (1,)), ((), ())),
        preferred_element_type=jnp.float32) + b4_ref[...]
    o_ref[...] = jax.nn.sigmoid(logit).astype(o_ref.dtype)


def init_params(key):
    """nn.Linear-style init: U(-1/sqrt(fan_in), +1/sqrt(fan_in)).
    Weights stored as (in, out); biases as (1, out)."""
    dims = [(K_IN, H1), (H1, H2), (H2, H3), (H3, 1)]
    params = []
    for fan_in, fan_out in dims:
        key, kw, kb = jax.random.split(key, 3)
        bound = 1.0 / jnp.sqrt(jnp.float32(fan_in))
        w = jax.random.uniform(kw, (fan_in, fan_out), jnp.float32, -bound, bound)
        b = jax.random.uniform(kb, (1, fan_out), jnp.float32, -bound, bound)
        params.extend([w, b])
    return tuple(params)


def prepare_params(params):
    """One-time conversion to kernel layout: weights bf16 (biases f32),
    w4 reshaped to a (1, 256) row."""
    w1, b1, w2, b2, w3, b3, w4, b4 = params
    return (w1.astype(jnp.bfloat16), b1.astype(jnp.float32),
            w2.astype(jnp.bfloat16), b2.astype(jnp.float32),
            w3.astype(jnp.bfloat16), b3.astype(jnp.float32),
            w4.reshape(1, H3).astype(jnp.bfloat16), b4.astype(jnp.float32))


@functools.partial(jax.jit, static_argnames=("tile_b",))
def discriminator_forward(x_nchw, kernel_params, tile_b=None):
    """x_nchw: (B, 1, 28, 28) float32. Returns (B, 1) float32 in (0, 1)."""
    B = x_nchw.shape[0]
    if tile_b is None:
        tile_b = _choose_tile(B, _tile_cap())
    b_pad = _round_up(B, tile_b)
    num_tiles = b_pad // tile_b

    # x stays f32 and un-padded along features (block last dim == full array
    # dim is legal); the only wrapper-side copy is the small batch-row pad.
    x = x_nchw.reshape(B, K_IN)                    # == torch x.view(-1, 784)
    if b_pad != B:
        x = jnp.pad(x, ((0, b_pad - B), (0, 0)))

    w1, b1, w2, b2, w3, b3, w4, b4 = kernel_params

    # Weights/biases: constant block index -> fetched once, VMEM-resident
    # across every batch tile (Pallas only re-DMAs when the block index changes).
    const = lambda shape: pl.BlockSpec(shape, lambda i: (0, 0))

    flops = 2 * b_pad * (K_IN * H1 + H1 * H2 + H2 * H3 + H3 * 1)
    weight_bytes = 2 * (K_IN * H1 + H1 * H2 + H2 * H3 + H3) + 4 * (H1 + H2 + H3 + 1)
    bytes_accessed = 4 * b_pad * K_IN + weight_bytes + 4 * b_pad

    out = pl.pallas_call(
        discriminator_kernel,
        out_shape=jax.ShapeDtypeStruct((1, b_pad), jnp.float32),
        grid=(num_tiles,),
        in_specs=[
            pl.BlockSpec((tile_b, K_IN), lambda i: (i, 0)),   # x: batch-tiled, f32
            const((K_IN, H1)), const((1, H1)),
            const((H1, H2)),   const((1, H2)),
            const((H2, H3)),   const((1, H3)),
            const((1, H3)),    const((1, 1)),
        ],
        # Lane-dense output row per tile: full unmasked vst instead of a
        # (tile_b, 1) masked-store column.
        out_specs=pl.BlockSpec((1, tile_b), lambda i: (0, i)),
        compiler_params=pltpu.CompilerParams(
            dimension_semantics=("parallel",),   # megacore-split batch tiles (v7x)
            vmem_limit_bytes=32 << 20,           # ~20 MiB peak at tile_b=1024
        ),
        cost_estimate=pl.CostEstimate(
            flops=flops, transcendentals=b_pad, bytes_accessed=bytes_accessed),
    )(x, w1, b1, w2, b2, w3, b3, w4, b4)

    return out.reshape(b_pad, 1)[:B]


if __name__ == "__main__":
    key = jax.random.PRNGKey(0)
    key, kx = jax.random.split(key)

    # Small deterministic example input, NCHW like PyTorch MNIST batches.
    x = jax.random.normal(kx, (2, 1, 28, 28), dtype=jnp.float32)

    params = init_params(key)
    kparams = prepare_params(params)

    out = discriminator_forward(x, kparams)
    out = jax.block_until_ready(out)

    assert out.shape == (2, 1), out.shape
    assert bool(jnp.all((out > 0.0) & (out < 1.0)))  # sigmoid output range

    # Pure-JAX f32 reference (eval-mode dropout == identity).  Kernel uses bf16
    # weights/activations -> expect ~1e-3-level divergence; loose tolerance.
    def ref(x_nchw, p):
        w1, b1, w2, b2, w3, b3, w4, b4 = p
        h = x_nchw.reshape(-1, K_IN)
        h = jax.nn.leaky_relu(h @ w1 + b1, 0.2)
        h = jax.nn.leaky_relu(h @ w2 + b2, 0.2)
        h = jax.nn.leaky_relu(h @ w3 + b3, 0.2)
        return jax.nn.sigmoid(h @ w4 + b4)

    expect = ref(x, params)
    max_err = float(jnp.max(jnp.abs(out - expect)))
    assert max_err < 5e-2, max_err

    print("KERNEL_OK")
</pallas_src>

<mosaic_0001>
module attributes {stable_mosaic.version = 11 : i64} {
  func.func @discriminator_kernel(%arg0: i32, %arg1: memref<16x784xf32, #tpu.memory_space<vmem>>, %arg2: memref<784x1024xbf16, #tpu.memory_space<vmem>>, %arg3: memref<1x1024xf32, #tpu.memory_space<vmem>>, %arg4: memref<1024x512xbf16, #tpu.memory_space<vmem>>, %arg5: memref<1x512xf32, #tpu.memory_space<vmem>>, %arg6: memref<512x256xbf16, #tpu.memory_space<vmem>>, %arg7: memref<1x256xf32, #tpu.memory_space<vmem>>, %arg8: memref<1x256xbf16, #tpu.memory_space<vmem>>, %arg9: memref<1x1xf32, #tpu.memory_space<vmem>>, %arg10: memref<1x16xf32, #tpu.memory_space<vmem>>) attributes {dimension_semantics = [#tpu.dimension_semantics<parallel>], iteration_bounds = array<i64: 1>, scalar_prefetch = 0 : i64, scratch_operands = 0 : i64, tpu.core_type = #tpu.core_type<tc>, window_params = [{transform_indices = @transform_0, window_bounds = array<i64: 16, 784>}, {pipeline_mode = #tpu.pipeline_mode<synchronous>, transform_indices = @transform_1, window_bounds = array<i64: 784, 1024>}, {pipeline_mode = #tpu.pipeline_mode<synchronous>, transform_indices = @transform_2, window_bounds = array<i64: 1, 1024>}, {pipeline_mode = #tpu.pipeline_mode<synchronous>, transform_indices = @transform_3, window_bounds = array<i64: 1024, 512>}, {pipeline_mode = #tpu.pipeline_mode<synchronous>, transform_indices = @transform_4, window_bounds = array<i64: 1, 512>}, {pipeline_mode = #tpu.pipeline_mode<synchronous>, transform_indices = @transform_5, window_bounds = array<i64: 512, 256>}, {pipeline_mode = #tpu.pipeline_mode<synchronous>, transform_indices = @transform_6, window_bounds = array<i64: 1, 256>}, {pipeline_mode = #tpu.pipeline_mode<synchronous>, transform_indices = @transform_7, window_bounds = array<i64: 1, 256>}, {pipeline_mode = #tpu.pipeline_mode<synchronous>, transform_indices = @transform_8, window_bounds = array<i64: 1, 1>}, {transform_indices = @transform_9, window_bounds = array<i64: 1, 16>}]} {
    %c0 = arith.constant 0 : index
    %c0_0 = arith.constant 0 : index
    %0 = vector.load %arg1[%c0, %c0_0] : memref<16x784xf32, #tpu.memory_space<vmem>>, vector<16x784xf32>
    %1 = arith.truncf %0 : vector<16x784xf32> to vector<16x784xbf16>
    %c0_1 = arith.constant 0 : index
    %c0_2 = arith.constant 0 : index
    %2 = vector.load %arg2[%c0_1, %c0_2] : memref<784x1024xbf16, #tpu.memory_space<vmem>>, vector<784x1024xbf16>
    %cst = arith.constant dense<0.000000e+00> : vector<16x1024xf32>
    %3 = tpu.matmul %1, %2, %cst {dimension_numbers = #tpu.dot_dimension_numbers<[1], [0], [0], [1], [0, 0, 1, 1], [], []>} : vector<16x784xbf16>, vector<784x1024xbf16>, vector<16x1024xf32> -> vector<16x1024xf32>
    %c0_3 = arith.constant 0 : index
    %c0_4 = arith.constant 0 : index
    %4 = vector.load %arg3[%c0_3, %c0_4] : memref<1x1024xf32, #tpu.memory_space<vmem>>, vector<1x1024xf32>
    %5 = vector.broadcast %4 : vector<1x1024xf32> to vector<16x1024xf32>
    %6 = arith.addf %3, %5 : vector<16x1024xf32>
    %cst_5 = arith.constant 0.000000e+00 : f32
    %7 = vector.broadcast %cst_5 : f32 to vector<16x1024xf32>
    %8 = arith.cmpf ogt, %6, %7 : vector<16x1024xf32>
    %cst_6 = arith.constant 2.000000e-01 : f32
    %9 = vector.broadcast %cst_6 : f32 to vector<16x1024xf32>
    %10 = arith.mulf %9, %6 : vector<16x1024xf32>
    %11 = arith.select %8, %6, %10 : vector<16x1024xi1>, vector<16x1024xf32>
    %12 = arith.truncf %11 : vector<16x1024xf32> to vector<16x1024xbf16>
    %c0_7 = arith.constant 0 : index
    %c0_8 = arith.constant 0 : index
    %13 = vector.load %arg4[%c0_7, %c0_8] : memref<1024x512xbf16, #tpu.memory_space<vmem>>, vector<1024x512xbf16>
    %cst_9 = arith.constant dense<0.000000e+00> : vector<16x512xf32>
    %14 = tpu.matmul %12, %13, %cst_9 {dimension_numbers = #tpu.dot_dimension_numbers<[1], [0], [0], [1], [0, 0, 1, 1], [], []>} : vector<16x1024xbf16>, vector<1024x512xbf16>, vector<16x512xf32> -> vector<16x512xf32>
    %c0_10 = arith.constant 0 : index
    %c0_11 = arith.constant 0 : index
    %15 = vector.load %arg5[%c0_10, %c0_11] : memref<1x512xf32, #tpu.memory_space<vmem>>, vector<1x512xf32>
    %16 = vector.broadcast %15 : vector<1x512xf32> to vector<16x512xf32>
    %17 = arith.addf %14, %16 : vector<16x512xf32>
    %cst_12 = arith.constant 0.000000e+00 : f32
    %18 = vector.broadcast %cst_12 : f32 to vector<16x512xf32>
    %19 = arith.cmpf ogt, %17, %18 : vector<16x512xf32>
    %cst_13 = arith.constant 2.000000e-01 : f32
    %20 = vector.broadcast %cst_13 : f32 to vector<16x512xf32>
    %21 = arith.mulf %20, %17 : vector<16x512xf32>
    %22 = arith.select %19, %17, %21 : vector<16x512xi1>, vector<16x512xf32>
    %23 = arith.truncf %22 : vector<16x512xf32> to vector<16x512xbf16>
    %c0_14 = arith.constant 0 : index
    %c0_15 = arith.constant 0 : index
    %24 = vector.load %arg6[%c0_14, %c0_15] : memref<512x256xbf16, #tpu.memory_space<vmem>>, vector<512x256xbf16>
    %cst_16 = arith.constant dense<0.000000e+00> : vector<16x256xf32>
    %25 = tpu.matmul %23, %24, %cst_16 {dimension_numbers = #tpu.dot_dimension_numbers<[1], [0], [0], [1], [0, 0, 1, 1], [], []>} : vector<16x512xbf16>, vector<512x256xbf16>, vector<16x256xf32> -> vector<16x256xf32>
    %c0_17 = arith.constant 0 : index
    %c0_18 = arith.constant 0 : index
    %26 = vector.load %arg7[%c0_17, %c0_18] : memref<1x256xf32, #tpu.memory_space<vmem>>, vector<1x256xf32>
    %27 = vector.broadcast %26 : vector<1x256xf32> to vector<16x256xf32>
    %28 = arith.addf %25, %27 : vector<16x256xf32>
    %cst_19 = arith.constant 0.000000e+00 : f32
    %29 = vector.broadcast %cst_19 : f32 to vector<16x256xf32>
    %30 = arith.cmpf ogt, %28, %29 : vector<16x256xf32>
    %cst_20 = arith.constant 2.000000e-01 : f32
    %31 = vector.broadcast %cst_20 : f32 to vector<16x256xf32>
    %32 = arith.mulf %31, %28 : vector<16x256xf32>
    %33 = arith.select %30, %28, %32 : vector<16x256xi1>, vector<16x256xf32>
    %c0_21 = arith.constant 0 : index
    %c0_22 = arith.constant 0 : index
    %34 = vector.load %arg8[%c0_21, %c0_22] : memref<1x256xbf16, #tpu.memory_space<vmem>>, vector<1x256xbf16>
    %35 = arith.truncf %33 : vector<16x256xf32> to vector<16x256xbf16>
    %cst_23 = arith.constant dense<0.000000e+00> : vector<1x16xf32>
    %36 = tpu.matmul %34, %35, %cst_23 {dimension_numbers = #tpu.dot_dimension_numbers<[1], [1], [0], [0], [0, 0, 1, 0], [], []>} : vector<1x256xbf16>, vector<16x256xbf16>, vector<1x16xf32> -> vector<1x16xf32>
    %c0_24 = arith.constant 0 : index
    %c0_25 = arith.constant 0 : index
    %37 = vector.load %arg9[%c0_24, %c0_25] : memref<1x1xf32, #tpu.memory_space<vmem>>, vector<1x1xf32>
    %38 = vector.broadcast %37 : vector<1x1xf32> to vector<1x16xf32>
    %39 = arith.addf %36, %38 : vector<1x16xf32>
    %40 = arith.negf %39 : vector<1x16xf32>
    %41 = math.exp %40 : vector<1x16xf32>
    %cst_26 = arith.constant 1.000000e+00 : f32
    %42 = vector.broadcast %cst_26 : f32 to vector<1x16xf32>
    %43 = arith.addf %42, %41 : vector<1x16xf32>
    %44 = arith.divf %42, %43 : vector<1x16xf32>
    %c0_27 = arith.constant 0 : index
    %c0_28 = arith.constant 0 : index
    %45 = vector.load %arg10[%c0_27, %c0_28] : memref<1x16xf32, #tpu.memory_space<vmem>>, vector<1x16xf32>
    tpu.vector_store %arg10[%c0_27, %c0_28], %44 {strides = array<i32>} : memref<1x16xf32, #tpu.memory_space<vmem>>, vector<1x16xf32>,
    return
  }
  func.func @transform_0(%arg0: i32) -> (i32, i32) {
    %c0_i32 = arith.constant 0 : i32
    %c0_i32_0 = arith.constant 0 : i32
    return %arg0, %c0_i32 : i32, i32
  }
  func.func @transform_1(%arg0: i32) -> (i32, i32) {
    %c0_i32 = arith.constant 0 : i32
    %c0_i32_0 = arith.constant 0 : i32
    %c0_i32_1 = arith.constant 0 : i32
    return %c0_i32, %c0_i32_0 : i32, i32
  }
  func.func @transform_2(%arg0: i32) -> (i32, i32) {
    %c0_i32 = arith.constant 0 : i32
    %c0_i32_0 = arith.constant 0 : i32
    %c0_i32_1 = arith.constant 0 : i32
    return %c0_i32, %c0_i32_0 : i32, i32
  }
  func.func @transform_3(%arg0: i32) -> (i32, i32) {
    %c0_i32 = arith.constant 0 : i32
    %c0_i32_0 = arith.constant 0 : i32
    %c0_i32_1 = arith.constant 0 : i32
    return %c0_i32, %c0_i32_0 : i32, i32
  }
  func.func @transform_4(%arg0: i32) -> (i32, i32) {
    %c0_i32 = arith.constant 0 : i32
    %c0_i32_0 = arith.constant 0 : i32
    %c0_i32_1 = arith.constant 0 : i32
    return %c0_i32, %c0_i32_0 : i32, i32
  }
  func.func @transform_5(%arg0: i32) -> (i32, i32) {
    %c0_i32 = arith.constant 0 : i32
    %c0_i32_0 = arith.constant 0 : i32
    %c0_i32_1 = arith.constant 0 : i32
    return %c0_i32, %c0_i32_0 : i32, i32
  }
  func.func @transform_6(%arg0: i32) -> (i32, i32) {
    %c0_i32 = arith.constant 0 : i32
    %c0_i32_0 = arith.constant 0 : i32
    %c0_i32_1 = arith.constant 0 : i32
    return %c0_i32, %c0_i32_0 : i32, i32
  }
  func.func @transform_7(%arg0: i32) -> (i32, i32) {
    %c0_i32 = arith.constant 0 : i32
    %c0_i32_0 = arith.constant 0 : i32
    %c0_i32_1 = arith.constant 0 : i32
    return %c0_i32, %c0_i32_0 : i32, i32
  }
  func.func @transform_8(%arg0: i32) -> (i32, i32) {
    %c0_i32 = arith.constant 0 : i32
    %c0_i32_0 = arith.constant 0 : i32
    %c0_i32_1 = arith.constant 0 : i32
    return %c0_i32, %c0_i32_0 : i32, i32
  }
  func.func @transform_9(%arg0: i32) -> (i32, i32) {
    %c0_i32 = arith.constant 0 : i32
    %c0_i32_0 = arith.constant 0 : i32
    return %c0_i32, %arg0 : i32, i32
  }
}

</mosaic_0001>

<llo_original>
// kernel: discriminator_forward.1
$region0: #{discriminator_forward.1}
  #allocation0 [shape = 'u32[]', space=smem, size = 0x4, offset = 0x4, fixed_abs, tag = 'smem constant byte address 0x4 - core index']
  #allocation1 [shape = 'u32[144,128]{1,0:T(1,128)}', space=vmem, size = 0x12000, scoped, tag = 'internal scratch']
  #allocation2 [shape = 'f32[1,1]{1,0:T(1,128)S(1)}', space=vmem, size = 0x200, scoped, tag = 'scoped memory for discriminator_forward.1']
  %s0 = inlined_call_operand.vmem [shape: f32[16,784], index: 0, kind: input, shape index: {}]
  %s1 = inlined_call_operand.hbm [shape: bf16[784,1024], index: 1, kind: input, shape index: {}]
  %s2 = inlined_call_operand.hbm [shape: f32[1,1024], index: 2, kind: input, shape index: {}]
  %s3 = inlined_call_operand.hbm [shape: bf16[1024,512], index: 3, kind: input, shape index: {}]
  %s4 = inlined_call_operand.hbm [shape: f32[1,512], index: 4, kind: input, shape index: {}]
  %s5 = inlined_call_operand.hbm [shape: bf16[512,256], index: 5, kind: input, shape index: {}]
  %s6 = inlined_call_operand.hbm [shape: f32[1,256], index: 6, kind: input, shape index: {}]
  %s7 = inlined_call_operand.hbm [shape: bf16[1,256], index: 7, kind: input, shape index: {}]
  %s8 = inlined_call_operand.<no memory space> [shape: f32[1,1], index: 8, kind: input, shape index: {}]
  %s9 = inlined_call_operand.vmem [shape: f32[1,16], index: 9, kind: output, shape index: {}]
  %s10 = sld [smem:[#allocation0]]
  $region74: #{discriminator_forward.1} parent=0
    _
  %s12 = ssub.s32 1, %s10
  %s13 = scalar_select 0, %s12, %s10
  %v14 = vstv %s8
  %15 = vst [vmem:[#allocation2] sm:$0x1] %v14
  $region1: #{discriminator_forward.1} parent=0
    #allocation3 [shape = 'u8[1605632]{0}', space=vmem, size = 0x188000, scoped, tag = 'input window, operand 1, single buffered']
    #allocation4 [shape = 's32[1]{0}', space=sflag, size = 0x4, scoped, tag = 'scoped memory for discriminator_forward.1']
    #allocation5 [shape = 'u8[4096]{0}', space=vmem, size = 0x1000, scoped, tag = 'input window, operand 2, single buffered']
    #allocation6 [shape = 's32[1]{0}', space=sflag, size = 0x4, scoped, tag = 'scoped memory for discriminator_forward.1']
    #allocation7 [shape = 'u8[1048576]{0}', space=vmem, size = 0x100000, scoped, tag = 'input window, operand 3, single buffered']
    #allocation8 [shape = 'u8[2048]{0}', space=vmem, size = 0x800, scoped, tag = 'input window, operand 4, single buffered']
    #allocation9 [shape = 's32[1]{0}', space=sflag, size = 0x4, scoped, tag = 'scoped memory for discriminator_forward.1']
    #allocation10 [shape = 'u8[262144]{0}', space=vmem, size = 0x40000, scoped, tag = 'input window, operand 5, single buffered']
    #allocation11 [shape = 'u8[1024]{0}', space=vmem, size = 0x400, scoped, tag = 'input window, operand 6, single buffered']
    #allocation12 [shape = 's32[1]{0}', space=sflag, size = 0x4, scoped, tag = 'scoped memory for discriminator_forward.1']
    #allocation13 [shape = 'u8[1024]{0}', space=vmem, size = 0x400, scoped, tag = 'input window, operand 7, single buffered']
    %16 = vsyncpa [#allocation4], 0
    %17 = vsyncpa [#allocation6], 0
    %18 = vsyncpa [#allocation9], 0
    %19 = vsyncpa [#allocation12], 0
    // Predicated region
    $region2: #{discriminator_forward.1} parent=1 // pred_check
      _
    $region3: #{discriminator_forward.1} parent=1 // pred_check_branch
      %21 = sbr.rel (0) target = $region5
    $region4: #{discriminator_forward.1} parent=1 // pred_region
      _
    $region5: #{discriminator_forward.1} parent=1 // pred_fallthru
      _
    // Predicated region
    $region6: #{discriminator_forward.1} parent=1 // pred_check
      _
    $region7: #{discriminator_forward.1} parent=1 // pred_check_branch
      %23 = sbr.rel (0) target = $region9
    $region8: #{discriminator_forward.1} parent=1 // pred_region
      %s25 = ssub.s32 50176, 50176
      %26 = vsyncadd [#allocation4], %s25
      %s27 = sshll.u32 [#allocation3], 4
      %s28 = int_to_ptr.vmem [resolvable:$true] %s27
      %33 = dma.hbm_to_vmem [thread:$0]  %s1, 50176, %s28, [#allocation4], 512, 512, 32
    $region9: #{discriminator_forward.1} parent=1 // pred_fallthru
      _
    // Predicated region
    $region10: #{discriminator_forward.1} parent=1 // pred_check
      _
    $region11: #{discriminator_forward.1} parent=1 // pred_check_branch
      %35 = sbr.rel (0) target = $region13
    $region12: #{discriminator_forward.1} parent=1 // pred_region
      %s37 = ssub.s32 128, 128
      %38 = vsyncadd [#allocation6], %s37
      %s40 = sshll.u32 [#allocation5], 4
      %s41 = int_to_ptr.vmem [resolvable:$true] %s40
      %43 = dma.hbm_to_vmem [thread:$0]  %s2, 128, %s41, [#allocation6]
    $region13: #{discriminator_forward.1} parent=1 // pred_fallthru
      _
    // Predicated region
    $region14: #{discriminator_forward.1} parent=1 // pred_check
      _
    $region15: #{discriminator_forward.1} parent=1 // pred_check_branch
      %45 = sbr.rel (0) target = $region17
    $region16: #{discriminator_forward.1} parent=1 // pred_region
      %s47 = ssub.s32 32768, 32768
      %48 = vsyncadd [#allocation6], %s47
      %s49 = sshll.u32 [#allocation7], 4
      %s50 = int_to_ptr.vmem [resolvable:$true] %s49
      %55 = dma.hbm_to_vmem [thread:$0]  %s3, 32768, %s50, [#allocation6], 256, 256, 16
    $region17: #{discriminator_forward.1} parent=1 // pred_fallthru
      _
    // Predicated region
    $region18: #{discriminator_forward.1} parent=1 // pred_check
      _
    $region19: #{discriminator_forward.1} parent=1 // pred_check_branch
      %57 = sbr.rel (0) target = $region21
    $region20: #{discriminator_forward.1} parent=1 // pred_region
      %s59 = ssub.s32 64, 64
      %60 = vsyncadd [#allocation9], %s59
      %s62 = sshll.u32 [#allocation8], 4
      %s63 = int_to_ptr.vmem [resolvable:$true] %s62
      %65 = dma.hbm_to_vmem [thread:$0]  %s4, 64, %s63, [#allocation9]
    $region21: #{discriminator_forward.1} parent=1 // pred_fallthru
      _
    // Predicated region
    $region22: #{discriminator_forward.1} parent=1 // pred_check
      _
    $region23: #{discriminator_forward.1} parent=1 // pred_check_branch
      %67 = sbr.rel (0) target = $region25
    $region24: #{discriminator_forward.1} parent=1 // pred_region
      %s69 = ssub.s32 8192, 8192
      %70 = vsyncadd [#allocation9], %s69
      %s71 = sshll.u32 [#allocation10], 4
      %s72 = int_to_ptr.vmem [resolvable:$true] %s71
      %77 = dma.hbm_to_vmem [thread:$0]  %s5, 8192, %s72, [#allocation9], 128, 128, 8
    $region25: #{discriminator_forward.1} parent=1 // pred_fallthru
      _
    // Predicated region
    $region26: #{discriminator_forward.1} parent=1 // pred_check
      _
    $region27: #{discriminator_forward.1} parent=1 // pred_check_branch
      %79 = sbr.rel (0) target = $region29
    $region28: #{discriminator_forward.1} parent=1 // pred_region
      %s81 = ssub.s32 32, 32
      %82 = vsyncadd [#allocation12], %s81
      %s84 = sshll.u32 [#allocation11], 4
      %s85 = int_to_ptr.vmem [resolvable:$true] %s84
      %87 = dma.hbm_to_vmem [thread:$0]  %s6, 32, %s85, [#allocation12]
    $region29: #{discriminator_forward.1} parent=1 // pred_fallthru
      _
    // Predicated region
    $region30: #{discriminator_forward.1} parent=1 // pred_check
      _
    $region31: #{discriminator_forward.1} parent=1 // pred_check_branch
      %89 = sbr.rel (0) target = $region33
    $region32: #{discriminator_forward.1} parent=1 // pred_region
      %s91 = ssub.s32 32, 32
      %92 = vsyncadd [#allocation12], %s91
      %s94 = sshll.u32 [#allocation13], 4
      %s95 = int_to_ptr.vmem [resolvable:$true] %s94
      %97 = dma.hbm_to_vmem [thread:$0]  %s7, 32, %s95, [#allocation12]
    $region33: #{discriminator_forward.1} parent=1 // pred_fallthru
      _
    // Predicated region
    $region34: #{discriminator_forward.1} parent=1 // pred_check
      _
    $region35: #{discriminator_forward.1} parent=1 // pred_check_branch
      %99 = sbr.rel (0) target = $region37
    $region36: #{discriminator_forward.1} parent=1 // pred_region
      _
    $region37: #{discriminator_forward.1} parent=1 // pred_fallthru
      _
    // Predicated region
    $region38: #{discriminator_forward.1} parent=1 // pred_check
      _
    $region39: #{discriminator_forward.1} parent=1 // pred_check_branch
      %101 = sbr.rel (0) target = $region41
    $region40: #{discriminator_forward.1} parent=1 // pred_region
      %102 = dma.done [#allocation4], 50176
    $region41: #{discriminator_forward.1} parent=1 // pred_fallthru
      _
    // Predicated region
    $region42: #{discriminator_forward.1} parent=1 // pred_check
      _
    $region43: #{discriminator_forward.1} parent=1 // pred_check_branch
      %104 = sbr.rel (0) target = $region45
    $region44: #{discriminator_forward.1} parent=1 // pred_region
      %105 = dma.done [#allocation6], 128
    $region45: #{discriminator_forward.1} parent=1 // pred_fallthru
      _
    // Predicated region
    $region46: #{discriminator_forward.1} parent=1 // pred_check
      _
    $region47: #{discriminator_forward.1} parent=1 // pred_check_branch
      %107 = sbr.rel (0) target = $region49
    $region48: #{discriminator_forward.1} parent=1 // pred_region
      %108 = dma.done [#allocation6], 32768
    $region49: #{discriminator_forward.1} parent=1 // pred_fallthru
      _
    // Predicated region
    $region50: #{discriminator_forward.1} parent=1 // pred_check
      _
    $region51: #{discriminator_forward.1} parent=1 // pred_check_branch
      %110 = sbr.rel (0) target = $region53
    $region52: #{discriminator_forward.1} parent=1 // pred_region
      %111 = dma.done [#allocation9], 64
    $region53: #{discriminator_forward.1} parent=1 // pred_fallthru
      _
    // Predicated region
    $region54: #{discriminator_forward.1} parent=1 // pred_check
      _
    $region55: #{discriminator_forward.1} parent=1 // pred_check_branch
      %113 = sbr.rel (0) target = $region57
    $region56: #{discriminator_forward.1} parent=1 // pred_region
      %114 = dma.done [#allocation9], 8192
    $region57: #{discriminator_forward.1} parent=1 // pred_fallthru
      _
    // Predicated region
    $region58: #{discriminator_forward.1} parent=1 // pred_check
      _
    $region59: #{discriminator_forward.1} parent=1 // pred_check_branch
      %116 = sbr.rel (0) target = $region61
    $region60: #{discriminator_forward.1} parent=1 // pred_region
      %117 = dma.done [#allocation12], 32
    $region61: #{discriminator_forward.1} parent=1 // pred_fallthru
      _
    // Predicated region
    $region62: #{discriminator_forward.1} parent=1 // pred_check
      _
    $region63: #{discriminator_forward.1} parent=1 // pred_check_branch
      %119 = sbr.rel (0) target = $region65
    $region64: #{discriminator_forward.1} parent=1 // pred_region
      %120 = dma.done [#allocation12], 32
    $region65: #{discriminator_forward.1} parent=1 // pred_fallthru
      _
    %v122 = vld [vmem:[%s0] sm:$0xff]
    %v123 = vld [vmem:[%s0 + $0x8] sm:$0xff]
    %v124 = vld [vmem:[%s0 + $0x10] sm:$0xff]
    %v125 = vld [vmem:[%s0 + $0x18] sm:$0xff]
    %v126 = vld [vmem:[%s0 + $0x20] sm:$0xff]
    %v127 = vld [vmem:[%s0 + $0x28] sm:$0xff]
    %v128 = vld [vmem:[%s0 + $0x30] sm:$0xff]
    %v129 = vld [vmem:[%s0 + $0x38] sm:$0xff]
    %v130 = vld [vmem:[%s0 + $0x40] sm:$0xff]
    %v131 = vld [vmem:[%s0 + $0x48] sm:$0xff]
    %v132 = vld [vmem:[%s0 + $0x50] sm:$0xff]
    %v133 = vld [vmem:[%s0 + $0x58] sm:$0xff]
    %v134 = vld [vmem:[%s0 + $0x60] sm:$0xff]
    %v135 = vld [vmem:[%s0 + $0x68] sm:$0xff]
    %v136 = vpack.c.bf16 %v129, %v122
    %v137 = vpack.c.bf16 %v130, %v123
    %v138 = vpack.c.bf16 %v131, %v124
    %v139 = vpack.c.bf16 %v132, %v125
    %v140 = vpack.c.bf16 %v133, %v126
    %v141 = vpack.c.bf16 %v134, %v127
    %v142 = vpack.c.bf16 %v135, %v128
    %v143 = vld [vmem:[#allocation3] sm:$0xff]
    %v144 = vld [vmem:[#allocation3 + $0x8] sm:$0xff]
    %v145 = vld [vmem:[#allocation3 + $0x10] sm:$0xff]
    %v146 = vld [vmem:[#allocation3 + $0x18] sm:$0xff]
    %v147 = vld [vmem:[#allocation3 + $0x20] sm:$0xff]
    %v148 = vld [vmem:[#allocation3 + $0x28] sm:$0xff]
    %v149 = vld [vmem:[#allocation3 + $0x30] sm:$0xff]
    %v150 = vld [vmem:[#allocation3 + $0x38] sm:$0xff]
    %v151 = vld [vmem:[#allocation3 + $0x40] sm:$0xff]
    %v152 = vld [vmem:[#allocation3 + $0x48] sm:$0xff]
    %v153 = vld [vmem:[#allocation3 + $0x50] sm:$0xff]
    %v154 = vld [vmem:[#allocation3 + $0x58] sm:$0xff]
    %v155 = vld [vmem:[#allocation3 + $0x60] sm:$0xff]
    %v156 = vld [vmem:[#allocation3 + $0x68] sm:$0xff]
    %v157 = vld [vmem:[#allocation3 + $0x70] sm:$0xff]
    %v158 = vld [vmem:[#allocation3 + $0x78] sm:$0xff]
    %v159 = vld [vmem:[#allocation3 + $0x80] sm:$0xff]
    %v160 = vld [vmem:[#allocation3 + $0x88] sm:$0xff]
    %v161 = vld [vmem:[#allocation3 + $0x90] sm:$0xff]
    %v162 = vld [vmem:[#allocation3 + $0x98] sm:$0xff]
    %v163 = vld [vmem:[#allocation3 + $0xa0] sm:$0xff]
    %v164 = vld [vmem:[#allocation3 + $0xa8] sm:$0xff]
    %v165 = vld [vmem:[#allocation3 + $0xb0] sm:$0xff]
    %v166 = vld [vmem:[#allocation3 + $0xb8] sm:$0xff]
    %v167 = vld [vmem:[#allocation3 + $0xc0] sm:$0xff]
    %v168 = vld [vmem:[#allocation3 + $0xc8] sm:$0xff]
    %v169 = vld [vmem:[#allocation3 + $0xd0] sm:$0xff]
    %v170 = vld [vmem:[#allocation3 + $0xd8] sm:$0xff]
    %v171 = vld [vmem:[#allocation3 + $0xe0] sm:$0xff]
    %v172 = vld [vmem:[#allocation3 + $0xe8] sm:$0xff]
    %v173 = vld [vmem:[#allocation3 + $0xf0] sm:$0xff]
    %v174 = vld [vmem:[#allocation3 + $0xf8] sm:$0xff]
    %v175 = vld [vmem:[#allocation3 + $0x100] sm:$0xff]
    %v176 = vld [vmem:[#allocation3 + $0x108] sm:$0xff]
    %v177 = vld [vmem:[#allocation3 + $0x110] sm:$0xff]
    %v178 = vld [vmem:[#allocation3 + $0x118] sm:$0xff]
    %v179 = vld [vmem:[#allocation3 + $0x120] sm:$0xff]
    %v180 = vld [vmem:[#allocation3 + $0x128] sm:$0xff]
    %v181 = vld [vmem:[#allocation3 + $0x130] sm:$0xff]
    %v182 = vld [vmem:[#allocation3 + $0x138] sm:$0xff]
    %v183 = vld [vmem:[#allocation3 + $0x140] sm:$0xff]
    %v184 = vld [vmem:[#allocation3 + $0x148] sm:$0xff]
    %v185 = vld [vmem:[#allocation3 + $0x150] sm:$0xff]
    %v186 = vld [vmem:[#allocation3 + $0x158] sm:$0xff]
    %v187 = vld [vmem:[#allocation3 + $0x160] sm:$0xff]
    %v188 = vld [vmem:[#allocation3 + $0x168] sm:$0xff]
    %v189 = vld [vmem:[#allocation3 + $0x170] sm:$0xff]
    %v190 = vld [vmem:[#allocation3 + $0x178] sm:$0xff]
    %v191 = vld [vmem:[#allocation3 + $0x180] sm:$0xff]
    %v192 = vld [vmem:[#allocation3 + $0x188] sm:$0xff]
    %v193 = vld [vmem:[#allocation3 + $0x190] sm:$0xff]
    %v194 = vld [vmem:[#allocation3 + $0x198] sm:$0xff]
    %v195 = vld [vmem:[#allocation3 + $0x1a0] sm:$0xff]
    %v196 = vld [vmem:[#allocation3 + $0x1a8] sm:$0xff]
    %v197 = vld [vmem:[#allocation3 + $0x1b0] sm:$0xff]
    %v198 = vld [vmem:[#allocation3 + $0x1b8] sm:$0xff]
    %v199 = vld [vmem:[#allocation3 + $0x1c0] sm:$0xff]
    %v200 = vld [vmem:[#allocation3 + $0x1c8] sm:$0xff]
    %v201 = vld [vmem:[#allocation3 + $0x1d0] sm:$0xff]
    %v202 = vld [vmem:[#allocation3 + $0x1d8] sm:$0xff]
    %v203 = vld [vmem:[#allocation3 + $0x1e0] sm:$0xff]
    %v204 = vld [vmem:[#allocation3 + $0x1e8] sm:$0xff]
    %v205 = vld [vmem:[#allocation3 + $0x1f0] sm:$0xff]
    %v206 = vld [vmem:[#allocation3 + $0x1f8] sm:$0xff]
    %v207 = vld [vmem:[#allocation3 + $0x200] sm:$0xff]
    %v208 = vld [vmem:[#allocation3 + $0x208] sm:$0xff]
    %v209 = vld [vmem:[#allocation3 + $0x210] sm:$0xff]
    %v210 = vld [vmem:[#allocation3 + $0x218] sm:$0xff]
    %v211 = vld [vmem:[#allocation3 + $0x220] sm:$0xff]
    %v212 = vld [vmem:[#allocation3 + $0x228] sm:$0xff]
    %v213 = vld [vmem:[#allocation3 + $0x230] sm:$0xff]
    %v214 = vld [vmem:[#allocation3 + $0x238] sm:$0xff]
    %v215 = vld [vmem:[#allocation3 + $0x240] sm:$0xff]
    %v216 = vld [vmem:[#allocation3 + $0x248] sm:$0xff]
    %v217 = vld [vmem:[#allocation3 + $0x250] sm:$0xff]
    %v218 = vld [vmem:[#allocation3 + $0x258] sm:$0xff]
    %v219 = vld [vmem:[#allocation3 + $0x260] sm:$0xff]
    %v220 = vld [vmem:[#allocation3 + $0x268] sm:$0xff]
    %v221 = vld [vmem:[#allocation3 + $0x270] sm:$0xff]
    %v222 = vld [vmem:[#allocation3 + $0x278] sm:$0xff]
    %v223 = vld [vmem:[#allocation3 + $0x280] sm:$0xff]
    %v224 = vld [vmem:[#allocation3 + $0x288] sm:$0xff]
    %v225 = vld [vmem:[#allocation3 + $0x290] sm:$0xff]
    %v226 = vld [vmem:[#allocation3 + $0x298] sm:$0xff]
    %v227 = vld [vmem:[#allocation3 + $0x2a0] sm:$0xff]
    %v228 = vld [vmem:[#allocation3 + $0x2a8] sm:$0xff]
    %v229 = vld [vmem:[#allocation3 + $0x2b0] sm:$0xff]
    %v230 = vld [vmem:[#allocation3 + $0x2b8] sm:$0xff]
    %v231 = vld [vmem:[#allocation3 + $0x2c0] sm:$0xff]
    %v232 = vld [vmem:[#allocation3 + $0x2c8] sm:$0xff]
    %v233 = vld [vmem:[#allocation3 + $0x2d0] sm:$0xff]
    %v234 = vld [vmem:[#allocation3 + $0x2d8] sm:$0xff]
    %v235 = vld [vmem:[#allocation3 + $0x2e0] sm:$0xff]
    %v236 = vld [vmem:[#allocation3 + $0x2e8] sm:$0xff]
    %v237 = vld [vmem:[#allocation3 + $0x2f0] sm:$0xff]
    %v238 = vld [vmem:[#allocation3 + $0x2f8] sm:$0xff]
    %v239 = vld [vmem:[#allocation3 + $0x300] sm:$0xff]
    %v240 = vld [vmem:[#allocation3 + $0x308] sm:$0xff]
    %v241 = vld [vmem:[#allocation3 + $0x310] sm:$0xff]
    %v242 = vld [vmem:[#allocation3 + $0x318] sm:$0xff]
    %v243 = vld [vmem:[#allocation3 + $0x320] sm:$0xff]
    %v244 = vld [vmem:[#allocation3 + $0x328] sm:$0xff]
    %v245 = vld [vmem:[#allocation3 + $0x330] sm:$0xff]
    %v246 = vld [vmem:[#allocation3 + $0x338] sm:$0xff]
    %v247 = vld [vmem:[#allocation3 + $0x340] sm:$0xff]
    %v248 = vld [vmem:[#allocation3 + $0x348] sm:$0xff]
    %v249 = vld [vmem:[#allocation3 + $0x350] sm:$0xff]
    %v250 = vld [vmem:[#allocation3 + $0x358] sm:$0xff]
    %v251 = vld [vmem:[#allocation3 + $0x360] sm:$0xff]
    %v252 = vld [vmem:[#allocation3 + $0x368] sm:$0xff]
    %v253 = vld [vmem:[#allocation3 + $0x370] sm:$0xff]
    %v254 = vld [vmem:[#allocation3 + $0x378] sm:$0xff]
    %v255 = vld [vmem:[#allocation3 + $0x380] sm:$0xff]
    %v256 = vld [vmem:[#allocation3 + $0x388] sm:$0xff]
    %v257 = vld [vmem:[#allocation3 + $0x390] sm:$0xff]
    %v258 = vld [vmem:[#allocation3 + $0x398] sm:$0xff]
    %v259 = vld [vmem:[#allocation3 + $0x3a0] sm:$0xff]
    %v260 = vld [vmem:[#allocation3 + $0x3a8] sm:$0xff]
    %v261 = vld [vmem:[#allocation3 + $0x3b0] sm:$0xff]
    %v262 = vld [vmem:[#allocation3 + $0x3b8] sm:$0xff]
    %v263 = vld [vmem:[#allocation3 + $0x3c0] sm:$0xff]
    %v264 = vld [vmem:[#allocation3 + $0x3c8] sm:$0xff]
    %v265 = vld [vmem:[#allocation3 + $0x3d0] sm:$0xff]
    %v266 = vld [vmem:[#allocation3 + $0x3d8] sm:$0xff]
    %v267 = vld [vmem:[#allocation3 + $0x3e0] sm:$0xff]
    %v268 = vld [vmem:[#allocation3 + $0x3e8] sm:$0xff]
    %v269 = vld [vmem:[#allocation3 + $0x3f0] sm:$0xff]
    %v270 = vld [vmem:[#allocation3 + $0x3f8] sm:$0xff]
    %v271 = vld [vmem:[#allocation3 + $0x400] sm:$0xff]
    %v272 = vld [vmem:[#allocation3 + $0x408] sm:$0xff]
    %v273 = vld [vmem:[#allocation3 + $0x410] sm:$0xff]
    %v274 = vld [vmem:[#allocation3 + $0x418] sm:$0xff]
    %v275 = vld [vmem:[#allocation3 + $0x420] sm:$0xff]
    %v276 = vld [vmem:[#allocation3 + $0x428] sm:$0xff]
    %v277 = vld [vmem:[#allocation3 + $0x430] sm:$0xff]
    %v278 = vld [vmem:[#allocation3 + $0x438] sm:$0xff]
    %v279 = vld [vmem:[#allocation3 + $0x440] sm:$0xff]
    %v280 = vld [vmem:[#allocation3 + $0x448] sm:$0xff]
    %v281 = vld [vmem:[#allocation3 + $0x450] sm:$0xff]
    %v282 = vld [vmem:[#allocation3 + $0x458] sm:$0xff]
    %v283 = vld [vmem:[#allocation3 + $0x460] sm:$0xff]
    %v284 = vld [vmem:[#allocation3 + $0x468] sm:$0xff]
    %v285 = vld [vmem:[#allocation3 + $0x470] sm:$0xff]
    %v286 = vld [vmem:[#allocation3 + $0x478] sm:$0xff]
    %v287 = vld [vmem:[#allocation3 + $0x480] sm:$0xff]
    %v288 = vld [vmem:[#allocation3 + $0x488] sm:$0xff]
    %v289 = vld [vmem:[#allocation3 + $0x490] sm:$0xff]
    %v290 = vld [vmem:[#allocation3 + $0x498] sm:$0xff]
    %v291 = vld [vmem:[#allocation3 + $0x4a0] sm:$0xff]
    %v292 = vld [vmem:[#allocation3 + $0x4a8] sm:$0xff]
    %v293 = vld [vmem:[#allocation3 + $0x4b0] sm:$0xff]
    %v294 = vld [vmem:[#allocation3 + $0x4b8] sm:$0xff]
    %v295 = vld [vmem:[#allocation3 + $0x4c0] sm:$0xff]
    %v296 = vld [vmem:[#allocation3 + $0x4c8] sm:$0xff]
    %v297 = vld [vmem:[#allocation3 + $0x4d0] sm:$0xff]
    %v298 = vld [vmem:[#allocation3 + $0x4d8] sm:$0xff]
    %v299 = vld [vmem:[#allocation3 + $0x4e0] sm:$0xff]
    %v300 = vld [vmem:[#allocation3 + $0x4e8] sm:$0xff]
    %v301 = vld [vmem:[#allocation3 + $0x4f0] sm:$0xff]
    %v302 = vld [vmem:[#allocation3 + $0x4f8] sm:$0xff]
    %v303 = vld [vmem:[#allocation3 + $0x500] sm:$0xff]
    %v304 = vld [vmem:[#allocation3 + $0x508] sm:$0xff]
    %v305 = vld [vmem:[#allocation3 + $0x510] sm:$0xff]
    %v306 = vld [vmem:[#allocation3 + $0x518] sm:$0xff]
    %v307 = vld [vmem:[#allocation3 + $0x520] sm:$0xff]
    %v308 = vld [vmem:[#allocation3 + $0x528] sm:$0xff]
    %v309 = vld [vmem:[#allocation3 + $0x530] sm:$0xff]
    %v310 = vld [vmem:[#allocation3 + $0x538] sm:$0xff]
    %v311 = vld [vmem:[#allocation3 + $0x540] sm:$0xff]
    %v312 = vld [vmem:[#allocation3 + $0x548] sm:$0xff]
    %v313 = vld [vmem:[#allocation3 + $0x550] sm:$0xff]
    %v314 = vld [vmem:[#allocation3 + $0x558] sm:$0xff]
    %v315 = vld [vmem:[#allocation3 + $0x560] sm:$0xff]
    %v316 = vld [vmem:[#allocation3 + $0x568] sm:$0xff]
    %v317 = vld [vmem:[#allocation3 + $0x570] sm:$0xff]
    %v318 = vld [vmem:[#allocation3 + $0x578] sm:$0xff]
    %v319 = vld [vmem:[#allocation3 + $0x580] sm:$0xff]
    %v320 = vld [vmem:[#allocation3 + $0x588] sm:$0xff]
    %v321 = vld [vmem:[#allocation3 + $0x590] sm:$0xff]
    %v322 = vld [vmem:[#allocation3 + $0x598] sm:$0xff]
    %v323 = vld [vmem:[#allocation3 + $0x5a0] sm:$0xff]
    %v324 = vld [vmem:[#allocation3 + $0x5a8] sm:$0xff]
    %v325 = vld [vmem:[#allocation3 + $0x5b0] sm:$0xff]
    %v326 = vld [vmem:[#allocation3 + $0x5b8] sm:$0xff]
    %v327 = vld [vmem:[#allocation3 + $0x5c0] sm:$0xff]
    %v328 = vld [vmem:[#allocation3 + $0x5c8] sm:$0xff]
    %v329 = vld [vmem:[#allocation3 + $0x5d0] sm:$0xff]
    %v330 = vld [vmem:[#allocation3 + $0x5d8] sm:$0xff]
    %v331 = vld [vmem:[#allocation3 + $0x5e0] sm:$0xff]
    %v332 = vld [vmem:[#allocation3 + $0x5e8] sm:$0xff]
    %v333 = vld [vmem:[#allocation3 + $0x5f0] sm:$0xff]
    %v334 = vld [vmem:[#allocation3 + $0x5f8] sm:$0xff]
    %v335 = vld [vmem:[#allocation3 + $0x600] sm:$0xff]
    %v336 = vld [vmem:[#allocation3 + $0x608] sm:$0xff]
    %v337 = vld [vmem:[#allocation3 + $0x610] sm:$0xff]
    %v338 = vld [vmem:[#allocation3 + $0x618] sm:$0xff]
    %v339 = vld [vmem:[#allocation3 + $0x620] sm:$0xff]
    %v340 = vld [vmem:[#allocation3 + $0x628] sm:$0xff]
    %v341 = vld [vmem:[#allocation3 + $0x630] sm:$0xff]
    %v342 = vld [vmem:[#allocation3 + $0x638] sm:$0xff]
    %v343 = vld [vmem:[#allocation3 + $0x640] sm:$0xff]
    %v344 = vld [vmem:[#allocation3 + $0x648] sm:$0xff]
    %v345 = vld [vmem:[#allocation3 + $0x650] sm:$0xff]
    %v346 = vld [vmem:[#allocation3 + $0x658] sm:$0xff]
    %v347 = vld [vmem:[#allocation3 + $0x660] sm:$0xff]
    %v348 = vld [vmem:[#allocation3 + $0x668] sm:$0xff]
    %v349 = vld [vmem:[#allocation3 + $0x670] sm:$0xff]
    %v350 = vld [vmem:[#allocation3 + $0x678] sm:$0xff]
    %v351 = vld [vmem:[#allocation3 + $0x680] sm:$0xff]
    %v352 = vld [vmem:[#allocation3 + $0x688] sm:$0xff]
    %v353 = vld [vmem:[#allocation3 + $0x690] sm:$0xff]
    %v354 = vld [vmem:[#allocation3 + $0x698] sm:$0xff]
    %v355 = vld [vmem:[#allocation3 + $0x6a0] sm:$0xff]
    %v356 = vld [vmem:[#allocation3 + $0x6a8] sm:$0xff]
    %v357 = vld [vmem:[#allocation3 + $0x6b0] sm:$0xff]
    %v358 = vld [vmem:[#allocation3 + $0x6b8] sm:$0xff]
    %v359 = vld [vmem:[#allocation3 + $0x6c0] sm:$0xff]
    %v360 = vld [vmem:[#allocation3 + $0x6c8] sm:$0xff]
    %v361 = vld [vmem:[#allocation3 + $0x6d0] sm:$0xff]
    %v362 = vld [vmem:[#allocation3 + $0x6d8] sm:$0xff]
    %v363 = vld [vmem:[#allocation3 + $0x6e0] sm:$0xff]
    %v364 = vld [vmem:[#allocation3 + $0x6e8] sm:$0xff]
    %v365 = vld [vmem:[#allocation3 + $0x6f0] sm:$0xff]
    %v366 = vld [vmem:[#allocation3 + $0x6f8] sm:$0xff]
    %v367 = vld [vmem:[#allocation3 + $0x700] sm:$0xff]
    %v368 = vld [vmem:[#allocation3 + $0x708] sm:$0xff]
    %v369 = vld [vmem:[#allocation3 + $0x710] sm:$0xff]
    %v370 = vld [vmem:[#allocation3 + $0x718] sm:$0xff]
    %v371 = vld [vmem:[#allocation3 + $0x720] sm:$0xff]
    %v372 = vld [vmem:[#allocation3 + $0x728] sm:$0xff]
    %v373 = vld [vmem:[#allocation3 + $0x730] sm:$0xff]
    %v374 = vld [vmem:[#allocation3 + $0x738] sm:$0xff]
    %v375 = vld [vmem:[#allocation3 + $0x740] sm:$0xff]
    %v376 = vld [vmem:[#allocation3 + $0x748] sm:$0xff]
    %v377 = vld [vmem:[#allocation3 + $0x750] sm:$0xff]
    %v378 = vld [vmem:[#allocation3 + $0x758] sm:$0xff]
    %v379 = vld [vmem:[#allocation3 + $0x760] sm:$0xff]
    %v380 = vld [vmem:[#allocation3 + $0x768] sm:$0xff]
    %v381 = vld [vmem:[#allocation3 + $0x770] sm:$0xff]
    %v382 = vld [vmem:[#allocation3 + $0x778] sm:$0xff]
    %v383 = vld [vmem:[#allocation3 + $0x780] sm:$0xff]
    %v384 = vld [vmem:[#allocation3 + $0x788] sm:$0xff]
    %v385 = vld [vmem:[#allocation3 + $0x790] sm:$0xff]
    %v386 = vld [vmem:[#allocation3 + $0x798] sm:$0xff]
    %v387 = vld [vmem:[#allocation3 + $0x7a0] sm:$0xff]
    %v388 = vld [vmem:[#allocation3 + $0x7a8] sm:$0xff]
    %v389 = vld [vmem:[#allocation3 + $0x7b0] sm:$0xff]
    %v390 = vld [vmem:[#allocation3 + $0x7b8] sm:$0xff]
    %v391 = vld [vmem:[#allocation3 + $0x7c0] sm:$0xff]
    %v392 = vld [vmem:[#allocation3 + $0x7c8] sm:$0xff]
    %v393 = vld [vmem:[#allocation3 + $0x7d0] sm:$0xff]
    %v394 = vld [vmem:[#allocation3 + $0x7d8] sm:$0xff]
    %v395 = vld [vmem:[#allocation3 + $0x7e0] sm:$0xff]
    %v396 = vld [vmem:[#allocation3 + $0x7e8] sm:$0xff]
    %v397 = vld [vmem:[#allocation3 + $0x7f0] sm:$0xff]
    %v398 = vld [vmem:[#allocation3 + $0x7f8] sm:$0xff]
    %v399 = vld [vmem:[#allocation3 + $0x800] sm:$0xff]
    %v400 = vld [vmem:[#allocation3 + $0x808] sm:$0xff]
    %v401 = vld [vmem:[#allocation3 + $0x810] sm:$0xff]
    %v402 = vld [vmem:[#allocation3 + $0x818] sm:$0xff]
    %v403 = vld [vmem:[#allocation3 + $0x820] sm:$0xff]
    %v404 = vld [vmem:[#allocation3 + $0x828] sm:$0xff]
    %v405 = vld [vmem:[#allocation3 + $0x830] sm:$0xff]
    %v406 = vld [vmem:[#allocation3 + $0x838] sm:$0xff]
    %v407 = vld [vmem:[#allocation3 + $0x840] sm:$0xff]
    %v408 = vld [vmem:[#allocation3 + $0x848] sm:$0xff]
    %v409 = vld [vmem:[#allocation3 + $0x850] sm:$0xff]
    %v410 = vld [vmem:[#allocation3 + $0x858] sm:$0xff]
    %v411 = vld [vmem:[#allocation3 + $0x860] sm:$0xff]
    %v412 = vld [vmem:[#allocation3 + $0x868] sm:$0xff]
    %v413 = vld [vmem:[#allocation3 + $0x870] sm:$0xff]
    %v414 = vld [vmem:[#allocation3 + $0x878] sm:$0xff]
    %v415 = vld [vmem:[#allocation3 + $0x880] sm:$0xff]
    %v416 = vld [vmem:[#allocation3 + $0x888] sm:$0xff]
    %v417 = vld [vmem:[#allocation3 + $0x890] sm:$0xff]
    %v418 = vld [vmem:[#allocation3 + $0x898] sm:$0xff]
    %v419 = vld [vmem:[#allocation3 + $0x8a0] sm:$0xff]
    %v420 = vld [vmem:[#allocation3 + $0x8a8] sm:$0xff]
    %v421 = vld [vmem:[#allocation3 + $0x8b0] sm:$0xff]
    %v422 = vld [vmem:[#allocation3 + $0x8b8] sm:$0xff]
    %v423 = vld [vmem:[#allocation3 + $0x8c0] sm:$0xff]
    %v424 = vld [vmem:[#allocation3 + $0x8c8] sm:$0xff]
    %v425 = vld [vmem:[#allocation3 + $0x8d0] sm:$0xff]
    %v426 = vld [vmem:[#allocation3 + $0x8d8] sm:$0xff]
    %v427 = vld [vmem:[#allocation3 + $0x8e0] sm:$0xff]
    %v428 = vld [vmem:[#allocation3 + $0x8e8] sm:$0xff]
    %v429 = vld [vmem:[#allocation3 + $0x8f0] sm:$0xff]
    %v430 = vld [vmem:[#allocation3 + $0x8f8] sm:$0xff]
    %v431 = vld [vmem:[#allocation3 + $0x900] sm:$0xff]
    %v432 = vld [vmem:[#allocation3 + $0x908] sm:$0xff]
    %v433 = vld [vmem:[#allocation3 + $0x910] sm:$0xff]
    %v434 = vld [vmem:[#allocation3 + $0x918] sm:$0xff]
    %v435 = vld [vmem:[#allocation3 + $0x920] sm:$0xff]
    %v436 = vld [vmem:[#allocation3 + $0x928] sm:$0xff]
    %v437 = vld [vmem:[#allocation3 + $0x930] sm:$0xff]
    %v438 = vld [vmem:[#allocation3 + $0x938] sm:$0xff]
    %v439 = vld [vmem:[#allocation3 + $0x940] sm:$0xff]
    %v440 = vld [vmem:[#allocation3 + $0x948] sm:$0xff]
    %v441 = vld [vmem:[#allocation3 + $0x950] sm:$0xff]
    %v442 = vld [vmem:[#allocation3 + $0x958] sm:$0xff]
    %v443 = vld [vmem:[#allocation3 + $0x960] sm:$0xff]
    %v444 = vld [vmem:[#allocation3 + $0x968] sm:$0xff]
    %v445 = vld [vmem:[#allocation3 + $0x970] sm:$0xff]
    %v446 = vld [vmem:[#allocation3 + $0x978] sm:$0xff]
    %v447 = vld [vmem:[#allocation3 + $0x980] sm:$0xff]
    %v448 = vld [vmem:[#allocation3 + $0x988] sm:$0xff]
    %v449 = vld [vmem:[#allocation3 + $0x990] sm:$0xff]
    %v450 = vld [vmem:[#allocation3 + $0x998] sm:$0xff]
    %v451 = vld [vmem:[#allocation3 + $0x9a0] sm:$0xff]
    %v452 = vld [vmem:[#allocation3 + $0x9a8] sm:$0xff]
    %v453 = vld [vmem:[#allocation3 + $0x9b0] sm:$0xff]
    %v454 = vld [vmem:[#allocation3 + $0x9b8] sm:$0xff]
    %v455 = vld [vmem:[#allocation3 + $0x9c0] sm:$0xff]
    %v456 = vld [vmem:[#allocation3 + $0x9c8] sm:$0xff]
    %v457 = vld [vmem:[#allocation3 + $0x9d0] sm:$0xff]
    %v458 = vld [vmem:[#allocation3 + $0x9d8] sm:$0xff]
    %v459 = vld [vmem:[#allocation3 + $0x9e0] sm:$0xff]
    %v460 = vld [vmem:[#allocation3 + $0x9e8] sm:$0xff]
    %v461 = vld [vmem:[#allocation3 + $0x9f0] sm:$0xff]
    %v462 = vld [vmem:[#allocation3 + $0x9f8] sm:$0xff]
    %v463 = vld [vmem:[#allocation3 + $0xa00] sm:$0xff]
    %v464 = vld [vmem:[#allocation3 + $0xa08] sm:$0xff]
    %v465 = vld [vmem:[#allocation3 + $0xa10] sm:$0xff]
    %v466 = vld [vmem:[#allocation3 + $0xa18] sm:$0xff]
    %v467 = vld [vmem:[#allocation3 + $0xa20] sm:$0xff]
    %v468 = vld [vmem:[#allocation3 + $0xa28] sm:$0xff]
    %v469 = vld [vmem:[#allocation3 + $0xa30] sm:$0xff]
    %v470 = vld [vmem:[#allocation3 + $0xa38] sm:$0xff]
    %v471 = vld [vmem:[#allocation3 + $0xa40] sm:$0xff]
    %v472 = vld [vmem:[#allocation3 + $0xa48] sm:$0xff]
    %v473 = vld [vmem:[#allocation3 + $0xa50] sm:$0xff]
    %v474 = vld [vmem:[#allocation3 + $0xa58] sm:$0xff]
    %v475 = vld [vmem:[#allocation3 + $0xa60] sm:$0xff]
    %v476 = vld [vmem:[#allocation3 + $0xa68] sm:$0xff]
    %v477 = vld [vmem:[#allocation3 + $0xa70] sm:$0xff]
    %v478 = vld [vmem:[#allocation3 + $0xa78] sm:$0xff]
    %v479 = vld [vmem:[#allocation3 + $0xa80] sm:$0xff]
    %v480 = vld [vmem:[#allocation3 + $0xa88] sm:$0xff]
    %v481 = vld [vmem:[#allocation3 + $0xa90] sm:$0xff]
    %v482 = vld [vmem:[#allocation3 + $0xa98] sm:$0xff]
    %v483 = vld [vmem:[#allocation3 + $0xaa0] sm:$0xff]
    %v484 = vld [vmem:[#allocation3 + $0xaa8] sm:$0xff]
    %v485 = vld [vmem:[#allocation3 + $0xab0] sm:$0xff]
    %v486 = vld [vmem:[#allocation3 + $0xab8] sm:$0xff]
    %v487 = vld [vmem:[#allocation3 + $0xac0] sm:$0xff]
    %v488 = vld [vmem:[#allocation3 + $0xac8] sm:$0xff]
    %v489 = vld [vmem:[#allocation3 + $0xad0] sm:$0xff]
    %v490 = vld [vmem:[#allocation3 + $0xad8] sm:$0xff]
    %v491 = vld [vmem:[#allocation3 + $0xae0] sm:$0xff]
    %v492 = vld [vmem:[#allocation3 + $0xae8] sm:$0xff]
    %v493 = vld [vmem:[#allocation3 + $0xaf0] sm:$0xff]
    %v494 = vld [vmem:[#allocation3 + $0xaf8] sm:$0xff]
    %v495 = vld [vmem:[#allocation3 + $0xb00] sm:$0xff]
    %v496 = vld [vmem:[#allocation3 + $0xb08] sm:$0xff]
    %v497 = vld [vmem:[#allocation3 + $0xb10] sm:$0xff]
    %v498 = vld [vmem:[#allocation3 + $0xb18] sm:$0xff]
    %v499 = vld [vmem:[#allocation3 + $0xb20] sm:$0xff]
    %v500 = vld [vmem:[#allocation3 + $0xb28] sm:$0xff]
    %v501 = vld [vmem:[#allocation3 + $0xb30] sm:$0xff]
    %v502 = vld [vmem:[#allocation3 + $0xb38] sm:$0xff]
    %v503 = vld [vmem:[#allocation3 + $0xb40] sm:$0xff]
    %v504 = vld [vmem:[#allocation3 + $0xb48] sm:$0xff]
    %v505 = vld [vmem:[#allocation3 + $0xb50] sm:$0xff]
    %v506 = vld [vmem:[#allocation3 + $0xb58] sm:$0xff]
    %v507 = vld [vmem:[#allocation3 + $0xb60] sm:$0xff]
    %v508 = vld [vmem:[#allocation3 + $0xb68] sm:$0xff]
    %v509 = vld [vmem:[#allocation3 + $0xb70] sm:$0xff]
    %v510 = vld [vmem:[#allocation3 + $0xb78] sm:$0xff]
    %v511 = vld [vmem:[#allocation3 + $0xb80] sm:$0xff]
    %v512 = vld [vmem:[#allocation3 + $0xb88] sm:$0xff]
    %v513 = vld [vmem:[#allocation3 + $0xb90] sm:$0xff]
    %v514 = vld [vmem:[#allocation3 + $0xb98] sm:$0xff]
    %v515 = vld [vmem:[#allocation3 + $0xba0] sm:$0xff]
    %v516 = vld [vmem:[#allocation3 + $0xba8] sm:$0xff]
    %v517 = vld [vmem:[#allocation3 + $0xbb0] sm:$0xff]
    %v518 = vld [vmem:[#allocation3 + $0xbb8] sm:$0xff]
    %v519 = vld [vmem:[#allocation3 + $0xbc0] sm:$0xff]
    %v520 = vld [vmem:[#allocation3 + $0xbc8] sm:$0xff]
    %v521 = vld [vmem:[#allocation3 + $0xbd0] sm:$0xff]
    %v522 = vld [vmem:[#allocation3 + $0xbd8] sm:$0xff]
    %v523 = vld [vmem:[#allocation3 + $0xbe0] sm:$0xff]
    %v524 = vld [vmem:[#allocation3 + $0xbe8] sm:$0xff]
    %v525 = vld [vmem:[#allocation3 + $0xbf0] sm:$0xff]
    %v526 = vld [vmem:[#allocation3 + $0xbf8] sm:$0xff]
    %v527 = vld [vmem:[#allocation3 + $0xc00] sm:$0xff]
    %v528 = vld [vmem:[#allocation3 + $0xc08] sm:$0xff]
    %v529 = vld [vmem:[#allocation3 + $0xc10] sm:$0xff]
    %v530 = vld [vmem:[#allocation3 + $0xc18] sm:$0xff]
    %v531 = vld [vmem:[#allocation3 + $0xc20] sm:$0xff]
    %v532 = vld [vmem:[#allocation3 + $0xc28] sm:$0xff]
    %v533 = vld [vmem:[#allocation3 + $0xc30] sm:$0xff]
    %v534 = vld [vmem:[#allocation3 + $0xc38] sm:$0xff]
    %v535 = vld [vmem:[#allocation5] sm:$0xff]
    %v537 = vlaneseq
    %v538 = vshrl.u32 %v537, 7
    %v539 = vsub.s32 0, %v538
    %v540 = vrot.slane %v535, %v539
    %v541 = vlaneseq
    %v542 = vshrl.u32 %v541, 7
    %v543 = vsub.s32 1, %v542
    %v544 = vrot.slane %v535, %v543
    %v545 = vlaneseq
    %v546 = vshrl.u32 %v545, 7
    %v547 = vsub.s32 2, %v546
    %v548 = vrot.slane %v535, %v547
    %v549 = vlaneseq
    %v550 = vshrl.u32 %v549, 7
    %v551 = vsub.s32 3, %v550
    %v552 = vrot.slane %v535, %v551
    %v553 = vlaneseq
    %v554 = vshrl.u32 %v553, 7
    %v555 = vsub.s32 4, %v554
    %v556 = vrot.slane %v535, %v555
    %v557 = vlaneseq
    %v558 = vshrl.u32 %v557, 7
    %v559 = vsub.s32 5, %v558
    %v560 = vrot.slane %v535, %v559
    %v561 = vlaneseq
    %v562 = vshrl.u32 %v561, 7
    %v563 = vsub.s32 6, %v562
    %v564 = vrot.slane %v535, %v563
    %v565 = vlaneseq
    %v566 = vshrl.u32 %v565, 7
    %v567 = vsub.s32 7, %v566
    %v568 = vrot.slane %v535, %v567
    %v969 = vunpack.c.l.b16 %v143
    %v970 = vunpack.c.h.b16 %v143
    %v971 = vunpack.c.l.b16 %v144
    %v972 = vunpack.c.h.b16 %v144
    %v973 = vunpack.c.l.b16 %v145
    %v974 = vunpack.c.h.b16 %v145
    %v975 = vunpack.c.l.b16 %v146
    %v976 = vunpack.c.h.b16 %v146
    %v977 = vunpack.c.l.b16 %v147
    %v978 = vunpack.c.h.b16 %v147
    %v979 = vunpack.c.l.b16 %v148
    %v980 = vunpack.c.h.b16 %v148
    %v981 = vunpack.c.l.b16 %v149
    %v982 = vunpack.c.h.b16 %v149
    %v983 = vunpack.c.l.b16 %v150
    %v984 = vunpack.c.h.b16 %v150
    %v985 = vunpack.c.l.b16 %v151
    %v986 = vunpack.c.h.b16 %v151
    %v987 = vunpack.c.l.b16 %v152
    %v988 = vunpack.c.h.b16 %v152
    %v989 = vunpack.c.l.b16 %v153
    %v990 = vunpack.c.h.b16 %v153
    %v991 = vunpack.c.l.b16 %v154
    %v992 = vunpack.c.h.b16 %v154
    %v993 = vunpack.c.l.b16 %v155
    %v994 = vunpack.c.h.b16 %v155
    %v995 = vunpack.c.l.b16 %v156
    %v996 = vunpack.c.h.b16 %v156
    %v997 = vunpack.c.l.b16 %v157
    %v998 = vunpack.c.h.b16 %v157
    %v999 = vunpack.c.l.b16 %v158
    %v1000 = vunpack.c.h.b16 %v158
    %v1001 = vunpack.c.l.b16 %v159
    %v1002 = vunpack.c.h.b16 %v159
    %v1003 = vunpack.c.l.b16 %v160
    %v1004 = vunpack.c.h.b16 %v160
    %v1005 = vunpack.c.l.b16 %v161
    %v1006 = vunpack.c.h.b16 %v161
    %v1007 = vunpack.c.l.b16 %v162
    %v1008 = vunpack.c.h.b16 %v162
    %v1009 = vunpack.c.l.b16 %v163
    %v1010 = vunpack.c.h.b16 %v163
    %v1011 = vunpack.c.l.b16 %v164
    %v1012 = vunpack.c.h.b16 %v164
    %v1013 = vunpack.c.l.b16 %v165
    %v1014 = vunpack.c.h.b16 %v165
    %v1015 = vunpack.c.l.b16 %v166
    %v1016 = vunpack.c.h.b16 %v166
    %v1017 = vunpack.c.l.b16 %v167
    %v1018 = vunpack.c.h.b16 %v167
    %v1019 = vunpack.c.l.b16 %v168
    %v1020 = vunpack.c.h.b16 %v168
    %v1021 = vunpack.c.l.b16 %v169
    %v1022 = vunpack.c.h.b16 %v169
    %v1023 = vunpack.c.l.b16 %v170
    %v1024 = vunpack.c.h.b16 %v170
    %v1025 = vunpack.c.l.b16 %v171
    %v1026 = vunpack.c.h.b16 %v171
    %v1027 = vunpack.c.l.b16 %v172
    %v1028 = vunpack.c.h.b16 %v172
    %v1029 = vunpack.c.l.b16 %v173
    %v1030 = vunpack.c.h.b16 %v173
    %v1031 = vunpack.c.l.b16 %v174
    %v1032 = vunpack.c.h.b16 %v174
    %v1033 = vunpack.c.l.b16 %v175
    %v1034 = vunpack.c.h.b16 %v175
    %v1035 = vunpack.c.l.b16 %v176
    %v1036 = vunpack.c.h.b16 %v176
    %v1037 = vunpack.c.l.b16 %v177
    %v1038 = vunpack.c.h.b16 %v177
    %v1039 = vunpack.c.l.b16 %v178
    %v1040 = vunpack.c.h.b16 %v178
    %v1041 = vunpack.c.l.b16 %v179
    %v1042 = vunpack.c.h.b16 %v179
    %v1043 = vunpack.c.l.b16 %v180
    %v1044 = vunpack.c.h.b16 %v180
    %v1045 = vunpack.c.l.b16 %v181
    %v1046 = vunpack.c.h.b16 %v181
    %v1047 = vunpack.c.l.b16 %v182
    %v1048 = vunpack.c.h.b16 %v182
    %v1049 = vunpack.c.l.b16 %v183
    %v1050 = vunpack.c.h.b16 %v183
    %v1051 = vunpack.c.l.b16 %v184
    %v1052 = vunpack.c.h.b16 %v184
    %v1053 = vunpack.c.l.b16 %v185
    %v1054 = vunpack.c.h.b16 %v185
    %v1055 = vunpack.c.l.b16 %v186
    %v1056 = vunpack.c.h.b16 %v186
    %v1057 = vunpack.c.l.b16 %v187
    %v1058 = vunpack.c.h.b16 %v187
    %v1059 = vunpack.c.l.b16 %v188
    %v1060 = vunpack.c.h.b16 %v188
    %v1061 = vunpack.c.l.b16 %v189
    %v1062 = vunpack.c.h.b16 %v189
    %v1063 = vunpack.c.l.b16 %v190
    %v1064 = vunpack.c.h.b16 %v190
    %v1065 = vunpack.c.l.b16 %v191
    %v1066 = vunpack.c.h.b16 %v191
    %v1067 = vunpack.c.l.b16 %v192
    %v1068 = vunpack.c.h.b16 %v192
    %v1069 = vunpack.c.l.b16 %v193
    %v1070 = vunpack.c.h.b16 %v193
    %v1071 = vunpack.c.l.b16 %v194
    %v1072 = vunpack.c.h.b16 %v194
    %v1073 = vunpack.c.l.b16 %v195
    %v1074 = vunpack.c.h.b16 %v195
    %v1075 = vunpack.c.l.b16 %v196
    %v1076 = vunpack.c.h.b16 %v196
    %v1077 = vunpack.c.l.b16 %v197
    %v1078 = vunpack.c.h.b16 %v197
    %v1079 = vunpack.c.l.b16 %v198
    %v1080 = vunpack.c.h.b16 %v198
    %v1081 = vunpack.c.l.b16 %v199
    %v1082 = vunpack.c.h.b16 %v199
    %v1083 = vunpack.c.l.b16 %v200
    %v1084 = vunpack.c.h.b16 %v200
    %v1085 = vunpack.c.l.b16 %v201
    %v1086 = vunpack.c.h.b16 %v201
    %v1087 = vunpack.c.l.b16 %v202
    %v1088 = vunpack.c.h.b16 %v202
    %v1089 = vunpack.c.l.b16 %v203
    %v1090 = vunpack.c.h.b16 %v203
    %v1091 = vunpack.c.l.b16 %v204
    %v1092 = vunpack.c.h.b16 %v204
    %v1093 = vunpack.c.l.b16 %v205
    %v1094 = vunpack.c.h.b16 %v205
    %v1095 = vunpack.c.l.b16 %v206
    %v1096 = vunpack.c.h.b16 %v206
    %v1097 = vunpack.c.l.b16 %v207
    %v1098 = vunpack.c.h.b16 %v207
    %v1099 = vunpack.c.l.b16 %v208
    %v1100 = vunpack.c.h.b16 %v208
    %v1101 = vunpack.c.l.b16 %v209
    %v1102 = vunpack.c.h.b16 %v209
    %v1103 = vunpack.c.l.b16 %v210
    %v1104 = vunpack.c.h.b16 %v210
    %v1105 = vunpack.c.l.b16 %v211
    %v1106 = vunpack.c.h.b16 %v211
    %v1107 = vunpack.c.l.b16 %v212
    %v1108 = vunpack.c.h.b16 %v212
    %v1109 = vunpack.c.l.b16 %v213
    %v1110 = vunpack.c.h.b16 %v213
    %v1111 = vunpack.c.l.b16 %v214
    %v1112 = vunpack.c.h.b16 %v214
    %v1113 = vunpack.c.l.b16 %v215
    %v1114 = vunpack.c.h.b16 %v215
    %v1115 = vunpack.c.l.b16 %v216
    %v1116 = vunpack.c.h.b16 %v216
    %v1117 = vunpack.c.l.b16 %v217
    %v1118 = vunpack.c.h.b16 %v217
    %v1119 = vunpack.c.l.b16 %v218
    %v1120 = vunpack.c.h.b16 %v218
    %v1121 = vunpack.c.l.b16 %v219
    %v1122 = vunpack.c.h.b16 %v219
    %v1123 = vunpack.c.l.b16 %v220
    %v1124 = vunpack.c.h.b16 %v220
    %v1125 = vunpack.c.l.b16 %v221
    %v1126 = vunpack.c.h.b16 %v221
    %v1127 = vunpack.c.l.b16 %v222
    %v1128 = vunpack.c.h.b16 %v222
    %v1129 = vunpack.c.l.b16 %v223
    %v1130 = vunpack.c.h.b16 %v223
    %v1131 = vunpack.c.l.b16 %v224
    %v1132 = vunpack.c.h.b16 %v224
    %v1133 = vunpack.c.l.b16 %v225
    %v1134 = vunpack.c.h.b16 %v225
    %v1135 = vunpack.c.l.b16 %v226
    %v1136 = vunpack.c.h.b16 %v226
    %v1137 = vunpack.c.l.b16 %v227
    %v1138 = vunpack.c.h.b16 %v227
    %v1139 = vunpack.c.l.b16 %v228
    %v1140 = vunpack.c.h.b16 %v228
    %v1141 = vunpack.c.l.b16 %v229
    %v1142 = vunpack.c.h.b16 %v229
    %v1143 = vunpack.c.l.b16 %v230
    %v1144 = vunpack.c.h.b16 %v230
    %v1145 = vunpack.c.l.b16 %v231
    %v1146 = vunpack.c.h.b16 %v231
    %v1147 = vunpack.c.l.b16 %v232
    %v1148 = vunpack.c.h.b16 %v232
    %v1149 = vunpack.c.l.b16 %v233
    %v1150 = vunpack.c.h.b16 %v233
    %v1151 = vunpack.c.l.b16 %v234
    %v1152 = vunpack.c.h.b16 %v234
    %v1153 = vunpack.c.l.b16 %v235
    %v1154 = vunpack.c.h.b16 %v235
    %v1155 = vunpack.c.l.b16 %v236
    %v1156 = vunpack.c.h.b16 %v236
    %v1157 = vunpack.c.l.b16 %v237
    %v1158 = vunpack.c.h.b16 %v237
    %v1159 = vunpack.c.l.b16 %v238
    %v1160 = vunpack.c.h.b16 %v238
    %v1161 = vunpack.c.l.b16 %v239
    %v1162 = vunpack.c.h.b16 %v239
    %v1163 = vunpack.c.l.b16 %v240
    %v1164 = vunpack.c.h.b16 %v240
    %v1165 = vunpack.c.l.b16 %v241
    %v1166 = vunpack.c.h.b16 %v241
    %v1167 = vunpack.c.l.b16 %v242
    %v1168 = vunpack.c.h.b16 %v242
    %v1169 = vunpack.c.l.b16 %v243
    %v1170 = vunpack.c.h.b16 %v243
    %v1171 = vunpack.c.l.b16 %v244
    %v1172 = vunpack.c.h.b16 %v244
    %v1173 = vunpack.c.l.b16 %v245
    %v1174 = vunpack.c.h.b16 %v245
    %v1175 = vunpack.c.l.b16 %v246
    %v1176 = vunpack.c.h.b16 %v246
    %v1177 = vunpack.c.l.b16 %v247
    %v1178 = vunpack.c.h.b16 %v247
    %v1179 = vunpack.c.l.b16 %v248
    %v1180 = vunpack.c.h.b16 %v248
    %v1181 = vunpack.c.l.b16 %v249
    %v1182 = vunpack.c.h.b16 %v249
    %v1183 = vunpack.c.l.b16 %v250
    %v1184 = vunpack.c.h.b16 %v250
    %v1185 = vunpack.c.l.b16 %v251
    %v1186 = vunpack.c.h.b16 %v251
    %v1187 = vunpack.c.l.b16 %v252
    %v1188 = vunpack.c.h.b16 %v252
    %v1189 = vunpack.c.l.b16 %v253
    %v1190 = vunpack.c.h.b16 %v253
    %v1191 = vunpack.c.l.b16 %v254
    %v1192 = vunpack.c.h.b16 %v254
    %v1193 = vunpack.c.l.b16 %v255
    %v1194 = vunpack.c.h.b16 %v255
    %v1195 = vunpack.c.l.b16 %v256
    %v1196 = vunpack.c.h.b16 %v256
    %v1197 = vunpack.c.l.b16 %v257
    %v1198 = vunpack.c.h.b16 %v257
    %v1199 = vunpack.c.l.b16 %v258
    %v1200 = vunpack.c.h.b16 %v258
    %v1201 = vunpack.c.l.b16 %v259
    %v1202 = vunpack.c.h.b16 %v259
    %v1203 = vunpack.c.l.b16 %v260
    %v1204 = vunpack.c.h.b16 %v260
    %v1205 = vunpack.c.l.b16 %v261
    %v1206 = vunpack.c.h.b16 %v261
    %v1207 = vunpack.c.l.b16 %v262
    %v1208 = vunpack.c.h.b16 %v262
    %v1209 = vunpack.c.l.b16 %v263
    %v1210 = vunpack.c.h.b16 %v263
    %v1211 = vunpack.c.l.b16 %v264
    %v1212 = vunpack.c.h.b16 %v264
    %v1213 = vunpack.c.l.b16 %v265
    %v1214 = vunpack.c.h.b16 %v265
    %v1215 = vunpack.c.l.b16 %v266
    %v1216 = vunpack.c.h.b16 %v266
    %v1217 = vunpack.c.l.b16 %v267
    %v1218 = vunpack.c.h.b16 %v267
    %v1219 = vunpack.c.l.b16 %v268
    %v1220 = vunpack.c.h.b16 %v268
    %v1221 = vunpack.c.l.b16 %v269
    %v1222 = vunpack.c.h.b16 %v269
    %v1223 = vunpack.c.l.b16 %v270
    %v1224 = vunpack.c.h.b16 %v270
    %v1225 = vunpack.c.l.b16 %v271
    %v1226 = vunpack.c.h.b16 %v271
    %v1227 = vunpack.c.l.b16 %v272
    %v1228 = vunpack.c.h.b16 %v272
    %v1229 = vunpack.c.l.b16 %v273
    %v1230 = vunpack.c.h.b16 %v273
    %v1231 = vunpack.c.l.b16 %v274
    %v1232 = vunpack.c.h.b16 %v274
    %v1233 = vunpack.c.l.b16 %v275
    %v1234 = vunpack.c.h.b16 %v275
    %v1235 = vunpack.c.l.b16 %v276
    %v1236 = vunpack.c.h.b16 %v276
    %v1237 = vunpack.c.l.b16 %v277
    %v1238 = vunpack.c.h.b16 %v277
    %v1239 = vunpack.c.l.b16 %v278
    %v1240 = vunpack.c.h.b16 %v278
    %v1241 = vunpack.c.l.b16 %v279
    %v1242 = vunpack.c.h.b16 %v279
    %v1243 = vunpack.c.l.b16 %v280
    %v1244 = vunpack.c.h.b16 %v280
    %v1245 = vunpack.c.l.b16 %v281
    %v1246 = vunpack.c.h.b16 %v281
    %v1247 = vunpack.c.l.b16 %v282
    %v1248 = vunpack.c.h.b16 %v282
    %v1249 = vunpack.c.l.b16 %v283
    %v1250 = vunpack.c.h.b16 %v283
    %v1251 = vunpack.c.l.b16 %v284
    %v1252 = vunpack.c.h.b16 %v284
    %v1253 = vunpack.c.l.b16 %v285
    %v1254 = vunpack.c.h.b16 %v285
    %v1255 = vunpack.c.l.b16 %v286
    %v1256 = vunpack.c.h.b16 %v286
    %v1257 = vunpack.c.l.b16 %v287
    %v1258 = vunpack.c.h.b16 %v287
    %v1259 = vunpack.c.l.b16 %v288
    %v1260 = vunpack.c.h.b16 %v288
    %v1261 = vunpack.c.l.b16 %v289
    %v1262 = vunpack.c.h.b16 %v289
    %v1263 = vunpack.c.l.b16 %v290
    %v1264 = vunpack.c.h.b16 %v290
    %v1265 = vunpack.c.l.b16 %v291
    %v1266 = vunpack.c.h.b16 %v291
    %v1267 = vunpack.c.l.b16 %v292
    %v1268 = vunpack.c.h.b16 %v292
    %v1269 = vunpack.c.l.b16 %v293
    %v1270 = vunpack.c.h.b16 %v293
    %v1271 = vunpack.c.l.b16 %v294
    %v1272 = vunpack.c.h.b16 %v294
    %v1273 = vunpack.c.l.b16 %v295
    %v1274 = vunpack.c.h.b16 %v295
    %v1275 = vunpack.c.l.b16 %v296
    %v1276 = vunpack.c.h.b16 %v296
    %v1277 = vunpack.c.l.b16 %v297
    %v1278 = vunpack.c.h.b16 %v297
    %v1279 = vunpack.c.l.b16 %v298
    %v1280 = vunpack.c.h.b16 %v298
    %v1281 = vunpack.c.l.b16 %v299
    %v1282 = vunpack.c.h.b16 %v299
    %v1283 = vunpack.c.l.b16 %v300
    %v1284 = vunpack.c.h.b16 %v300
    %v1285 = vunpack.c.l.b16 %v301
    %v1286 = vunpack.c.h.b16 %v301
    %v1287 = vunpack.c.l.b16 %v302
    %v1288 = vunpack.c.h.b16 %v302
    %v1289 = vunpack.c.l.b16 %v303
    %v1290 = vunpack.c.h.b16 %v303
    %v1291 = vunpack.c.l.b16 %v304
    %v1292 = vunpack.c.h.b16 %v304
    %v1293 = vunpack.c.l.b16 %v305
    %v1294 = vunpack.c.h.b16 %v305
    %v1295 = vunpack.c.l.b16 %v306
    %v1296 = vunpack.c.h.b16 %v306
    %v1297 = vunpack.c.l.b16 %v307
    %v1298 = vunpack.c.h.b16 %v307
    %v1299 = vunpack.c.l.b16 %v308
    %v1300 = vunpack.c.h.b16 %v308
    %v1301 = vunpack.c.l.b16 %v309
    %v1302 = vunpack.c.h.b16 %v309
    %v1303 = vunpack.c.l.b16 %v310
    %v1304 = vunpack.c.h.b16 %v310
    %v1305 = vunpack.c.l.b16 %v311
    %v1306 = vunpack.c.h.b16 %v311
    %v1307 = vunpack.c.l.b16 %v312
    %v1308 = vunpack.c.h.b16 %v312
    %v1309 = vunpack.c.l.b16 %v313
    %v1310 = vunpack.c.h.b16 %v313
    %v1311 = vunpack.c.l.b16 %v314
    %v1312 = vunpack.c.h.b16 %v314
    %v1313 = vunpack.c.l.b16 %v315
    %v1314 = vunpack.c.h.b16 %v315
    %v1315 = vunpack.c.l.b16 %v316
    %v1316 = vunpack.c.h.b16 %v316
    %v1317 = vunpack.c.l.b16 %v317
    %v1318 = vunpack.c.h.b16 %v317
    %v1319 = vunpack.c.l.b16 %v318
    %v1320 = vunpack.c.h.b16 %v318
    %v1321 = vunpack.c.l.b16 %v319
    %v1322 = vunpack.c.h.b16 %v319
    %v1323 = vunpack.c.l.b16 %v320
    %v1324 = vunpack.c.h.b16 %v320
    %v1325 = vunpack.c.l.b16 %v321
    %v1326 = vunpack.c.h.b16 %v321
    %v1327 = vunpack.c.l.b16 %v322
    %v1328 = vunpack.c.h.b16 %v322
    %v1329 = vunpack.c.l.b16 %v323
    %v1330 = vunpack.c.h.b16 %v323
    %v1331 = vunpack.c.l.b16 %v324
    %v1332 = vunpack.c.h.b16 %v324
    %v1333 = vunpack.c.l.b16 %v325
    %v1334 = vunpack.c.h.b16 %v325
    %v1335 = vunpack.c.l.b16 %v326
    %v1336 = vunpack.c.h.b16 %v326
    %v1337 = vunpack.c.l.b16 %v327
    %v1338 = vunpack.c.h.b16 %v327
    %v1339 = vunpack.c.l.b16 %v328
    %v1340 = vunpack.c.h.b16 %v328
    %v1341 = vunpack.c.l.b16 %v329
    %v1342 = vunpack.c.h.b16 %v329
    %v1343 = vunpack.c.l.b16 %v330
    %v1344 = vunpack.c.h.b16 %v330
    %v1345 = vunpack.c.l.b16 %v331
    %v1346 = vunpack.c.h.b16 %v331
    %v1347 = vunpack.c.l.b16 %v332
    %v1348 = vunpack.c.h.b16 %v332
    %v1349 = vunpack.c.l.b16 %v333
    %v1350 = vunpack.c.h.b16 %v333
    %v1351 = vunpack.c.l.b16 %v334
    %v1352 = vunpack.c.h.b16 %v334
    %v1353 = vunpack.c.l.b16 %v335
    %v1354 = vunpack.c.h.b16 %v335
    %v1355 = vunpack.c.l.b16 %v336
    %v1356 = vunpack.c.h.b16 %v336
    %v1357 = vunpack.c.l.b16 %v337
    %v1358 = vunpack.c.h.b16 %v337
    %v1359 = vunpack.c.l.b16 %v338
    %v1360 = vunpack.c.h.b16 %v338
    %v1361 = vunpack.c.l.b16 %v339
    %v1362 = vunpack.c.h.b16 %v339
    %v1363 = vunpack.c.l.b16 %v340
    %v1364 = vunpack.c.h.b16 %v340
    %v1365 = vunpack.c.l.b16 %v341
    %v1366 = vunpack.c.h.b16 %v341
    %v1367 = vunpack.c.l.b16 %v342
    %v1368 = vunpack.c.h.b16 %v342
    %v1369 = vunpack.c.l.b16 %v343
    %v1370 = vunpack.c.h.b16 %v343
    %v1371 = vunpack.c.l.b16 %v344
    %v1372 = vunpack.c.h.b16 %v344
    %v1373 = vunpack.c.l.b16 %v345
    %v1374 = vunpack.c.h.b16 %v345
    %v1375 = vunpack.c.l.b16 %v346
    %v1376 = vunpack.c.h.b16 %v346
    %v1377 = vunpack.c.l.b16 %v347
    %v1378 = vunpack.c.h.b16 %v347
    %v1379 = vunpack.c.l.b16 %v348
    %v1380 = vunpack.c.h.b16 %v348
    %v1381 = vunpack.c.l.b16 %v349
    %v1382 = vunpack.c.h.b16 %v349
    %v1383 = vunpack.c.l.b16 %v350
    %v1384 = vunpack.c.h.b16 %v350
    %v1385 = vunpack.c.l.b16 %v351
    %v1386 = vunpack.c.h.b16 %v351
    %v1387 = vunpack.c.l.b16 %v352
    %v1388 = vunpack.c.h.b16 %v352
    %v1389 = vunpack.c.l.b16 %v353
    %v1390 = vunpack.c.h.b16 %v353
    %v1391 = vunpack.c.l.b16 %v354
    %v1392 = vunpack.c.h.b16 %v354
    %v1393 = vunpack.c.l.b16 %v355
    %v1394 = vunpack.c.h.b16 %v355
    %v1395 = vunpack.c.l.b16 %v356
    %v1396 = vunpack.c.h.b16 %v356
    %v1397 = vunpack.c.l.b16 %v357
    %v1398 = vunpack.c.h.b16 %v357
    %v1399 = vunpack.c.l.b16 %v358
    %v1400 = vunpack.c.h.b16 %v358
    %v1401 = vunpack.c.l.b16 %v359
    %v1402 = vunpack.c.h.b16 %v359
    %v1403 = vunpack.c.l.b16 %v360
    %v1404 = vunpack.c.h.b16 %v360
    %v1405 = vunpack.c.l.b16 %v361
    %v1406 = vunpack.c.h.b16 %v361
    %v1407 = vunpack.c.l.b16 %v362
    %v1408 = vunpack.c.h.b16 %v362
    %v1409 = vunpack.c.l.b16 %v363
    %v1410 = vunpack.c.h.b16 %v363
    %v1411 = vunpack.c.l.b16 %v364
    %v1412 = vunpack.c.h.b16 %v364
    %v1413 = vunpack.c.l.b16 %v365
    %v1414 = vunpack.c.h.b16 %v365
    %v1415 = vunpack.c.l.b16 %v366
    %v1416 = vunpack.c.h.b16 %v366
    %v1417 = vunpack.c.l.b16 %v367
    %v1418 = vunpack.c.h.b16 %v367
    %v1419 = vunpack.c.l.b16 %v368
    %v1420 = vunpack.c.h.b16 %v368
    %v1421 = vunpack.c.l.b16 %v369
    %v1422 = vunpack.c.h.b16 %v369
    %v1423 = vunpack.c.l.b16 %v370
    %v1424 = vunpack.c.h.b16 %v370
    %v1425 = vunpack.c.l.b16 %v371
    %v1426 = vunpack.c.h.b16 %v371
    %v1427 = vunpack.c.l.b16 %v372
    %v1428 = vunpack.c.h.b16 %v372
    %v1429 = vunpack.c.l.b16 %v373
    %v1430 = vunpack.c.h.b16 %v373
    %v1431 = vunpack.c.l.b16 %v374
    %v1432 = vunpack.c.h.b16 %v374
    %v1433 = vunpack.c.l.b16 %v375
    %v1434 = vunpack.c.h.b16 %v375
    %v1435 = vunpack.c.l.b16 %v376
    %v1436 = vunpack.c.h.b16 %v376
    %v1437 = vunpack.c.l.b16 %v377
    %v1438 = vunpack.c.h.b16 %v377
    %v1439 = vunpack.c.l.b16 %v378
    %v1440 = vunpack.c.h.b16 %v378
    %v1441 = vunpack.c.l.b16 %v379
    %v1442 = vunpack.c.h.b16 %v379
    %v1443 = vunpack.c.l.b16 %v380
    %v1444 = vunpack.c.h.b16 %v380
    %v1445 = vunpack.c.l.b16 %v381
    %v1446 = vunpack.c.h.b16 %v381
    %v1447 = vunpack.c.l.b16 %v382
    %v1448 = vunpack.c.h.b16 %v382
    %v1449 = vunpack.c.l.b16 %v383
    %v1450 = vunpack.c.h.b16 %v383
    %v1451 = vunpack.c.l.b16 %v384
    %v1452 = vunpack.c.h.b16 %v384
    %v1453 = vunpack.c.l.b16 %v385
    %v1454 = vunpack.c.h.b16 %v385
    %v1455 = vunpack.c.l.b16 %v386
    %v1456 = vunpack.c.h.b16 %v386
    %v1457 = vunpack.c.l.b16 %v387
    %v1458 = vunpack.c.h.b16 %v387
    %v1459 = vunpack.c.l.b16 %v388
    %v1460 = vunpack.c.h.b16 %v388
    %v1461 = vunpack.c.l.b16 %v389
    %v1462 = vunpack.c.h.b16 %v389
    %v1463 = vunpack.c.l.b16 %v390
    %v1464 = vunpack.c.h.b16 %v390
    %v1465 = vunpack.c.l.b16 %v391
    %v1466 = vunpack.c.h.b16 %v391
    %v1467 = vunpack.c.l.b16 %v392
    %v1468 = vunpack.c.h.b16 %v392
    %v1469 = vunpack.c.l.b16 %v393
    %v1470 = vunpack.c.h.b16 %v393
    %v1471 = vunpack.c.l.b16 %v394
    %v1472 = vunpack.c.h.b16 %v394
    %v1473 = vunpack.c.l.b16 %v395
    %v1474 = vunpack.c.h.b16 %v395
    %v1475 = vunpack.c.l.b16 %v396
    %v1476 = vunpack.c.h.b16 %v396
    %v1477 = vunpack.c.l.b16 %v397
    %v1478 = vunpack.c.h.b16 %v397
    %v1479 = vunpack.c.l.b16 %v398
    %v1480 = vunpack.c.h.b16 %v398
    %v1481 = vunpack.c.l.b16 %v399
    %v1482 = vunpack.c.h.b16 %v399
    %v1483 = vunpack.c.l.b16 %v400
    %v1484 = vunpack.c.h.b16 %v400
    %v1485 = vunpack.c.l.b16 %v401
    %v1486 = vunpack.c.h.b16 %v401
    %v1487 = vunpack.c.l.b16 %v402
    %v1488 = vunpack.c.h.b16 %v402
    %v1489 = vunpack.c.l.b16 %v403
    %v1490 = vunpack.c.h.b16 %v403
    %v1491 = vunpack.c.l.b16 %v404
    %v1492 = vunpack.c.h.b16 %v404
    %v1493 = vunpack.c.l.b16 %v405
    %v1494 = vunpack.c.h.b16 %v405
    %v1495 = vunpack.c.l.b16 %v406
    %v1496 = vunpack.c.h.b16 %v406
    %v1497 = vunpack.c.l.b16 %v407
    %v1498 = vunpack.c.h.b16 %v407
    %v1499 = vunpack.c.l.b16 %v408
    %v1500 = vunpack.c.h.b16 %v408
    %v1501 = vunpack.c.l.b16 %v409
    %v1502 = vunpack.c.h.b16 %v409
    %v1503 = vunpack.c.l.b16 %v410
    %v1504 = vunpack.c.h.b16 %v410
    %v1505 = vunpack.c.l.b16 %v411
    %v1506 = vunpack.c.h.b16 %v411
    %v1507 = vunpack.c.l.b16 %v412
    %v1508 = vunpack.c.h.b16 %v412
    %v1509 = vunpack.c.l.b16 %v413
    %v1510 = vunpack.c.h.b16 %v413
    %v1511 = vunpack.c.l.b16 %v414
    %v1512 = vunpack.c.h.b16 %v414
    %v1513 = vunpack.c.l.b16 %v415
    %v1514 = vunpack.c.h.b16 %v415
    %v1515 = vunpack.c.l.b16 %v416
    %v1516 = vunpack.c.h.b16 %v416
    %v1517 = vunpack.c.l.b16 %v417
    %v1518 = vunpack.c.h.b16 %v417
    %v1519 = vunpack.c.l.b16 %v418
    %v1520 = vunpack.c.h.b16 %v418
    %v1521 = vunpack.c.l.b16 %v419
    %v1522 = vunpack.c.h.b16 %v419
    %v1523 = vunpack.c.l.b16 %v420
    %v1524 = vunpack.c.h.b16 %v420
    %v1525 = vunpack.c.l.b16 %v421
    %v1526 = vunpack.c.h.b16 %v421
    %v1527 = vunpack.c.l.b16 %v422
    %v1528 = vunpack.c.h.b16 %v422
    %v1529 = vunpack.c.l.b16 %v423
    %v1530 = vunpack.c.h.b16 %v423
    %v1531 = vunpack.c.l.b16 %v424
    %v1532 = vunpack.c.h.b16 %v424
    %v1533 = vunpack.c.l.b16 %v425
    %v1534 = vunpack.c.h.b16 %v425
    %v1535 = vunpack.c.l.b16 %v426
    %v1536 = vunpack.c.h.b16 %v426
    %v1537 = vunpack.c.l.b16 %v427
    %v1538 = vunpack.c.h.b16 %v427
    %v1539 = vunpack.c.l.b16 %v428
    %v1540 = vunpack.c.h.b16 %v428
    %v1541 = vunpack.c.l.b16 %v429
    %v1542 = vunpack.c.h.b16 %v429
    %v1543 = vunpack.c.l.b16 %v430
    %v1544 = vunpack.c.h.b16 %v430
    %v1545 = vunpack.c.l.b16 %v431
    %v1546 = vunpack.c.h.b16 %v431
    %v1547 = vunpack.c.l.b16 %v432
    %v1548 = vunpack.c.h.b16 %v432
    %v1549 = vunpack.c.l.b16 %v433
    %v1550 = vunpack.c.h.b16 %v433
    %v1551 = vunpack.c.l.b16 %v434
    %v1552 = vunpack.c.h.b16 %v434
    %v1553 = vunpack.c.l.b16 %v435
    %v1554 = vunpack.c.h.b16 %v435
    %v1555 = vunpack.c.l.b16 %v436
    %v1556 = vunpack.c.h.b16 %v436
    %v1557 = vunpack.c.l.b16 %v437
    %v1558 = vunpack.c.h.b16 %v437
    %v1559 = vunpack.c.l.b16 %v438
    %v1560 = vunpack.c.h.b16 %v438
    %v1561 = vunpack.c.l.b16 %v439
    %v1562 = vunpack.c.h.b16 %v439
    %v1563 = vunpack.c.l.b16 %v440
    %v1564 = vunpack.c.h.b16 %v440
    %v1565 = vunpack.c.l.b16 %v441
    %v1566 = vunpack.c.h.b16 %v441
    %v1567 = vunpack.c.l.b16 %v442
    %v1568 = vunpack.c.h.b16 %v442
    %v1569 = vunpack.c.l.b16 %v443
    %v1570 = vunpack.c.h.b16 %v443
    %v1571 = vunpack.c.l.b16 %v444
    %v1572 = vunpack.c.h.b16 %v444
    %v1573 = vunpack.c.l.b16 %v445
    %v1574 = vunpack.c.h.b16 %v445
    %v1575 = vunpack.c.l.b16 %v446
    %v1576 = vunpack.c.h.b16 %v446
    %v1577 = vunpack.c.l.b16 %v447
    %v1578 = vunpack.c.h.b16 %v447
    %v1579 = vunpack.c.l.b16 %v448
    %v1580 = vunpack.c.h.b16 %v448
    %v1581 = vunpack.c.l.b16 %v449
    %v1582 = vunpack.c.h.b16 %v449
    %v1583 = vunpack.c.l.b16 %v450
    %v1584 = vunpack.c.h.b16 %v450
    %v1585 = vunpack.c.l.b16 %v451
    %v1586 = vunpack.c.h.b16 %v451
    %v1587 = vunpack.c.l.b16 %v452
    %v1588 = vunpack.c.h.b16 %v452
    %v1589 = vunpack.c.l.b16 %v453
    %v1590 = vunpack.c.h.b16 %v453
    %v1591 = vunpack.c.l.b16 %v454
    %v1592 = vunpack.c.h.b16 %v454
    %v1593 = vunpack.c.l.b16 %v455
    %v1594 = vunpack.c.h.b16 %v455
    %v1595 = vunpack.c.l.b16 %v456
    %v1596 = vunpack.c.h.b16 %v456
    %v1597 = vunpack.c.l.b16 %v457
    %v1598 = vunpack.c.h.b16 %v457
    %v1599 = vunpack.c.l.b16 %v458
    %v1600 = vunpack.c.h.b16 %v458
    %v1601 = vunpack.c.l.b16 %v459
    %v1602 = vunpack.c.h.b16 %v459
    %v1603 = vunpack.c.l.b16 %v460
    %v1604 = vunpack.c.h.b16 %v460
    %v1605 = vunpack.c.l.b16 %v461
    %v1606 = vunpack.c.h.b16 %v461
    %v1607 = vunpack.c.l.b16 %v462
    %v1608 = vunpack.c.h.b16 %v462
    %v1609 = vunpack.c.l.b16 %v463
    %v1610 = vunpack.c.h.b16 %v463
    %v1611 = vunpack.c.l.b16 %v464
    %v1612 = vunpack.c.h.b16 %v464
    %v1613 = vunpack.c.l.b16 %v465
    %v1614 = vunpack.c.h.b16 %v465
    %v1615 = vunpack.c.l.b16 %v466
    %v1616 = vunpack.c.h.b16 %v466
    %v1617 = vunpack.c.l.b16 %v467
    %v1618 = vunpack.c.h.b16 %v467
    %v1619 = vunpack.c.l.b16 %v468
    %v1620 = vunpack.c.h.b16 %v468
    %v1621 = vunpack.c.l.b16 %v469
    %v1622 = vunpack.c.h.b16 %v469
    %v1623 = vunpack.c.l.b16 %v470
    %v1624 = vunpack.c.h.b16 %v470
    %v1625 = vunpack.c.l.b16 %v471
    %v1626 = vunpack.c.h.b16 %v471
    %v1627 = vunpack.c.l.b16 %v472
    %v1628 = vunpack.c.h.b16 %v472
    %v1629 = vunpack.c.l.b16 %v473
    %v1630 = vunpack.c.h.b16 %v473
    %v1631 = vunpack.c.l.b16 %v474
    %v1632 = vunpack.c.h.b16 %v474
    %v1633 = vunpack.c.l.b16 %v475
    %v1634 = vunpack.c.h.b16 %v475
    %v1635 = vunpack.c.l.b16 %v476
    %v1636 = vunpack.c.h.b16 %v476
    %v1637 = vunpack.c.l.b16 %v477
    %v1638 = vunpack.c.h.b16 %v477
    %v1639 = vunpack.c.l.b16 %v478
    %v1640 = vunpack.c.h.b16 %v478
    %v1641 = vunpack.c.l.b16 %v479
    %v1642 = vunpack.c.h.b16 %v479
    %v1643 = vunpack.c.l.b16 %v480
    %v1644 = vunpack.c.h.b16 %v480
    %v1645 = vunpack.c.l.b16 %v481
    %v1646 = vunpack.c.h.b16 %v481
    %v1647 = vunpack.c.l.b16 %v482
    %v1648 = vunpack.c.h.b16 %v482
    %v1649 = vunpack.c.l.b16 %v483
    %v1650 = vunpack.c.h.b16 %v483
    %v1651 = vunpack.c.l.b16 %v484
    %v1652 = vunpack.c.h.b16 %v484
    %v1653 = vunpack.c.l.b16 %v485
    %v1654 = vunpack.c.h.b16 %v485
    %v1655 = vunpack.c.l.b16 %v486
    %v1656 = vunpack.c.h.b16 %v486
    %v1657 = vunpack.c.l.b16 %v487
    %v1658 = vunpack.c.h.b16 %v487
    %v1659 = vunpack.c.l.b16 %v488
    %v1660 = vunpack.c.h.b16 %v488
    %v1661 = vunpack.c.l.b16 %v489
    %v1662 = vunpack.c.h.b16 %v489
    %v1663 = vunpack.c.l.b16 %v490
    %v1664 = vunpack.c.h.b16 %v490
    %v1665 = vunpack.c.l.b16 %v491
    %v1666 = vunpack.c.h.b16 %v491
    %v1667 = vunpack.c.l.b16 %v492
    %v1668 = vunpack.c.h.b16 %v492
    %v1669 = vunpack.c.l.b16 %v493
    %v1670 = vunpack.c.h.b16 %v493
    %v1671 = vunpack.c.l.b16 %v494
    %v1672 = vunpack.c.h.b16 %v494
    %v1673 = vunpack.c.l.b16 %v495
    %v1674 = vunpack.c.h.b16 %v495
    %v1675 = vunpack.c.l.b16 %v496
    %v1676 = vunpack.c.h.b16 %v496
    %v1677 = vunpack.c.l.b16 %v497
    %v1678 = vunpack.c.h.b16 %v497
    %v1679 = vunpack.c.l.b16 %v498
    %v1680 = vunpack.c.h.b16 %v498
    %v1681 = vunpack.c.l.b16 %v499
    %v1682 = vunpack.c.h.b16 %v499
    %v1683 = vunpack.c.l.b16 %v500
    %v1684 = vunpack.c.h.b16 %v500
    %v1685 = vunpack.c.l.b16 %v501
    %v1686 = vunpack.c.h.b16 %v501
    %v1687 = vunpack.c.l.b16 %v502
    %v1688 = vunpack.c.h.b16 %v502
    %v1689 = vunpack.c.l.b16 %v503
    %v1690 = vunpack.c.h.b16 %v503
    %v1691 = vunpack.c.l.b16 %v504
    %v1692 = vunpack.c.h.b16 %v504
    %v1693 = vunpack.c.l.b16 %v505
    %v1694 = vunpack.c.h.b16 %v505
    %v1695 = vunpack.c.l.b16 %v506
    %v1696 = vunpack.c.h.b16 %v506
    %v1697 = vunpack.c.l.b16 %v507
    %v1698 = vunpack.c.h.b16 %v507
    %v1699 = vunpack.c.l.b16 %v508
    %v1700 = vunpack.c.h.b16 %v508
    %v1701 = vunpack.c.l.b16 %v509
    %v1702 = vunpack.c.h.b16 %v509
    %v1703 = vunpack.c.l.b16 %v510
    %v1704 = vunpack.c.h.b16 %v510
    %v1705 = vunpack.c.l.b16 %v511
    %v1706 = vunpack.c.h.b16 %v511
    %v1707 = vunpack.c.l.b16 %v512
    %v1708 = vunpack.c.h.b16 %v512
    %v1709 = vunpack.c.l.b16 %v513
    %v1710 = vunpack.c.h.b16 %v513
    %v1711 = vunpack.c.l.b16 %v514
    %v1712 = vunpack.c.h.b16 %v514
    %v1713 = vunpack.c.l.b16 %v515
    %v1714 = vunpack.c.h.b16 %v515
    %v1715 = vunpack.c.l.b16 %v516
    %v1716 = vunpack.c.h.b16 %v516
    %v1717 = vunpack.c.l.b16 %v517
    %v1718 = vunpack.c.h.b16 %v517
    %v1719 = vunpack.c.l.b16 %v518
    %v1720 = vunpack.c.h.b16 %v518
    %v1721 = vunpack.c.l.b16 %v519
    %v1722 = vunpack.c.h.b16 %v519
    %v1723 = vunpack.c.l.b16 %v520
    %v1724 = vunpack.c.h.b16 %v520
    %v1725 = vunpack.c.l.b16 %v521
    %v1726 = vunpack.c.h.b16 %v521
    %v1727 = vunpack.c.l.b16 %v522
    %v1728 = vunpack.c.h.b16 %v522
    %v1729 = vunpack.c.l.b16 %v523
    %v1730 = vunpack.c.h.b16 %v523
    %v1731 = vunpack.c.l.b16 %v524
    %v1732 = vunpack.c.h.b16 %v524
    %v1733 = vunpack.c.l.b16 %v525
    %v1734 = vunpack.c.h.b16 %v525
    %v1735 = vunpack.c.l.b16 %v526
    %v1736 = vunpack.c.h.b16 %v526
    %v1737 = vunpack.c.l.b16 %v527
    %v1738 = vunpack.c.h.b16 %v527
    %v1739 = vunpack.c.l.b16 %v528
    %v1740 = vunpack.c.h.b16 %v528
    %v1741 = vunpack.c.l.b16 %v529
    %v1742 = vunpack.c.h.b16 %v529
    %v1743 = vunpack.c.l.b16 %v530
    %v1744 = vunpack.c.h.b16 %v530
    %v1745 = vunpack.c.l.b16 %v531
    %v1746 = vunpack.c.h.b16 %v531
    %v1747 = vunpack.c.l.b16 %v532
    %v1748 = vunpack.c.h.b16 %v532
    %v1749 = vunpack.c.l.b16 %v533
    %v1750 = vunpack.c.h.b16 %v533
    %v1751 = vunpack.c.l.b16 %v534
    %v1752 = vunpack.c.h.b16 %v534
    %v1753 = vpack.c.b16 %v977, %v969
    %v1754 = vpack.c.b16 %v978, %v970
    %v1755 = vpack.c.b16 %v979, %v971
    %v1756 = vpack.c.b16 %v980, %v972
    %v1757 = vpack.c.b16 %v981, %v973
    %v1758 = vpack.c.b16 %v982, %v974
    %v1759 = vpack.c.b16 %v983, %v975
    %v1760 = vpack.c.b16 %v984, %v976
    %v1761 = vpack.c.b16 %v993, %v985
    %v1762 = vpack.c.b16 %v994, %v986
    %v1763 = vpack.c.b16 %v995, %v987
    %v1764 = vpack.c.b16 %v996, %v988
    %v1765 = vpack.c.b16 %v997, %v989
    %v1766 = vpack.c.b16 %v998, %v990
    %v1767 = vpack.c.b16 %v999, %v991
    %v1768 = vpack.c.b16 %v1000, %v992
    %v1769 = vpack.c.b16 %v1009, %v1001
    %v1770 = vpack.c.b16 %v1010, %v1002
    %v1771 = vpack.c.b16 %v1011, %v1003
    %v1772 = vpack.c.b16 %v1012, %v1004
    %v1773 = vpack.c.b16 %v1013, %v1005
    %v1774 = vpack.c.b16 %v1014, %v1006
    %v1775 = vpack.c.b16 %v1015, %v1007
    %v1776 = vpack.c.b16 %v1016, %v1008
    %v1777 = vpack.c.b16 %v1025, %v1017
    %v1778 = vpack.c.b16 %v1026, %v1018
    %v1779 = vpack.c.b16 %v1027, %v1019
    %v1780 = vpack.c.b16 %v1028, %v1020
    %v1781 = vpack.c.b16 %v1029, %v1021
    %v1782 = vpack.c.b16 %v1030, %v1022
    %v1783 = vpack.c.b16 %v1031, %v1023
    %v1784 = vpack.c.b16 %v1032, %v1024
    %v1785 = vpack.c.b16 %v1041, %v1033
    %v1786 = vpack.c.b16 %v1042, %v1034
    %v1787 = vpack.c.b16 %v1043, %v1035
    %v1788 = vpack.c.b16 %v1044, %v1036
    %v1789 = vpack.c.b16 %v1045, %v1037
    %v1790 = vpack.c.b16 %v1046, %v1038
    %v1791 = vpack.c.b16 %v1047, %v1039
    %v1792 = vpack.c.b16 %v1048, %v1040
    %v1793 = vpack.c.b16 %v1057, %v1049
    %v1794 = vpack.c.b16 %v1058, %v1050
    %v1795 = vpack.c.b16 %v1059, %v1051
    %v1796 = vpack.c.b16 %v1060, %v1052
    %v1797 = vpack.c.b16 %v1061, %v1053
    %v1798 = vpack.c.b16 %v1062, %v1054
    %v1799 = vpack.c.b16 %v1063, %v1055
    %v1800 = vpack.c.b16 %v1064, %v1056
    %v1801 = vpack.c.b16 %v1073, %v1065
    %v1802 = vpack.c.b16 %v1074, %v1066
    %v1803 = vpack.c.b16 %v1075, %v1067
    %v1804 = vpack.c.b16 %v1076, %v1068
    %v1805 = vpack.c.b16 %v1077, %v1069
    %v1806 = vpack.c.b16 %v1078, %v1070
    %v1807 = vpack.c.b16 %v1079, %v1071
    %v1808 = vpack.c.b16 %v1080, %v1072
    %v1809 = vpack.c.b16 %v1089, %v1081
    %v1810 = vpack.c.b16 %v1090, %v1082
    %v1811 = vpack.c.b16 %v1091, %v1083
    %v1812 = vpack.c.b16 %v1092, %v1084
    %v1813 = vpack.c.b16 %v1093, %v1085
    %v1814 = vpack.c.b16 %v1094, %v1086
    %v1815 = vpack.c.b16 %v1095, %v1087
    %v1816 = vpack.c.b16 %v1096, %v1088
    %v1817 = vpack.c.b16 %v1105, %v1097
    %v1818 = vpack.c.b16 %v1106, %v1098
    %v1819 = vpack.c.b16 %v1107, %v1099
    %v1820 = vpack.c.b16 %v1108, %v1100
    %v1821 = vpack.c.b16 %v1109, %v1101
    %v1822 = vpack.c.b16 %v1110, %v1102
    %v1823 = vpack.c.b16 %v1111, %v1103
    %v1824 = vpack.c.b16 %v1112, %v1104
    %v1825 = vpack.c.b16 %v1121, %v1113
    %v1826 = vpack.c.b16 %v1122, %v1114
    %v1827 = vpack.c.b16 %v1123, %v1115
    %v1828 = vpack.c.b16 %v1124, %v1116
    %v1829 = vpack.c.b16 %v1125, %v1117
    %v1830 = vpack.c.b16 %v1126, %v1118
    %v1831 = vpack.c.b16 %v1127, %v1119
    %v1832 = vpack.c.b16 %v1128, %v1120
    %v1833 = vpack.c.b16 %v1137, %v1129
    %v1834 = vpack.c.b16 %v1138, %v1130
    %v1835 = vpack.c.b16 %v1139, %v1131
    %v1836 = vpack.c.b16 %v1140, %v1132
    %v1837 = vpack.c.b16 %v1141, %v1133
    %v1838 = vpack.c.b16 %v1142, %v1134
    %v1839 = vpack.c.b16 %v1143, %v1135
    %v1840 = vpack.c.b16 %v1144, %v1136
    %v1841 = vpack.c.b16 %v1153, %v1145
    %v1842 = vpack.c.b16 %v1154, %v1146
    %v1843 = vpack.c.b16 %v1155, %v1147
    %v1844 = vpack.c.b16 %v1156, %v1148
    %v1845 = vpack.c.b16 %v1157, %v1149
    %v1846 = vpack.c.b16 %v1158, %v1150
    %v1847 = vpack.c.b16 %v1159, %v1151
    %v1848 = vpack.c.b16 %v1160, %v1152
    %v1849 = vpack.c.b16 %v1169, %v1161
    %v1850 = vpack.c.b16 %v1170, %v1162
    %v1851 = vpack.c.b16 %v1171, %v1163
    %v1852 = vpack.c.b16 %v1172, %v1164
    %v1853 = vpack.c.b16 %v1173, %v1165
    %v1854 = vpack.c.b16 %v1174, %v1166
    %v1855 = vpack.c.b16 %v1175, %v1167
    %v1856 = vpack.c.b16 %v1176, %v1168
    %v1857 = vpack.c.b16 %v1185, %v1177
    %v1858 = vpack.c.b16 %v1186, %v1178
    %v1859 = vpack.c.b16 %v1187, %v1179
    %v1860 = vpack.c.b16 %v1188, %v1180
    %v1861 = vpack.c.b16 %v1189, %v1181
    %v1862 = vpack.c.b16 %v1190, %v1182
    %v1863 = vpack.c.b16 %v1191, %v1183
    %v1864 = vpack.c.b16 %v1192, %v1184
    %v1865 = vpack.c.b16 %v1201, %v1193
    %v1866 = vpack.c.b16 %v1202, %v1194
    %v1867 = vpack.c.b16 %v1203, %v1195
    %v1868 = vpack.c.b16 %v1204, %v1196
    %v1869 = vpack.c.b16 %v1205, %v1197
    %v1870 = vpack.c.b16 %v1206, %v1198
    %v1871 = vpack.c.b16 %v1207, %v1199
    %v1872 = vpack.c.b16 %v1208, %v1200
    %v1873 = vpack.c.b16 %v1217, %v1209
    %v1874 = vpack.c.b16 %v1218, %v1210
    %v1875 = vpack.c.b16 %v1219, %v1211
    %v1876 = vpack.c.b16 %v1220, %v1212
    %v1877 = vpack.c.b16 %v1221, %v1213
    %v1878 = vpack.c.b16 %v1222, %v1214
    %v1879 = vpack.c.b16 %v1223, %v1215
    %v1880 = vpack.c.b16 %v1224, %v1216
    %v1881 = vpack.c.b16 %v1233, %v1225
    %v1882 = vpack.c.b16 %v1234, %v1226
    %v1883 = vpack.c.b16 %v1235, %v1227
    %v1884 = vpack.c.b16 %v1236, %v1228
    %v1885 = vpack.c.b16 %v1237, %v1229
    %v1886 = vpack.c.b16 %v1238, %v1230
    %v1887 = vpack.c.b16 %v1239, %v1231
    %v1888 = vpack.c.b16 %v1240, %v1232
    %v1889 = vpack.c.b16 %v1249, %v1241
    %v1890 = vpack.c.b16 %v1250, %v1242
    %v1891 = vpack.c.b16 %v1251, %v1243
    %v1892 = vpack.c.b16 %v1252, %v1244
    %v1893 = vpack.c.b16 %v1253, %v1245
    %v1894 = vpack.c.b16 %v1254, %v1246
    %v1895 = vpack.c.b16 %v1255, %v1247
    %v1896 = vpack.c.b16 %v1256, %v1248
    %v1897 = vpack.c.b16 %v1265, %v1257
    %v1898 = vpack.c.b16 %v1266, %v1258
    %v1899 = vpack.c.b16 %v1267, %v1259
    %v1900 = vpack.c.b16 %v1268, %v1260
    %v1901 = vpack.c.b16 %v1269, %v1261
    %v1902 = vpack.c.b16 %v1270, %v1262
    %v1903 = vpack.c.b16 %v1271, %v1263
    %v1904 = vpack.c.b16 %v1272, %v1264
    %v1905 = vpack.c.b16 %v1281, %v1273
    %v1906 = vpack.c.b16 %v1282, %v1274
    %v1907 = vpack.c.b16 %v1283, %v1275
    %v1908 = vpack.c.b16 %v1284, %v1276
    %v1909 = vpack.c.b16 %v1285, %v1277
    %v1910 = vpack.c.b16 %v1286, %v1278
    %v1911 = vpack.c.b16 %v1287, %v1279
    %v1912 = vpack.c.b16 %v1288, %v1280
    %v1913 = vpack.c.b16 %v1297, %v1289
    %v1914 = vpack.c.b16 %v1298, %v1290
    %v1915 = vpack.c.b16 %v1299, %v1291
    %v1916 = vpack.c.b16 %v1300, %v1292
    %v1917 = vpack.c.b16 %v1301, %v1293
    %v1918 = vpack.c.b16 %v1302, %v1294
    %v1919 = vpack.c.b16 %v1303, %v1295
    %v1920 = vpack.c.b16 %v1304, %v1296
    %v1921 = vpack.c.b16 %v1313, %v1305
    %v1922 = vpack.c.b16 %v1314, %v1306
    %v1923 = vpack.c.b16 %v1315, %v1307
    %v1924 = vpack.c.b16 %v1316, %v1308
    %v1925 = vpack.c.b16 %v1317, %v1309
    %v1926 = vpack.c.b16 %v1318, %v1310
    %v1927 = vpack.c.b16 %v1319, %v1311
    %v1928 = vpack.c.b16 %v1320, %v1312
    %v1929 = vpack.c.b16 %v1329, %v1321
    %v1930 = vpack.c.b16 %v1330, %v1322
    %v1931 = vpack.c.b16 %v1331, %v1323
    %v1932 = vpack.c.b16 %v1332, %v1324
    %v1933 = vpack.c.b16 %v1333, %v1325
    %v1934 = vpack.c.b16 %v1334, %v1326
    %v1935 = vpack.c.b16 %v1335, %v1327
    %v1936 = vpack.c.b16 %v1336, %v1328
    %v1937 = vpack.c.b16 %v1345, %v1337
    %v1938 = vpack.c.b16 %v1346, %v1338
    %v1939 = vpack.c.b16 %v1347, %v1339
    %v1940 = vpack.c.b16 %v1348, %v1340
    %v1941 = vpack.c.b16 %v1349, %v1341
    %v1942 = vpack.c.b16 %v1350, %v1342
    %v1943 = vpack.c.b16 %v1351, %v1343
    %v1944 = vpack.c.b16 %v1352, %v1344
    %v1945 = vpack.c.b16 %v1361, %v1353
    %v1946 = vpack.c.b16 %v1362, %v1354
    %v1947 = vpack.c.b16 %v1363, %v1355
    %v1948 = vpack.c.b16 %v1364, %v1356
    %v1949 = vpack.c.b16 %v1365, %v1357
    %v1950 = vpack.c.b16 %v1366, %v1358
    %v1951 = vpack.c.b16 %v1367, %v1359
    %v1952 = vpack.c.b16 %v1368, %v1360
    %v1953 = vpack.c.b16 %v1377, %v1369
    %v1954 = vpack.c.b16 %v1378, %v1370
    %v1955 = vpack.c.b16 %v1379, %v1371
    %v1956 = vpack.c.b16 %v1380, %v1372
    %v1957 = vpack.c.b16 %v1381, %v1373
    %v1958 = vpack.c.b16 %v1382, %v1374
    %v1959 = vpack.c.b16 %v1383, %v1375
    %v1960 = vpack.c.b16 %v1384, %v1376
    %v1961 = vpack.c.b16 %v1393, %v1385
    %v1962 = vpack.c.b16 %v1394, %v1386
    %v1963 = vpack.c.b16 %v1395, %v1387
    %v1964 = vpack.c.b16 %v1396, %v1388
    %v1965 = vpack.c.b16 %v1397, %v1389
    %v1966 = vpack.c.b16 %v1398, %v1390
    %v1967 = vpack.c.b16 %v1399, %v1391
    %v1968 = vpack.c.b16 %v1400, %v1392
    %v1969 = vpack.c.b16 %v1409, %v1401
    %v1970 = vpack.c.b16 %v1410, %v1402
    %v1971 = vpack.c.b16 %v1411, %v1403
    %v1972 = vpack.c.b16 %v1412, %v1404
    %v1973 = vpack.c.b16 %v1413, %v1405
    %v1974 = vpack.c.b16 %v1414, %v1406
    %v1975 = vpack.c.b16 %v1415, %v1407
    %v1976 = vpack.c.b16 %v1416, %v1408
    %v1977 = vpack.c.b16 %v1425, %v1417
    %v1978 = vpack.c.b16 %v1426, %v1418
    %v1979 = vpack.c.b16 %v1427, %v1419
    %v1980 = vpack.c.b16 %v1428, %v1420
    %v1981 = vpack.c.b16 %v1429, %v1421
    %v1982 = vpack.c.b16 %v1430, %v1422
    %v1983 = vpack.c.b16 %v1431, %v1423
    %v1984 = vpack.c.b16 %v1432, %v1424
    %v1985 = vpack.c.b16 %v1441, %v1433
    %v1986 = vpack.c.b16 %v1442, %v1434
    %v1987 = vpack.c.b16 %v1443, %v1435
    %v1988 = vpack.c.b16 %v1444, %v1436
    %v1989 = vpack.c.b16 %v1445, %v1437
    %v1990 = vpack.c.b16 %v1446, %v1438
    %v1991 = vpack.c.b16 %v1447, %v1439
    %v1992 = vpack.c.b16 %v1448, %v1440
    %v1993 = vpack.c.b16 %v1457, %v1449
    %v1994 = vpack.c.b16 %v1458, %v1450
    %v1995 = vpack.c.b16 %v1459, %v1451
    %v1996 = vpack.c.b16 %v1460, %v1452
    %v1997 = vpack.c.b16 %v1461, %v1453
    %v1998 = vpack.c.b16 %v1462, %v1454
    %v1999 = vpack.c.b16 %v1463, %v1455
    %v2000 = vpack.c.b16 %v1464, %v1456
    %v2001 = vpack.c.b16 %v1473, %v1465
    %v2002 = vpack.c.b16 %v1474, %v1466
    %v2003 = vpack.c.b16 %v1475, %v1467
    %v2004 = vpack.c.b16 %v1476, %v1468
    %v2005 = vpack.c.b16 %v1477, %v1469
    %v2006 = vpack.c.b16 %v1478, %v1470
    %v2007 = vpack.c.b16 %v1479, %v1471
    %v2008 = vpack.c.b16 %v1480, %v1472
    %v2009 = vpack.c.b16 %v1489, %v1481
    %v2010 = vpack.c.b16 %v1490, %v1482
    %v2011 = vpack.c.b16 %v1491, %v1483
    %v2012 = vpack.c.b16 %v1492, %v1484
    %v2013 = vpack.c.b16 %v1493, %v1485
    %v2014 = vpack.c.b16 %v1494, %v1486
    %v2015 = vpack.c.b16 %v1495, %v1487
    %v2016 = vpack.c.b16 %v1496, %v1488
    %v2017 = vpack.c.b16 %v1505, %v1497
    %v2018 = vpack.c.b16 %v1506, %v1498
    %v2019 = vpack.c.b16 %v1507, %v1499
    %v2020 = vpack.c.b16 %v1508, %v1500
    %v2021 = vpack.c.b16 %v1509, %v1501
    %v2022 = vpack.c.b16 %v1510, %v1502
    %v2023 = vpack.c.b16 %v1511, %v1503
    %v2024 = vpack.c.b16 %v1512, %v1504
    %v2025 = vpack.c.b16 %v1521, %v1513
    %v2026 = vpack.c.b16 %v1522, %v1514
    %v2027 = vpack.c.b16 %v1523, %v1515
    %v2028 = vpack.c.b16 %v1524, %v1516
    %v2029 = vpack.c.b16 %v1525, %v1517
    %v2030 = vpack.c.b16 %v1526, %v1518
    %v2031 = vpack.c.b16 %v1527, %v1519
    %v2032 = vpack.c.b16 %v1528, %v1520
    %v2033 = vpack.c.b16 %v1537, %v1529
    %v2034 = vpack.c.b16 %v1538, %v1530
    %v2035 = vpack.c.b16 %v1539, %v1531
    %v2036 = vpack.c.b16 %v1540, %v1532
    %v2037 = vpack.c.b16 %v1541, %v1533
    %v2038 = vpack.c.b16 %v1542, %v1534
    %v2039 = vpack.c.b16 %v1543, %v1535
    %v2040 = vpack.c.b16 %v1544, %v1536
    %v2041 = vpack.c.b16 %v1553, %v1545
    %v2042 = vpack.c.b16 %v1554, %v1546
    %v2043 = vpack.c.b16 %v1555, %v1547
    %v2044 = vpack.c.b16 %v1556, %v1548
    %v2045 = vpack.c.b16 %v1557, %v1549
    %v2046 = vpack.c.b16 %v1558, %v1550
    %v2047 = vpack.c.b16 %v1559, %v1551
    %v2048 = vpack.c.b16 %v1560, %v1552
    %v2049 = vpack.c.b16 %v1569, %v1561
    %v2050 = vpack.c.b16 %v1570, %v1562
    %v2051 = vpack.c.b16 %v1571, %v1563
    %v2052 = vpack.c.b16 %v1572, %v1564
    %v2053 = vpack.c.b16 %v1573, %v1565
    %v2054 = vpack.c.b16 %v1574, %v1566
    %v2055 = vpack.c.b16 %v1575, %v1567
    %v2056 = vpack.c.b16 %v1576, %v1568
    %v2057 = vpack.c.b16 %v1585, %v1577
    %v2058 = vpack.c.b16 %v1586, %v1578
    %v2059 = vpack.c.b16 %v1587, %v1579
    %v2060 = vpack.c.b16 %v1588, %v1580
    %v2061 = vpack.c.b16 %v1589, %v1581
    %v2062 = vpack.c.b16 %v1590, %v1582
    %v2063 = vpack.c.b16 %v1591, %v1583
    %v2064 = vpack.c.b16 %v1592, %v1584
    %v2065 = vpack.c.b16 %v1601, %v1593
    %v2066 = vpack.c.b16 %v1602, %v1594
    %v2067 = vpack.c.b16 %v1603, %v1595
    %v2068 = vpack.c.b16 %v1604, %v1596
    %v2069 = vpack.c.b16 %v1605, %v1597
    %v2070 = vpack.c.b16 %v1606, %v1598
    %v2071 = vpack.c.b16 %v1607, %v1599
    %v2072 = vpack.c.b16 %v1608, %v1600
    %v2073 = vpack.c.b16 %v1617, %v1609
    %v2074 = vpack.c.b16 %v1618, %v1610
    %v2075 = vpack.c.b16 %v1619, %v1611
    %v2076 = vpack.c.b16 %v1620, %v1612
    %v2077 = vpack.c.b16 %v1621, %v1613
    %v2078 = vpack.c.b16 %v1622, %v1614
    %v2079 = vpack.c.b16 %v1623, %v1615
    %v2080 = vpack.c.b16 %v1624, %v1616
    %v2081 = vpack.c.b16 %v1633, %v1625
    %v2082 = vpack.c.b16 %v1634, %v1626
    %v2083 = vpack.c.b16 %v1635, %v1627
    %v2084 = vpack.c.b16 %v1636, %v1628
    %v2085 = vpack.c.b16 %v1637, %v1629
    %v2086 = vpack.c.b16 %v1638, %v1630
    %v2087 = vpack.c.b16 %v1639, %v1631
    %v2088 = vpack.c.b16 %v1640, %v1632
    %v2089 = vpack.c.b16 %v1649, %v1641
    %v2090 = vpack.c.b16 %v1650, %v1642
    %v2091 = vpack.c.b16 %v1651, %v1643
    %v2092 = vpack.c.b16 %v1652, %v1644
    %v2093 = vpack.c.b16 %v1653, %v1645
    %v2094 = vpack.c.b16 %v1654, %v1646
    %v2095 = vpack.c.b16 %v1655, %v1647
    %v2096 = vpack.c.b16 %v1656, %v1648
    %v2097 = vpack.c.b16 %v1665, %v1657
    %v2098 = vpack.c.b16 %v1666, %v1658
    %v2099 = vpack.c.b16 %v1667, %v1659
    %v2100 = vpack.c.b16 %v1668, %v1660
    %v2101 = vpack.c.b16 %v1669, %v1661
    %v2102 = vpack.c.b16 %v1670, %v1662
    %v2103 = vpack.c.b16 %v1671, %v1663
    %v2104 = vpack.c.b16 %v1672, %v1664
    %v2105 = vpack.c.b16 %v1681, %v1673
    %v2106 = vpack.c.b16 %v1682, %v1674
    %v2107 = vpack.c.b16 %v1683, %v1675
    %v2108 = vpack.c.b16 %v1684, %v1676
    %v2109 = vpack.c.b16 %v1685, %v1677
    %v2110 = vpack.c.b16 %v1686, %v1678
    %v2111 = vpack.c.b16 %v1687, %v1679
    %v2112 = vpack.c.b16 %v1688, %v1680
    %v2113 = vpack.c.b16 %v1697, %v1689
    %v2114 = vpack.c.b16 %v1698, %v1690
    %v2115 = vpack.c.b16 %v1699, %v1691
    %v2116 = vpack.c.b16 %v1700, %v1692
    %v2117 = vpack.c.b16 %v1701, %v1693
    %v2118 = vpack.c.b16 %v1702, %v1694
    %v2119 = vpack.c.b16 %v1703, %v1695
    %v2120 = vpack.c.b16 %v1704, %v1696
    %v2121 = vpack.c.b16 %v1713, %v1705
    %v2122 = vpack.c.b16 %v1714, %v1706
    %v2123 = vpack.c.b16 %v1715, %v1707
    %v2124 = vpack.c.b16 %v1716, %v1708
    %v2125 = vpack.c.b16 %v1717, %v1709
    %v2126 = vpack.c.b16 %v1718, %v1710
    %v2127 = vpack.c.b16 %v1719, %v1711
    %v2128 = vpack.c.b16 %v1720, %v1712
    %v2129 = vpack.c.b16 %v1729, %v1721
    %v2130 = vpack.c.b16 %v1730, %v1722
    %v2131 = vpack.c.b16 %v1731, %v1723
    %v2132 = vpack.c.b16 %v1732, %v1724
    %v2133 = vpack.c.b16 %v1733, %v1725
    %v2134 = vpack.c.b16 %v1734, %v1726
    %v2135 = vpack.c.b16 %v1735, %v1727
    %v2136 = vpack.c.b16 %v1736, %v1728
    %v2137 = vpack.c.b16 %v1745, %v1737
    %v2138 = vpack.c.b16 %v1746, %v1738
    %v2139 = vpack.c.b16 %v1747, %v1739
    %v2140 = vpack.c.b16 %v1748, %v1740
    %v2141 = vpack.c.b16 %v1749, %v1741
    %v2142 = vpack.c.b16 %v1750, %v1742
    %v2143 = vpack.c.b16 %v1751, %v1743
    %v2144 = vpack.c.b16 %v1752, %v1744
    %vm2537 = vcmask 130048
    %v2539 = vsel %vm2537, %v142, 0
    %2541 = vmatprep.subr.bf16.mxu0 %v1754
    %2542 = vmatpush1.bf16.msra.mxu0 %v1753
    %2543 = vmatprep.subr.bf16.mxu0 %v1762
    %2544 = vmatpush1.bf16.msra.mxu0 %v1761
    %2545 = vmatprep.subr.bf16.mxu0 %v1770
    %2546 = vmatpush1.bf16.msra.mxu0 %v1769
    %2547 = vmatprep.subr.bf16.mxu0 %v1778
    %2548 = vmatpush1.bf16.msra.mxu0 %v1777
    %2549 = vmatprep.subr.bf16.mxu0 %v1786
    %2550 = vmatpush1.bf16.msra.mxu0 %v1785
    %2551 = vmatprep.subr.bf16.mxu0 %v1794
    %2552 = vmatpush1.bf16.msra.mxu0 %v1793
    %2553 = vmatprep.subr.bf16.mxu0 %v1802
    %2554 = vmatpush1.bf16.msra.mxu0 %v1801
    %2555 = vmatprep.subr.bf16.mxu0 %v1810
    %2556 = vmatpush1.bf16.msra.mxu0 %v1809
    %2557 = vmatprep.subr.bf16.mxu0 %v1818
    %2558 = vmatpush1.bf16.msra.mxu0 %v1817
    %2559 = vmatprep.subr.bf16.mxu0 %v1826
    %2560 = vmatpush1.bf16.msra.mxu0 %v1825
    %2561 = vmatprep.subr.bf16.mxu0 %v1834
    %2562 = vmatpush1.bf16.msra.mxu0 %v1833
    %2563 = vmatprep.subr.bf16.mxu0 %v1842
    %2564 = vmatpush1.bf16.msra.mxu0 %v1841
    %2565 = vmatprep.subr.bf16.mxu0 %v1850
    %2566 = vmatpush1.bf16.msra.mxu0 %v1849
    %2567 = vmatprep.subr.bf16.mxu0 %v1858
    %2568 = vmatpush1.bf16.msra.mxu0 %v1857
    %2569 = vmatprep.subr.bf16.mxu0 %v1866
    %2570 = vmatpush1.bf16.msra.mxu0 %v1865
    %2571 = vmatprep.subr.bf16.mxu0 %v1874
    %2572 = vmatpush1.bf16.msra.mxu0 %v1873
    %2573 = vmatprep.mubr.bf16.mxu0 %v137
    %2574 = vmatmul.mubr.bf16.gmra.mrb[0].mxu0 %v136
    %v2575 = vpop.f32.mrb[0].mxu0
    %v2576 = vadd.f32 %v540, %v2575
    %v2577 = vpop.f32.mrb[0].mxu0
    %v2578 = vadd.f32 %v544, %v2577
    %v2579 = vpop.f32.mrb[0].mxu0
    %v2580 = vadd.f32 %v540, %v2579
    %v2581 = vpop.f32.mrb[0].mxu0
    %v2582 = vadd.f32 %v544, %v2581
    %2583 = vdwg.mxu0
    %2584 = vmatprep.subr.bf16.mxu0 %v1882
    %2585 = vmatpush1.bf16.msra.mxu0 %v1881
    %2586 = vmatprep.subr.bf16.mxu0 %v1890
    %2587 = vmatpush1.bf16.msra.mxu0 %v1889
    %2588 = vmatprep.subr.bf16.mxu0 %v1898
    %2589 = vmatpush1.bf16.msra.mxu0 %v1897
    %2590 = vmatprep.subr.bf16.mxu0 %v1906
    %2591 = vmatpush1.bf16.msra.mxu0 %v1905
    %2592 = vmatprep.subr.bf16.mxu0 %v1914
    %2593 = vmatpush1.bf16.msra.mxu0 %v1913
    %2594 = vmatprep.subr.bf16.mxu0 %v1922
    %2595 = vmatpush1.bf16.msra.mxu0 %v1921
    %2596 = vmatprep.subr.bf16.mxu0 %v1930
    %2597 = vmatpush1.bf16.msra.mxu0 %v1929
    %2598 = vmatprep.subr.bf16.mxu0 %v1938
    %2599 = vmatpush1.bf16.msra.mxu0 %v1937
    %2600 = vmatprep.subr.bf16.mxu0 %v1946
    %2601 = vmatpush1.bf16.msra.mxu0 %v1945
    %2602 = vmatprep.subr.bf16.mxu0 %v1954
    %2603 = vmatpush1.bf16.msra.mxu0 %v1953
    %2604 = vmatprep.subr.bf16.mxu0 %v1962
    %2605 = vmatpush1.bf16.msra.mxu0 %v1961
    %2606 = vmatprep.subr.bf16.mxu0 %v1970
    %2607 = vmatpush1.bf16.msra.mxu0 %v1969
    %2608 = vmatprep.subr.bf16.mxu0 %v1978
    %2609 = vmatpush1.bf16.msra.mxu0 %v1977
    %2610 = vmatprep.subr.bf16.mxu0 %v1986
    %2611 = vmatpush1.bf16.msra.mxu0 %v1985
    %2612 = vmatprep.subr.bf16.mxu0 %v1994
    %2613 = vmatpush1.bf16.msra.mxu0 %v1993
    %2614 = vmatprep.subr.bf16.mxu0 %v2002
    %2615 = vmatpush1.bf16.msra.mxu0 %v2001
    %2616 = vmatprep.mubr.bf16.mxu0 %v139
    %2617 = vmatmul.mubr.bf16.gmra.mrb[0].mxu0 %v138
    %v2618 = vpop.f32.mrb[0].mxu0
    %v2619 = vadd.f32 %v2576, %v2618
    %v2620 = vpop.f32.mrb[0].mxu0
    %v2621 = vadd.f32 %v2578, %v2620
    %v2622 = vpop.f32.mrb[0].mxu0
    %v2623 = vadd.f32 %v2580, %v2622
    %v2624 = vpop.f32.mrb[0].mxu0
    %v2625 = vadd.f32 %v2582, %v2624
    %2626 = vdwg.mxu0
    %2627 = vmatprep.subr.bf16.mxu0 %v2010
    %2628 = vmatpush1.bf16.msra.mxu0 %v2009
    %2629 = vmatprep.subr.bf16.mxu0 %v2018
    %2630 = vmatpush1.bf16.msra.mxu0 %v2017
    %2631 = vmatprep.subr.bf16.mxu0 %v2026
    %2632 = vmatpush1.bf16.msra.mxu0 %v2025
    %2633 = vmatprep.subr.bf16.mxu0 %v2034
    %2634 = vmatpush1.bf16.msra.mxu0 %v2033
    %2635 = vmatprep.subr.bf16.mxu0 %v2042
    %2636 = vmatpush1.bf16.msra.mxu0 %v2041
    %2637 = vmatprep.subr.bf16.mxu0 %v2050
    %2638 = vmatpush1.bf16.msra.mxu0 %v2049
    %2639 = vmatprep.subr.bf16.mxu0 %v2058
    %2640 = vmatpush1.bf16.msra.mxu0 %v2057
    %2641 = vmatprep.subr.bf16.mxu0 %v2066
    %2642 = vmatpush1.bf16.msra.mxu0 %v2065
    %2643 = vmatprep.subr.bf16.mxu0 %v2074
    %2644 = vmatpush1.bf16.msra.mxu0 %v2073
    %2645 = vmatprep.subr.bf16.mxu0 %v2082
    %2646 = vmatpush1.bf16.msra.mxu0 %v2081
    %2647 = vmatprep.subr.bf16.mxu0 %v2090
    %2648 = vmatpush1.bf16.msra.mxu0 %v2089
    %2649 = vmatprep.subr.bf16.mxu0 %v2098
    %2650 = vmatpush1.bf16.msra.mxu0 %v2097
    %2651 = vmatprep.subr.bf16.mxu0 %v2106
    %2652 = vmatpush1.bf16.msra.mxu0 %v2105
    %2653 = vmatprep.subr.bf16.mxu0 %v2114
    %2654 = vmatpush1.bf16.msra.mxu0 %v2113
    %2655 = vmatprep.subr.bf16.mxu0 %v2122
    %2656 = vmatpush1.bf16.msra.mxu0 %v2121
    %2657 = vmatprep.subr.bf16.mxu0 %v2130
    %2658 = vmatpush1.bf16.msra.mxu0 %v2129
    %2659 = vmatprep.mubr.bf16.mxu0 %v141
    %2660 = vmatmul.mubr.bf16.gmra.mrb[0].mxu0 %v140
    %v2661 = vpop.f32.mrb[0].mxu0
    %v2662 = vadd.f32 %v2619, %v2661
    %v2663 = vpop.f32.mrb[0].mxu0
    %v2664 = vadd.f32 %v2621, %v2663
    %v2665 = vpop.f32.mrb[0].mxu0
    %v2666 = vadd.f32 %v2623, %v2665
    %v2667 = vpop.f32.mrb[0].mxu0
    %v2668 = vadd.f32 %v2625, %v2667
    %2669 = vdwg.mxu0
    %2670 = vmatprep.subr.bf16.mxu0 %v2138
    %2671 = vmatpush1.bf16.msra.mxu0 %v2137
    %2672 = vmatprep.subr.bf16.mxu0 0
    %2673 = vmatpush1.bf16.msra.mxu0 0
    %2674 = vmatprep.subr.bf16.mxu0 0
    %2675 = vmatpush1.bf16.msra.mxu0 0
    %2676 = vmatprep.subr.bf16.mxu0 0
    %2677 = vmatpush1.bf16.msra.mxu0 0
    %2678 = vmatprep.subr.bf16.mxu0 0
    %2679 = vmatpush1.bf16.msra.mxu0 0
    %2680 = vmatprep.subr.bf16.mxu0 0
    %2681 = vmatpush1.bf16.msra.mxu0 0
    %2682 = vmatprep.subr.bf16.mxu0 0
    %2683 = vmatpush1.bf16.msra.mxu0 0
    %2684 = vmatprep.subr.bf16.mxu0 0
    %2685 = vmatpush1.bf16.msra.mxu0 0
    %2686 = vmatprep.subr.bf16.mxu0 0
    %2687 = vmatpush1.bf16.msra.mxu0 0
    %2688 = vmatprep.subr.bf16.mxu0 0
    %2689 = vmatpush1.bf16.msra.mxu0 0
    %2690 = vmatprep.subr.bf16.mxu0 0
    %2691 = vmatpush1.bf16.msra.mxu0 0
    %2692 = vmatprep.subr.bf16.mxu0 0
    %2693 = vmatpush1.bf16.msra.mxu0 0
    %2694 = vmatprep.subr.bf16.mxu0 0
    %2695 = vmatpush1.bf16.msra.mxu0 0
    %2696 = vmatprep.subr.bf16.mxu0 0
    %2697 = vmatpush1.bf16.msra.mxu0 0
    %2698 = vmatprep.subr.bf16.mxu0 0
    %2699 = vmatpush1.bf16.msra.mxu0 0
    %2700 = vmatprep.subr.bf16.mxu0 0
    %2701 = vmatpush1.bf16.msra.mxu0 0
    %2702 = vmatprep.mubr.bf16.mxu0 0
    %2703 = vmatmul.mubr.bf16.gmra.mrb[0].mxu0 %v2539
    %v2704 = vpop.f32.mrb[0].mxu0
    %v2705 = vadd.f32 %v2662, %v2704
    %v2706 = vpop.f32.mrb[0].mxu0
    %v2707 = vadd.f32 %v2664, %v2706
    %v2708 = vpop.f32.mrb[0].mxu0
    %v2709 = vadd.f32 %v2666, %v2708
    %v2710 = vpop.f32.mrb[0].mxu0
    %v2711 = vadd.f32 %v2668, %v2710
    %2712 = vdwg.mxu0
    %2713 = vmatprep.subr.bf16.mxu0 %v1756
    %2714 = vmatpush1.bf16.msra.mxu0 %v1755
    %2715 = vmatprep.subr.bf16.mxu0 %v1764
    %2716 = vmatpush1.bf16.msra.mxu0 %v1763
    %2717 = vmatprep.subr.bf16.mxu0 %v1772
    %2718 = vmatpush1.bf16.msra.mxu0 %v1771
    %2719 = vmatprep.subr.bf16.mxu0 %v1780
    %2720 = vmatpush1.bf16.msra.mxu0 %v1779
    %2721 = vmatprep.subr.bf16.mxu0 %v1788
    %2722 = vmatpush1.bf16.msra.mxu0 %v1787
    %2723 = vmatprep.subr.bf16.mxu0 %v1796
    %2724 = vmatpush1.bf16.msra.mxu0 %v1795
    %2725 = vmatprep.subr.bf16.mxu0 %v1804
    %2726 = vmatpush1.bf16.msra.mxu0 %v1803
    %2727 = vmatprep.subr.bf16.mxu0 %v1812
    %2728 = vmatpush1.bf16.msra.mxu0 %v1811
    %2729 = vmatprep.subr.bf16.mxu0 %v1820
    %2730 = vmatpush1.bf16.msra.mxu0 %v1819
    %2731 = vmatprep.subr.bf16.mxu0 %v1828
    %2732 = vmatpush1.bf16.msra.mxu0 %v1827
    %2733 = vmatprep.subr.bf16.mxu0 %v1836
    %2734 = vmatpush1.bf16.msra.mxu0 %v1835
    %2735 = vmatprep.subr.bf16.mxu0 %v1844
    %2736 = vmatpush1.bf16.msra.mxu0 %v1843
    %2737 = vmatprep.subr.bf16.mxu0 %v1852
    %2738 = vmatpush1.bf16.msra.mxu0 %v1851
    %2739 = vmatprep.subr.bf16.mxu0 %v1860
    %2740 = vmatpush1.bf16.msra.mxu0 %v1859
    %2741 = vmatprep.subr.bf16.mxu0 %v1868
    %2742 = vmatpush1.bf16.msra.mxu0 %v1867
    %2743 = vmatprep.subr.bf16.mxu0 %v1876
    %2744 = vmatpush1.bf16.msra.mxu0 %v1875
    %2745 = vmatprep.mubr.bf16.mxu0 %v137
    %2746 = vmatmul.mubr.bf16.gmra.mrb[0].mxu0 %v136
    %v2747 = vpop.f32.mrb[0].mxu0
    %v2748 = vadd.f32 %v548, %v2747
    %v2749 = vpop.f32.mrb[0].mxu0
    %v2750 = vadd.f32 %v552, %v2749
    %v2751 = vpop.f32.mrb[0].mxu0
    %v2752 = vadd.f32 %v548, %v2751
    %v2753 = vpop.f32.mrb[0].mxu0
    %v2754 = vadd.f32 %v552, %v2753
    %2755 = vdwg.mxu0
    %2756 = vmatprep.subr.bf16.mxu0 %v1884
    %2757 = vmatpush1.bf16.msra.mxu0 %v1883
    %2758 = vmatprep.subr.bf16.mxu0 %v1892
    %2759 = vmatpush1.bf16.msra.mxu0 %v1891
    %2760 = vmatprep.subr.bf16.mxu0 %v1900
    %2761 = vmatpush1.bf16.msra.mxu0 %v1899
    %2762 = vmatprep.subr.bf16.mxu0 %v1908
    %2763 = vmatpush1.bf16.msra.mxu0 %v1907
    %2764 = vmatprep.subr.bf16.mxu0 %v1916
    %2765 = vmatpush1.bf16.msra.mxu0 %v1915
    %2766 = vmatprep.subr.bf16.mxu0 %v1924
    %2767 = vmatpush1.bf16.msra.mxu0 %v1923
    %2768 = vmatprep.subr.bf16.mxu0 %v1932
    %2769 = vmatpush1.bf16.msra.mxu0 %v1931
    %2770 = vmatprep.subr.bf16.mxu0 %v1940
    %2771 = vmatpush1.bf16.msra.mxu0 %v1939
    %2772 = vmatprep.subr.bf16.mxu0 %v1948
    %2773 = vmatpush1.bf16.msra.mxu0 %v1947
    %2774 = vmatprep.subr.bf16.mxu0 %v1956
    %2775 = vmatpush1.bf16.msra.mxu0 %v1955
    %2776 = vmatprep.subr.bf16.mxu0 %v1964
    %2777 = vmatpush1.bf16.msra.mxu0 %v1963
    %2778 = vmatprep.subr.bf16.mxu0 %v1972
    %2779 = vmatpush1.bf16.msra.mxu0 %v1971
    %2780 = vmatprep.subr.bf16.mxu0 %v1980
    %2781 = vmatpush1.bf16.msra.mxu0 %v1979
    %2782 = vmatprep.subr.bf16.mxu0 %v1988
    %2783 = vmatpush1.bf16.msra.mxu0 %v1987
    %2784 = vmatprep.subr.bf16.mxu0 %v1996
    %2785 = vmatpush1.bf16.msra.mxu0 %v1995
    %2786 = vmatprep.subr.bf16.mxu0 %v2004
    %2787 = vmatpush1.bf16.msra.mxu0 %v2003
    %2788 = vmatprep.mubr.bf16.mxu0 %v139
    %2789 = vmatmul.mubr.bf16.gmra.mrb[0].mxu0 %v138
    %v2790 = vpop.f32.mrb[0].mxu0
    %v2791 = vadd.f32 %v2748, %v2790
    %v2792 = vpop.f32.mrb[0].mxu0
    %v2793 = vadd.f32 %v2750, %v2792
    %v2794 = vpop.f32.mrb[0].mxu0
    %v2795 = vadd.f32 %v2752, %v2794
    %v2796 = vpop.f32.mrb[0].mxu0
    %v2797 = vadd.f32 %v2754, %v2796
    %2798 = vdwg.mxu0
    %2799 = vmatprep.subr.bf16.mxu0 %v2012
    %2800 = vmatpush1.bf16.msra.mxu0 %v2011
    %2801 = vmatprep.subr.bf16.mxu0 %v2020
    %2802 = vmatpush1.bf16.msra.mxu0 %v2019
    %2803 = vmatprep.subr.bf16.mxu0 %v2028
    %2804 = vmatpush1.bf16.msra.mxu0 %v2027
    %2805 = vmatprep.subr.bf16.mxu0 %v2036
    %2806 = vmatpush1.bf16.msra.mxu0 %v2035
    %2807 = vmatprep.subr.bf16.mxu0 %v2044
    %2808 = vmatpush1.bf16.msra.mxu0 %v2043
    %2809 = vmatprep.subr.bf16.mxu0 %v2052
    %2810 = vmatpush1.bf16.msra.mxu0 %v2051
    %2811 = vmatprep.subr.bf16.mxu0 %v2060
    %2812 = vmatpush1.bf16.msra.mxu0 %v2059
    %2813 = vmatprep.subr.bf16.mxu0 %v2068
    %2814 = vmatpush1.bf16.msra.mxu0 %v2067
    %2815 = vmatprep.subr.bf16.mxu0 %v2076
    %2816 = vmatpush1.bf16.msra.mxu0 %v2075
    %2817 = vmatprep.subr.bf16.mxu0 %v2084
    %2818 = vmatpush1.bf16.msra.mxu0 %v2083
    %2819 = vmatprep.subr.bf16.mxu0 %v2092
    %2820 = vmatpush1.bf16.msra.mxu0 %v2091
    %2821 = vmatprep.subr.bf16.mxu0 %v2100
    %2822 = vmatpush1.bf16.msra.mxu0 %v2099
    %2823 = vmatprep.subr.bf16.mxu0 %v2108
    %2824 = vmatpush1.bf16.msra.mxu0 %v2107
    %2825 = vmatprep.subr.bf16.mxu0 %v2116
    %2826 = vmatpush1.bf16.msra.mxu0 %v2115
    %2827 = vmatprep.subr.bf16.mxu0 %v2124
    %2828 = vmatpush1.bf16.msra.mxu0 %v2123
    %2829 = vmatprep.subr.bf16.mxu0 %v2132
    %2830 = vmatpush1.bf16.msra.mxu0 %v2131
    %2831 = vmatprep.mubr.bf16.mxu0 %v141
    %2832 = vmatmul.mubr.bf16.gmra.mrb[0].mxu0 %v140
    %v2833 = vpop.f32.mrb[0].mxu0
    %v2834 = vadd.f32 %v2791, %v2833
    %v2835 = vpop.f32.mrb[0].mxu0
    %v2836 = vadd.f32 %v2793, %v2835
    %v2837 = vpop.f32.mrb[0].mxu0
    %v2838 = vadd.f32 %v2795, %v2837
    %v2839 = vpop.f32.mrb[0].mxu0
    %v2840 = vadd.f32 %v2797, %v2839
    %2841 = vdwg.mxu0
    %2842 = vmatprep.subr.bf16.mxu0 %v2140
    %2843 = vmatpush1.bf16.msra.mxu0 %v2139
    %2844 = vmatprep.subr.bf16.mxu0 0
    %2845 = vmatpush1.bf16.msra.mxu0 0
    %2846 = vmatprep.subr.bf16.mxu0 0
    %2847 = vmatpush1.bf16.msra.mxu0 0
    %2848 = vmatprep.subr.bf16.mxu0 0
    %2849 = vmatpush1.bf16.msra.mxu0 0
    %2850 = vmatprep.subr.bf16.mxu0 0
    %2851 = vmatpush1.bf16.msra.mxu0 0
    %2852 = vmatprep.subr.bf16.mxu0 0
    %2853 = vmatpush1.bf16.msra.mxu0 0
    %2854 = vmatprep.subr.bf16.mxu0 0
    %2855 = vmatpush1.bf16.msra.mxu0 0
    %2856 = vmatprep.subr.bf16.mxu0 0
    %2857 = vmatpush1.bf16.msra.mxu0 0
    %2858 = vmatprep.subr.bf16.mxu0 0
    %2859 = vmatpush1.bf16.msra.mxu0 0
    %2860 = vmatprep.subr.bf16.mxu0 0
    %2861 = vmatpush1.bf16.msra.mxu0 0
    %2862 = vmatprep.subr.bf16.mxu0 0
    %2863 = vmatpush1.bf16.msra.mxu0 0
    %2864 = vmatprep.subr.bf16.mxu0 0
    %2865 = vmatpush1.bf16.msra.mxu0 0
    %2866 = vmatprep.subr.bf16.mxu0 0
    %2867 = vmatpush1.bf16.msra.mxu0 0
    %2868 = vmatprep.subr.bf16.mxu0 0
    %2869 = vmatpush1.bf16.msra.mxu0 0
    %2870 = vmatprep.subr.bf16.mxu0 0
    %2871 = vmatpush1.bf16.msra.mxu0 0
    %2872 = vmatprep.subr.bf16.mxu0 0
    %2873 = vmatpush1.bf16.msra.mxu0 0
    %2874 = vmatprep.mubr.bf16.mxu0 0
    %2875 = vmatmul.mubr.bf16.gmra.mrb[0].mxu0 %v2539
    %v2876 = vpop.f32.mrb[0].mxu0
    %v2877 = vadd.f32 %v2834, %v2876
    %v2878 = vpop.f32.mrb[0].mxu0
    %v2879 = vadd.f32 %v2836, %v2878
    %v2880 = vpop.f32.mrb[0].mxu0
    %v2881 = vadd.f32 %v2838, %v2880
    %v2882 = vpop.f32.mrb[0].mxu0
    %v2883 = vadd.f32 %v2840, %v2882
    %2884 = vdwg.mxu0
    %2885 = vmatprep.subr.bf16.mxu0 %v1758
    %2886 = vmatpush1.bf16.msra.mxu0 %v1757
    %2887 = vmatprep.subr.bf16.mxu0 %v1766
    %2888 = vmatpush1.bf16.msra.mxu0 %v1765
    %2889 = vmatprep.subr.bf16.mxu0 %v1774
    %2890 = vmatpush1.bf16.msra.mxu0 %v1773
    %2891 = vmatprep.subr.bf16.mxu0 %v1782
    %2892 = vmatpush1.bf16.msra.mxu0 %v1781
    %2893 = vmatprep.subr.bf16.mxu0 %v1790
    %2894 = vmatpush1.bf16.msra.mxu0 %v1789
    %2895 = vmatprep.subr.bf16.mxu0 %v1798
    %2896 = vmatpush1.bf16.msra.mxu0 %v1797
    %2897 = vmatprep.subr.bf16.mxu0 %v1806
    %2898 = vmatpush1.bf16.msra.mxu0 %v1805
    %2899 = vmatprep.subr.bf16.mxu0 %v1814
    %2900 = vmatpush1.bf16.msra.mxu0 %v1813
    %2901 = vmatprep.subr.bf16.mxu0 %v1822
    %2902 = vmatpush1.bf16.msra.mxu0 %v1821
    %2903 = vmatprep.subr.bf16.mxu0 %v1830
    %2904 = vmatpush1.bf16.msra.mxu0 %v1829
    %2905 = vmatprep.subr.bf16.mxu0 %v1838
    %2906 = vmatpush1.bf16.msra.mxu0 %v1837
    %2907 = vmatprep.subr.bf16.mxu0 %v1846
    %2908 = vmatpush1.bf16.msra.mxu0 %v1845
    %2909 = vmatprep.subr.bf16.mxu0 %v1854
    %2910 = vmatpush1.bf16.msra.mxu0 %v1853
    %2911 = vmatprep.subr.bf16.mxu0 %v1862
    %2912 = vmatpush1.bf16.msra.mxu0 %v1861
    %2913 = vmatprep.subr.bf16.mxu0 %v1870
    %2914 = vmatpush1.bf16.msra.mxu0 %v1869
    %2915 = vmatprep.subr.bf16.mxu0 %v1878
    %2916 = vmatpush1.bf16.msra.mxu0 %v1877
    %2917 = vmatprep.mubr.bf16.mxu0 %v137
    %2918 = vmatmul.mubr.bf16.gmra.mrb[0].mxu0 %v136
    %v2919 = vpop.f32.mrb[0].mxu0
    %v2920 = vadd.f32 %v556, %v2919
    %v2921 = vpop.f32.mrb[0].mxu0
    %v2922 = vadd.f32 %v560, %v2921
    %v2923 = vpop.f32.mrb[0].mxu0
    %v2924 = vadd.f32 %v556, %v2923
    %v2925 = vpop.f32.mrb[0].mxu0
    %v2926 = vadd.f32 %v560, %v2925
    %2927 = vdwg.mxu0
    %2928 = vmatprep.subr.bf16.mxu0 %v1886
    %2929 = vmatpush1.bf16.msra.mxu0 %v1885
    %2930 = vmatprep.subr.bf16.mxu0 %v1894
    %2931 = vmatpush1.bf16.msra.mxu0 %v1893
    %2932 = vmatprep.subr.bf16.mxu0 %v1902
    %2933 = vmatpush1.bf16.msra.mxu0 %v1901
    %2934 = vmatprep.subr.bf16.mxu0 %v1910
    %2935 = vmatpush1.bf16.msra.mxu0 %v1909
    %2936 = vmatprep.subr.bf16.mxu0 %v1918
    %2937 = vmatpush1.bf16.msra.mxu0 %v1917
    %2938 = vmatprep.subr.bf16.mxu0 %v1926
    %2939 = vmatpush1.bf16.msra.mxu0 %v1925
    %2940 = vmatprep.subr.bf16.mxu0 %v1934
    %2941 = vmatpush1.bf16.msra.mxu0 %v1933
    %2942 = vmatprep.subr.bf16.mxu0 %v1942
    %2943 = vmatpush1.bf16.msra.mxu0 %v1941
    %2944 = vmatprep.subr.bf16.mxu0 %v1950
    %2945 = vmatpush1.bf16.msra.mxu0 %v1949
    %2946 = vmatprep.subr.bf16.mxu0 %v1958
    %2947 = vmatpush1.bf16.msra.mxu0 %v1957
    %2948 = vmatprep.subr.bf16.mxu0 %v1966
    %2949 = vmatpush1.bf16.msra.mxu0 %v1965
    %2950 = vmatprep.subr.bf16.mxu0 %v1974
    %2951 = vmatpush1.bf16.msra.mxu0 %v1973
    %2952 = vmatprep.subr.bf16.mxu0 %v1982
    %2953 = vmatpush1.bf16.msra.mxu0 %v1981
    %2954 = vmatprep.subr.bf16.mxu0 %v1990
    %2955 = vmatpush1.bf16.msra.mxu0 %v1989
    %2956 = vmatprep.subr.bf16.mxu0 %v1998
    %2957 = vmatpush1.bf16.msra.mxu0 %v1997
    %2958 = vmatprep.subr.bf16.mxu0 %v2006
    %2959 = vmatpush1.bf16.msra.mxu0 %v2005
    %2960 = vmatprep.mubr.bf16.mxu0 %v139
    %2961 = vmatmul.mubr.bf16.gmra.mrb[0].mxu0 %v138
    %v2962 = vpop.f32.mrb[0].mxu0
    %v2963 = vadd.f32 %v2920, %v2962
    %v2964 = vpop.f32.mrb[0].mxu0
    %v2965 = vadd.f32 %v2922, %v2964
    %v2966 = vpop.f32.mrb[0].mxu0
    %v2967 = vadd.f32 %v2924, %v2966
    %v2968 = vpop.f32.mrb[0].mxu0
    %v2969 = vadd.f32 %v2926, %v2968
    %2970 = vdwg.mxu0
    %2971 = vmatprep.subr.bf16.mxu0 %v2014
    %2972 = vmatpush1.bf16.msra.mxu0 %v2013
    %2973 = vmatprep.subr.bf16.mxu0 %v2022
    %2974 = vmatpush1.bf16.msra.mxu0 %v2021
    %2975 = vmatprep.subr.bf16.mxu0 %v2030
    %2976 = vmatpush1.bf16.msra.mxu0 %v2029
    %2977 = vmatprep.subr.bf16.mxu0 %v2038
    %2978 = vmatpush1.bf16.msra.mxu0 %v2037
    %2979 = vmatprep.subr.bf16.mxu0 %v2046
    %2980 = vmatpush1.bf16.msra.mxu0 %v2045
    %2981 = vmatprep.subr.bf16.mxu0 %v2054
    %2982 = vmatpush1.bf16.msra.mxu0 %v2053
    %2983 = vmatprep.subr.bf16.mxu0 %v2062
    %2984 = vmatpush1.bf16.msra.mxu0 %v2061
    %2985 = vmatprep.subr.bf16.mxu0 %v2070
    %2986 = vmatpush1.bf16.msra.mxu0 %v2069
    %2987 = vmatprep.subr.bf16.mxu0 %v2078
    %2988 = vmatpush1.bf16.msra.mxu0 %v2077
    %2989 = vmatprep.subr.bf16.mxu0 %v2086
    %2990 = vmatpush1.bf16.msra.mxu0 %v2085
    %2991 = vmatprep.subr.bf16.mxu0 %v2094
    %2992 = vmatpush1.bf16.msra.mxu0 %v2093
    %2993 = vmatprep.subr.bf16.mxu0 %v2102
    %2994 = vmatpush1.bf16.msra.mxu0 %v2101
    %2995 = vmatprep.subr.bf16.mxu0 %v2110
    %2996 = vmatpush1.bf16.msra.mxu0 %v2109
    %2997 = vmatprep.subr.bf16.mxu0 %v2118
    %2998 = vmatpush1.bf16.msra.mxu0 %v2117
    %2999 = vmatprep.subr.bf16.mxu0 %v2126
    %3000 = vmatpush1.bf16.msra.mxu0 %v2125
    %3001 = vmatprep.subr.bf16.mxu0 %v2134
    %3002 = vmatpush1.bf16.msra.mxu0 %v2133
    %3003 = vmatprep.mubr.bf16.mxu0 %v141
    %3004 = vmatmul.mubr.bf16.gmra.mrb[0].mxu0 %v140
    %v3005 = vpop.f32.mrb[0].mxu0
    %v3006 = vadd.f32 %v2963, %v3005
    %v3007 = vpop.f32.mrb[0].mxu0
    %v3008 = vadd.f32 %v2965, %v3007
    %v3009 = vpop.f32.mrb[0].mxu0
    %v3010 = vadd.f32 %v2967, %v3009
    %v3011 = vpop.f32.mrb[0].mxu0
    %v3012 = vadd.f32 %v2969, %v3011
    %3013 = vdwg.mxu0
    %3014 = vmatprep.subr.bf16.mxu0 %v2142
    %3015 = vmatpush1.bf16.msra.mxu0 %v2141
    %3016 = vmatprep.subr.bf16.mxu0 0
    %3017 = vmatpush1.bf16.msra.mxu0 0
    %3018 = vmatprep.subr.bf16.mxu0 0
    %3019 = vmatpush1.bf16.msra.mxu0 0
    %3020 = vmatprep.subr.bf16.mxu0 0
    %3021 = vmatpush1.bf16.msra.mxu0 0
    %3022 = vmatprep.subr.bf16.mxu0 0
    %3023 = vmatpush1.bf16.msra.mxu0 0
    %3024 = vmatprep.subr.bf16.mxu0 0
    %3025 = vmatpush1.bf16.msra.mxu0 0
    %3026 = vmatprep.subr.bf16.mxu0 0
    %3027 = vmatpush1.bf16.msra.mxu0 0
    %3028 = vmatprep.subr.bf16.mxu0 0
    %3029 = vmatpush1.bf16.msra.mxu0 0
    %3030 = vmatprep.subr.bf16.mxu0 0
    %3031 = vmatpush1.bf16.msra.mxu0 0
    %3032 = vmatprep.subr.bf16.mxu0 0
    %3033 = vmatpush1.bf16.msra.mxu0 0
    %3034 = vmatprep.subr.bf16.mxu0 0
    %3035 = vmatpush1.bf16.msra.mxu0 0
    %3036 = vmatprep.subr.bf16.mxu0 0
    %3037 = vmatpush1.bf16.msra.mxu0 0
    %3038 = vmatprep.subr.bf16.mxu0 0
    %3039 = vmatpush1.bf16.msra.mxu0 0
    %3040 = vmatprep.subr.bf16.mxu0 0
    %3041 = vmatpush1.bf16.msra.mxu0 0
    %3042 = vmatprep.subr.bf16.mxu0 0
    %3043 = vmatpush1.bf16.msra.mxu0 0
    %3044 = vmatprep.subr.bf16.mxu0 0
    %3045 = vmatpush1.bf16.msra.mxu0 0
    %3046 = vmatprep.mubr.bf16.mxu0 0
    %3047 = vmatmul.mubr.bf16.gmra.mrb[0].mxu0 %v2539
    %v3048 = vpop.f32.mrb[0].mxu0
    %v3049 = vadd.f32 %v3006, %v3048
    %v3050 = vpop.f32.mrb[0].mxu0
    %v3051 = vadd.f32 %v3008, %v3050
    %v3052 = vpop.f32.mrb[0].mxu0
    %v3053 = vadd.f32 %v3010, %v3052
    %v3054 = vpop.f32.mrb[0].mxu0
    %v3055 = vadd.f32 %v3012, %v3054
    %3056 = vdwg.mxu0
    %3057 = vmatprep.subr.bf16.mxu0 %v1760
    %3058 = vmatpush1.bf16.msra.mxu0 %v1759
    %3059 = vmatprep.subr.bf16.mxu0 %v1768
    %3060 = vmatpush1.bf16.msra.mxu0 %v1767
    %3061 = vmatprep.subr.bf16.mxu0 %v1776
    %3062 = vmatpush1.bf16.msra.mxu0 %v1775
    %3063 = vmatprep.subr.bf16.mxu0 %v1784
    %3064 = vmatpush1.bf16.msra.mxu0 %v1783
    %3065 = vmatprep.subr.bf16.mxu0 %v1792
    %3066 = vmatpush1.bf16.msra.mxu0 %v1791
    %3067 = vmatprep.subr.bf16.mxu0 %v1800
    %3068 = vmatpush1.bf16.msra.mxu0 %v1799
    %3069 = vmatprep.subr.bf16.mxu0 %v1808
    %3070 = vmatpush1.bf16.msra.mxu0 %v1807
    %3071 = vmatprep.subr.bf16.mxu0 %v1816
    %3072 = vmatpush1.bf16.msra.mxu0 %v1815
    %3073 = vmatprep.subr.bf16.mxu0 %v1824
    %3074 = vmatpush1.bf16.msra.mxu0 %v1823
    %3075 = vmatprep.subr.bf16.mxu0 %v1832
    %3076 = vmatpush1.bf16.msra.mxu0 %v1831
    %3077 = vmatprep.subr.bf16.mxu0 %v1840
    %3078 = vmatpush1.bf16.msra.mxu0 %v1839
    %3079 = vmatprep.subr.bf16.mxu0 %v1848
    %3080 = vmatpush1.bf16.msra.mxu0 %v1847
    %3081 = vmatprep.subr.bf16.mxu0 %v1856
    %3082 = vmatpush1.bf16.msra.mxu0 %v1855
    %3083 = vmatprep.subr.bf16.mxu0 %v1864
    %3084 = vmatpush1.bf16.msra.mxu0 %v1863
    %3085 = vmatprep.subr.bf16.mxu0 %v1872
    %3086 = vmatpush1.bf16.msra.mxu0 %v1871
    %3087 = vmatprep.subr.bf16.mxu0 %v1880
    %3088 = vmatpush1.bf16.msra.mxu0 %v1879
    %3089 = vmatprep.mubr.bf16.mxu0 %v137
    %3090 = vmatmul.mubr.bf16.gmra.mrb[0].mxu0 %v136
    %v3091 = vpop.f32.mrb[0].mxu0
    %v3092 = vadd.f32 %v564, %v3091
    %v3093 = vpop.f32.mrb[0].mxu0
    %v3094 = vadd.f32 %v568, %v3093
    %v3095 = vpop.f32.mrb[0].mxu0
    %v3096 = vadd.f32 %v564, %v3095
    %v3097 = vpop.f32.mrb[0].mxu0
    %v3098 = vadd.f32 %v568, %v3097
    %3099 = vdwg.mxu0
    %3100 = vmatprep.subr.bf16.mxu0 %v1888
    %3101 = vmatpush1.bf16.msra.mxu0 %v1887
    %3102 = vmatprep.subr.bf16.mxu0 %v1896
    %3103 = vmatpush1.bf16.msra.mxu0 %v1895
    %3104 = vmatprep.subr.bf16.mxu0 %v1904
    %3105 = vmatpush1.bf16.msra.mxu0 %v1903
    %3106 = vmatprep.subr.bf16.mxu0 %v1912
    %3107 = vmatpush1.bf16.msra.mxu0 %v1911
    %3108 = vmatprep.subr.bf16.mxu0 %v1920
    %3109 = vmatpush1.bf16.msra.mxu0 %v1919
    %3110 = vmatprep.subr.bf16.mxu0 %v1928
    %3111 = vmatpush1.bf16.msra.mxu0 %v1927
    %3112 = vmatprep.subr.bf16.mxu0 %v1936
    %3113 = vmatpush1.bf16.msra.mxu0 %v1935
    %3114 = vmatprep.subr.bf16.mxu0 %v1944
    %3115 = vmatpush1.bf16.msra.mxu0 %v1943
    %3116 = vmatprep.subr.bf16.mxu0 %v1952
    %3117 = vmatpush1.bf16.msra.mxu0 %v1951
    %3118 = vmatprep.subr.bf16.mxu0 %v1960
    %3119 = vmatpush1.bf16.msra.mxu0 %v1959
    %3120 = vmatprep.subr.bf16.mxu0 %v1968
    %3121 = vmatpush1.bf16.msra.mxu0 %v1967
    %3122 = vmatprep.subr.bf16.mxu0 %v1976
    %3123 = vmatpush1.bf16.msra.mxu0 %v1975
    %3124 = vmatprep.subr.bf16.mxu0 %v1984
    %3125 = vmatpush1.bf16.msra.mxu0 %v1983
    %3126 = vmatprep.subr.bf16.mxu0 %v1992
    %3127 = vmatpush1.bf16.msra.mxu0 %v1991
    %3128 = vmatprep.subr.bf16.mxu0 %v2000
    %3129 = vmatpush1.bf16.msra.mxu0 %v1999
    %3130 = vmatprep.subr.bf16.mxu0 %v2008
    %3131 = vmatpush1.bf16.msra.mxu0 %v2007
    %3132 = vmatprep.mubr.bf16.mxu0 %v139
    %3133 = vmatmul.mubr.bf16.gmra.mrb[0].mxu0 %v138
    %v3134 = vpop.f32.mrb[0].mxu0
    %v3135 = vadd.f32 %v3092, %v3134
    %v3136 = vpop.f32.mrb[0].mxu0
    %v3137 = vadd.f32 %v3094, %v3136
    %v3138 = vpop.f32.mrb[0].mxu0
    %v3139 = vadd.f32 %v3096, %v3138
    %v3140 = vpop.f32.mrb[0].mxu0
    %v3141 = vadd.f32 %v3098, %v3140
    %3142 = vdwg.mxu0
    %3143 = vmatprep.subr.bf16.mxu0 %v2016
    %3144 = vmatpush1.bf16.msra.mxu0 %v2015
    %3145 = vmatprep.subr.bf16.mxu0 %v2024
    %3146 = vmatpush1.bf16.msra.mxu0 %v2023
    %3147 = vmatprep.subr.bf16.mxu0 %v2032
    %3148 = vmatpush1.bf16.msra.mxu0 %v2031
    %3149 = vmatprep.subr.bf16.mxu0 %v2040
    %3150 = vmatpush1.bf16.msra.mxu0 %v2039
    %3151 = vmatprep.subr.bf16.mxu0 %v2048
    %3152 = vmatpush1.bf16.msra.mxu0 %v2047
    %3153 = vmatprep.subr.bf16.mxu0 %v2056
    %3154 = vmatpush1.bf16.msra.mxu0 %v2055
    %3155 = vmatprep.subr.bf16.mxu0 %v2064
    %3156 = vmatpush1.bf16.msra.mxu0 %v2063
    %3157 = vmatprep.subr.bf16.mxu0 %v2072
    %3158 = vmatpush1.bf16.msra.mxu0 %v2071
    %3159 = vmatprep.subr.bf16.mxu0 %v2080
    %3160 = vmatpush1.bf16.msra.mxu0 %v2079
    %3161 = vmatprep.subr.bf16.mxu0 %v2088
    %3162 = vmatpush1.bf16.msra.mxu0 %v2087
    %3163 = vmatprep.subr.bf16.mxu0 %v2096
    %3164 = vmatpush1.bf16.msra.mxu0 %v2095
    %3165 = vmatprep.subr.bf16.mxu0 %v2104
    %3166 = vmatpush1.bf16.msra.mxu0 %v2103
    %3167 = vmatprep.subr.bf16.mxu0 %v2112
    %3168 = vmatpush1.bf16.msra.mxu0 %v2111
    %3169 = vmatprep.subr.bf16.mxu0 %v2120
    %3170 = vmatpush1.bf16.msra.mxu0 %v2119
    %3171 = vmatprep.subr.bf16.mxu0 %v2128
    %3172 = vmatpush1.bf16.msra.mxu0 %v2127
    %3173 = vmatprep.subr.bf16.mxu0 %v2136
    %3174 = vmatpush1.bf16.msra.mxu0 %v2135
    %3175 = vmatprep.mubr.bf16.mxu0 %v141
    %3176 = vmatmul.mubr.bf16.gmra.mrb[0].mxu0 %v140
    %v3177 = vpop.f32.mrb[0].mxu0
    %v3178 = vadd.f32 %v3135, %v3177
    %v3179 = vpop.f32.mrb[0].mxu0
    %v3180 = vadd.f32 %v3137, %v3179
    %v3181 = vpop.f32.mrb[0].mxu0
    %v3182 = vadd.f32 %v3139, %v3181
    %v3183 = vpop.f32.mrb[0].mxu0
    %v3184 = vadd.f32 %v3141, %v3183
    %3185 = vdwg.mxu0
    %3186 = vmatprep.subr.bf16.mxu0 %v2144
    %3187 = vmatpush1.bf16.msra.mxu0 %v2143
    %3188 = vmatprep.subr.bf16.mxu0 0
    %3189 = vmatpush1.bf16.msra.mxu0 0
    %3190 = vmatprep.subr.bf16.mxu0 0
    %3191 = vmatpush1.bf16.msra.mxu0 0
    %3192 = vmatprep.subr.bf16.mxu0 0
    %3193 = vmatpush1.bf16.msra.mxu0 0
    %3194 = vmatprep.subr.bf16.mxu0 0
    %3195 = vmatpush1.bf16.msra.mxu0 0
    %3196 = vmatprep.subr.bf16.mxu0 0
    %3197 = vmatpush1.bf16.msra.mxu0 0
    %3198 = vmatprep.subr.bf16.mxu0 0
    %3199 = vmatpush1.bf16.msra.mxu0 0
    %3200 = vmatprep.subr.bf16.mxu0 0
    %3201 = vmatpush1.bf16.msra.mxu0 0
    %3202 = vmatprep.subr.bf16.mxu0 0
    %3203 = vmatpush1.bf16.msra.mxu0 0
    %3204 = vmatprep.subr.bf16.mxu0 0
    %3205 = vmatpush1.bf16.msra.mxu0 0
    %3206 = vmatprep.subr.bf16.mxu0 0
    %3207 = vmatpush1.bf16.msra.mxu0 0
    %3208 = vmatprep.subr.bf16.mxu0 0
    %3209 = vmatpush1.bf16.msra.mxu0 0
    %3210 = vmatprep.subr.bf16.mxu0 0
    %3211 = vmatpush1.bf16.msra.mxu0 0
    %3212 = vmatprep.subr.bf16.mxu0 0
    %3213 = vmatpush1.bf16.msra.mxu0 0
    %3214 = vmatprep.subr.bf16.mxu0 0
    %3215 = vmatpush1.bf16.msra.mxu0 0
    %3216 = vmatprep.subr.bf16.mxu0 0
    %3217 = vmatpush1.bf16.msra.mxu0 0
    %3218 = vmatprep.mubr.bf16.mxu0 0
    %3219 = vmatmul.mubr.bf16.gmra.mrb[0].mxu0 %v2539
    %v3220 = vpop.f32.mrb[0].mxu0
    %v3221 = vadd.f32 %v3178, %v3220
    %v3222 = vpop.f32.mrb[0].mxu0
    %v3223 = vadd.f32 %v3180, %v3222
    %v3224 = vpop.f32.mrb[0].mxu0
    %v3225 = vadd.f32 %v3182, %v3224
    %v3226 = vpop.f32.mrb[0].mxu0
    %v3227 = vadd.f32 %v3184, %v3226
    %3228 = vdwg.mxu0
    %vm3229 = vcmp.gt.f32.partialorder %v2705, 0.0
    %vm3230 = vcmp.gt.f32.partialorder %v2707, 0.0
    %vm3231 = vcmp.gt.f32.partialorder %v2877, 0.0
    %vm3232 = vcmp.gt.f32.partialorder %v2879, 0.0
    %vm3233 = vcmp.gt.f32.partialorder %v3049, 0.0
    %vm3234 = vcmp.gt.f32.partialorder %v3051, 0.0
    %vm3235 = vcmp.gt.f32.partialorder %v3221, 0.0
    %vm3236 = vcmp.gt.f32.partialorder %v3223, 0.0
    %vm3237 = vcmp.gt.f32.partialorder %v2709, 0.0
    %vm3238 = vcmp.gt.f32.partialorder %v2711, 0.0
    %vm3239 = vcmp.gt.f32.partialorder %v2881, 0.0
    %vm3240 = vcmp.gt.f32.partialorder %v2883, 0.0
    %vm3241 = vcmp.gt.f32.partialorder %v3053, 0.0
    %vm3242 = vcmp.gt.f32.partialorder %v3055, 0.0
    %vm3243 = vcmp.gt.f32.partialorder %v3225, 0.0
    %vm3244 = vcmp.gt.f32.partialorder %v3227, 0.0
    %v3245 = vmul.f32 %v2705, 0.2
    %v3246 = vmul.f32 %v2707, 0.2
    %v3247 = vmul.f32 %v2877, 0.2
    %v3248 = vmul.f32 %v2879, 0.2
    %v3249 = vmul.f32 %v3049, 0.2
    %v3250 = vmul.f32 %v3051, 0.2
    %v3251 = vmul.f32 %v3221, 0.2
    %v3252 = vmul.f32 %v3223, 0.2
    %v3253 = vmul.f32 %v2709, 0.2
    %v3254 = vmul.f32 %v2711, 0.2
    %v3255 = vmul.f32 %v2881, 0.2
    %v3256 = vmul.f32 %v2883, 0.2
    %v3257 = vmul.f32 %v3053, 0.2
    %v3258 = vmul.f32 %v3055, 0.2
    %v3259 = vmul.f32 %v3225, 0.2
    %v3260 = vmul.f32 %v3227, 0.2
    %v3261 = vsel %vm3229, %v2705, %v3245
    %v3262 = vsel %vm3230, %v2707, %v3246
    %v3263 = vsel %vm3231, %v2877, %v3247
    %v3264 = vsel %vm3232, %v2879, %v3248
    %v3265 = vsel %vm3233, %v3049, %v3249
    %v3266 = vsel %vm3234, %v3051, %v3250
    %v3267 = vsel %vm3235, %v3221, %v3251
    %v3268 = vsel %vm3236, %v3223, %v3252
    %v3269 = vsel %vm3237, %v2709, %v3253
    %v3270 = vsel %vm3238, %v2711, %v3254
    %v3271 = vsel %vm3239, %v2881, %v3255
    %v3272 = vsel %vm3240, %v2883, %v3256
    %v3273 = vsel %vm3241, %v3053, %v3257
    %v3274 = vsel %vm3242, %v3055, %v3258
    %v3275 = vsel %vm3243, %v3225, %v3259
    %v3276 = vsel %vm3244, %v3227, %v3260
    %v3277 = vpack.c.bf16 %v3269, %v3261
    %v3278 = vpack.c.bf16 %v3270, %v3262
    %v3279 = vpack.c.bf16 %v3271, %v3263
    %v3280 = vpack.c.bf16 %v3272, %v3264
    %v3281 = vpack.c.bf16 %v3273, %v3265
    %v3282 = vpack.c.bf16 %v3274, %v3266
    %v3283 = vpack.c.bf16 %v3275, %v3267
    %v3284 = vpack.c.bf16 %v3276, %v3268
    %v3285 = vld [vmem:[#allocation7] sm:$0xff]
    %v3286 = vld [vmem:[#allocation7 + $0x8] sm:$0xff]
    %v3287 = vld [vmem:[#allocation7 + $0x10] sm:$0xff]
    %v3288 = vld [vmem:[#allocation7 + $0x18] sm:$0xff]
    %v3289 = vld [vmem:[#allocation7 + $0x20] sm:$0xff]
    %v3290 = vld [vmem:[#allocation7 + $0x28] sm:$0xff]
    %v3291 = vld [vmem:[#allocation7 + $0x30] sm:$0xff]
    %v3292 = vld [vmem:[#allocation7 + $0x38] sm:$0xff]
    %v3293 = vld [vmem:[#allocation7 + $0x40] sm:$0xff]
    %v3294 = vld [vmem:[#allocation7 + $0x48] sm:$0xff]
    %v3295 = vld [vmem:[#allocation7 + $0x50] sm:$0xff]
    %v3296 = vld [vmem:[#allocation7 + $0x58] sm:$0xff]
    %v3297 = vld [vmem:[#allocation7 + $0x60] sm:$0xff]
    %v3298 = vld [vmem:[#allocation7 + $0x68] sm:$0xff]
    %v3299 = vld [vmem:[#allocation7 + $0x70] sm:$0xff]
    %v3300 = vld [vmem:[#allocation7 + $0x78] sm:$0xff]
    %v3301 = vld [vmem:[#allocation7 + $0x80] sm:$0xff]
    %v3302 = vld [vmem:[#allocation7 + $0x88] sm:$0xff]
    %v3303 = vld [vmem:[#allocation7 + $0x90] sm:$0xff]
    %v3304 = vld [vmem:[#allocation7 + $0x98] sm:$0xff]
    %v3305 = vld [vmem:[#allocation7 + $0xa0] sm:$0xff]
    %v3306 = vld [vmem:[#allocation7 + $0xa8] sm:$0xff]
    %v3307 = vld [vmem:[#allocation7 + $0xb0] sm:$0xff]
    %v3308 = vld [vmem:[#allocation7 + $0xb8] sm:$0xff]
    %v3309 = vld [vmem:[#allocation7 + $0xc0] sm:$0xff]
    %v3310 = vld [vmem:[#allocation7 + $0xc8] sm:$0xff]
    %v3311 = vld [vmem:[#allocation7 + $0xd0] sm:$0xff]
    %v3312 = vld [vmem:[#allocation7 + $0xd8] sm:$0xff]
    %v3313 = vld [vmem:[#allocation7 + $0xe0] sm:$0xff]
    %v3314 = vld [vmem:[#allocation7 + $0xe8] sm:$0xff]
    %v3315 = vld [vmem:[#allocation7 + $0xf0] sm:$0xff]
    %v3316 = vld [vmem:[#allocation7 + $0xf8] sm:$0xff]
    %v3317 = vld [vmem:[#allocation7 + $0x100] sm:$0xff]
    %v3318 = vld [vmem:[#allocation7 + $0x108] sm:$0xff]
    %v3319 = vld [vmem:[#allocation7 + $0x110] sm:$0xff]
    %v3320 = vld [vmem:[#allocation7 + $0x118] sm:$0xff]
    %v3321 = vld [vmem:[#allocation7 + $0x120] sm:$0xff]
    %v3322 = vld [vmem:[#allocation7 + $0x128] sm:$0xff]
    %v3323 = vld [vmem:[#allocation7 + $0x130] sm:$0xff]
    %v3324 = vld [vmem:[#allocation7 + $0x138] sm:$0xff]
    %v3325 = vld [vmem:[#allocation7 + $0x140] sm:$0xff]
    %v3326 = vld [vmem:[#allocation7 + $0x148] sm:$0xff]
    %v3327 = vld [vmem:[#allocation7 + $0x150] sm:$0xff]
    %v3328 = vld [vmem:[#allocation7 + $0x158] sm:$0xff]
    %v3329 = vld [vmem:[#allocation7 + $0x160] sm:$0xff]
    %v3330 = vld [vmem:[#allocation7 + $0x168] sm:$0xff]
    %v3331 = vld [vmem:[#allocation7 + $0x170] sm:$0xff]
    %v3332 = vld [vmem:[#allocation7 + $0x178] sm:$0xff]
    %v3333 = vld [vmem:[#allocation7 + $0x180] sm:$0xff]
    %v3334 = vld [vmem:[#allocation7 + $0x188] sm:$0xff]
    %v3335 = vld [vmem:[#allocation7 + $0x190] sm:$0xff]
    %v3336 = vld [vmem:[#allocation7 + $0x198] sm:$0xff]
    %v3337 = vld [vmem:[#allocation7 + $0x1a0] sm:$0xff]
    %v3338 = vld [vmem:[#allocation7 + $0x1a8] sm:$0xff]
    %v3339 = vld [vmem:[#allocation7 + $0x1b0] sm:$0xff]
    %v3340 = vld [vmem:[#allocation7 + $0x1b8] sm:$0xff]
    %v3341 = vld [vmem:[#allocation7 + $0x1c0] sm:$0xff]
    %v3342 = vld [vmem:[#allocation7 + $0x1c8] sm:$0xff]
    %v3343 = vld [vmem:[#allocation7 + $0x1d0] sm:$0xff]
    %v3344 = vld [vmem:[#allocation7 + $0x1d8] sm:$0xff]
    %v3345 = vld [vmem:[#allocation7 + $0x1e0] sm:$0xff]
    %v3346 = vld [vmem:[#allocation7 + $0x1e8] sm:$0xff]
    %v3347 = vld [vmem:[#allocation7 + $0x1f0] sm:$0xff]
    %v3348 = vld [vmem:[#allocation7 + $0x1f8] sm:$0xff]
    %v3349 = vld [vmem:[#allocation7 + $0x200] sm:$0xff]
    %v3350 = vld [vmem:[#allocation7 + $0x208] sm:$0xff]
    %v3351 = vld [vmem:[#allocation7 + $0x210] sm:$0xff]
    %v3352 = vld [vmem:[#allocation7 + $0x218] sm:$0xff]
    %v3353 = vld [vmem:[#allocation7 + $0x220] sm:$0xff]
    %v3354 = vld [vmem:[#allocation7 + $0x228] sm:$0xff]
    %v3355 = vld [vmem:[#allocation7 + $0x230] sm:$0xff]
    %v3356 = vld [vmem:[#allocation7 + $0x238] sm:$0xff]
    %v3357 = vld [vmem:[#allocation7 + $0x240] sm:$0xff]
    %v3358 = vld [vmem:[#allocation7 + $0x248] sm:$0xff]
    %v3359 = vld [vmem:[#allocation7 + $0x250] sm:$0xff]
    %v3360 = vld [vmem:[#allocation7 + $0x258] sm:$0xff]
    %v3361 = vld [vmem:[#allocation7 + $0x260] sm:$0xff]
    %v3362 = vld [vmem:[#allocation7 + $0x268] sm:$0xff]
    %v3363 = vld [vmem:[#allocation7 + $0x270] sm:$0xff]
    %v3364 = vld [vmem:[#allocation7 + $0x278] sm:$0xff]
    %v3365 = vld [vmem:[#allocation7 + $0x280] sm:$0xff]
    %v3366 = vld [vmem:[#allocation7 + $0x288] sm:$0xff]
    %v3367 = vld [vmem:[#allocation7 + $0x290] sm:$0xff]
    %v3368 = vld [vmem:[#allocation7 + $0x298] sm:$0xff]
    %v3369 = vld [vmem:[#allocation7 + $0x2a0] sm:$0xff]
    %v3370 = vld [vmem:[#allocation7 + $0x2a8] sm:$0xff]
    %v3371 = vld [vmem:[#allocation7 + $0x2b0] sm:$0xff]
    %v3372 = vld [vmem:[#allocation7 + $0x2b8] sm:$0xff]
    %v3373 = vld [vmem:[#allocation7 + $0x2c0] sm:$0xff]
    %v3374 = vld [vmem:[#allocation7 + $0x2c8] sm:$0xff]
    %v3375 = vld [vmem:[#allocation7 + $0x2d0] sm:$0xff]
    %v3376 = vld [vmem:[#allocation7 + $0x2d8] sm:$0xff]
    %v3377 = vld [vmem:[#allocation7 + $0x2e0] sm:$0xff]
    %v3378 = vld [vmem:[#allocation7 + $0x2e8] sm:$0xff]
    %v3379 = vld [vmem:[#allocation7 + $0x2f0] sm:$0xff]
    %v3380 = vld [vmem:[#allocation7 + $0x2f8] sm:$0xff]
    %v3381 = vld [vmem:[#allocation7 + $0x300] sm:$0xff]
    %v3382 = vld [vmem:[#allocation7 + $0x308] sm:$0xff]
    %v3383 = vld [vmem:[#allocation7 + $0x310] sm:$0xff]
    %v3384 = vld [vmem:[#allocation7 + $0x318] sm:$0xff]
    %v3385 = vld [vmem:[#allocation7 + $0x320] sm:$0xff]
    %v3386 = vld [vmem:[#allocation7 + $0x328] sm:$0xff]
    %v3387 = vld [vmem:[#allocation7 + $0x330] sm:$0xff]
    %v3388 = vld [vmem:[#allocation7 + $0x338] sm:$0xff]
    %v3389 = vld [vmem:[#allocation7 + $0x340] sm:$0xff]
    %v3390 = vld [vmem:[#allocation7 + $0x348] sm:$0xff]
    %v3391 = vld [vmem:[#allocation7 + $0x350] sm:$0xff]
    %v3392 = vld [vmem:[#allocation7 + $0x358] sm:$0xff]
    %v3393 = vld [vmem:[#allocation7 + $0x360] sm:$0xff]
    %v3394 = vld [vmem:[#allocation7 + $0x368] sm:$0xff]
    %v3395 = vld [vmem:[#allocation7 + $0x370] sm:$0xff]
    %v3396 = vld [vmem:[#allocation7 + $0x378] sm:$0xff]
    %v3397 = vld [vmem:[#allocation7 + $0x380] sm:$0xff]
    %v3398 = vld [vmem:[#allocation7 + $0x388] sm:$0xff]
    %v3399 = vld [vmem:[#allocation7 + $0x390] sm:$0xff]
    %v3400 = vld [vmem:[#allocation7 + $0x398] sm:$0xff]
    %v3401 = vld [vmem:[#allocation7 + $0x3a0] sm:$0xff]
    %v3402 = vld [vmem:[#allocation7 + $0x3a8] sm:$0xff]
    %v3403 = vld [vmem:[#allocation7 + $0x3b0] sm:$0xff]
    %v3404 = vld [vmem:[#allocation7 + $0x3b8] sm:$0xff]
    %v3405 = vld [vmem:[#allocation7 + $0x3c0] sm:$0xff]
    %v3406 = vld [vmem:[#allocation7 + $0x3c8] sm:$0xff]
    %v3407 = vld [vmem:[#allocation7 + $0x3d0] sm:$0xff]
    %v3408 = vld [vmem:[#allocation7 + $0x3d8] sm:$0xff]
    %v3409 = vld [vmem:[#allocation7 + $0x3e0] sm:$0xff]
    %v3410 = vld [vmem:[#allocation7 + $0x3e8] sm:$0xff]
    %v3411 = vld [vmem:[#allocation7 + $0x3f0] sm:$0xff]
    %v3412 = vld [vmem:[#allocation7 + $0x3f8] sm:$0xff]
    %v3413 = vld [vmem:[#allocation7 + $0x400] sm:$0xff]
    %v3414 = vld [vmem:[#allocation7 + $0x408] sm:$0xff]
    %v3415 = vld [vmem:[#allocation7 + $0x410] sm:$0xff]
    %v3416 = vld [vmem:[#allocation7 + $0x418] sm:$0xff]
    %v3417 = vld [vmem:[#allocation7 + $0x420] sm:$0xff]
    %v3418 = vld [vmem:[#allocation7 + $0x428] sm:$0xff]
    %v3419 = vld [vmem:[#allocation7 + $0x430] sm:$0xff]
    %v3420 = vld [vmem:[#allocation7 + $0x438] sm:$0xff]
    %v3421 = vld [vmem:[#allocation7 + $0x440] sm:$0xff]
    %v3422 = vld [vmem:[#allocation7 + $0x448] sm:$0xff]
    %v3423 = vld [vmem:[#allocation7 + $0x450] sm:$0xff]
    %v3424 = vld [vmem:[#allocation7 + $0x458] sm:$0xff]
    %v3425 = vld [vmem:[#allocation7 + $0x460] sm:$0xff]
    %v3426 = vld [vmem:[#allocation7 + $0x468] sm:$0xff]
    %v3427 = vld [vmem:[#allocation7 + $0x470] sm:$0xff]
    %v3428 = vld [vmem:[#allocation7 + $0x478] sm:$0xff]
    %v3429 = vld [vmem:[#allocation7 + $0x480] sm:$0xff]
    %v3430 = vld [vmem:[#allocation7 + $0x488] sm:$0xff]
    %v3431 = vld [vmem:[#allocation7 + $0x490] sm:$0xff]
    %v3432 = vld [vmem:[#allocation7 + $0x498] sm:$0xff]
    %v3433 = vld [vmem:[#allocation7 + $0x4a0] sm:$0xff]
    %v3434 = vld [vmem:[#allocation7 + $0x4a8] sm:$0xff]
    %v3435 = vld [vmem:[#allocation7 + $0x4b0] sm:$0xff]
    %v3436 = vld [vmem:[#allocation7 + $0x4b8] sm:$0xff]
    %v3437 = vld [vmem:[#allocation7 + $0x4c0] sm:$0xff]
    %v3438 = vld [vmem:[#allocation7 + $0x4c8] sm:$0xff]
    %v3439 = vld [vmem:[#allocation7 + $0x4d0] sm:$0xff]
    %v3440 = vld [vmem:[#allocation7 + $0x4d8] sm:$0xff]
    %v3441 = vld [vmem:[#allocation7 + $0x4e0] sm:$0xff]
    %v3442 = vld [vmem:[#allocation7 + $0x4e8] sm:$0xff]
    %v3443 = vld [vmem:[#allocation7 + $0x4f0] sm:$0xff]
    %v3444 = vld [vmem:[#allocation7 + $0x4f8] sm:$0xff]
    %v3445 = vld [vmem:[#allocation7 + $0x500] sm:$0xff]
    %v3446 = vld [vmem:[#allocation7 + $0x508] sm:$0xff]
    %v3447 = vld [vmem:[#allocation7 + $0x510] sm:$0xff]
    %v3448 = vld [vmem:[#allocation7 + $0x518] sm:$0xff]
    %v3449 = vld [vmem:[#allocation7 + $0x520] sm:$0xff]
    %v3450 = vld [vmem:[#allocation7 + $0x528] sm:$0xff]
    %v3451 = vld [vmem:[#allocation7 + $0x530] sm:$0xff]
    %v3452 = vld [vmem:[#allocation7 + $0x538] sm:$0xff]
    %v3453 = vld [vmem:[#allocation7 + $0x540] sm:$0xff]
    %v3454 = vld [vmem:[#allocation7 + $0x548] sm:$0xff]
    %v3455 = vld [vmem:[#allocation7 + $0x550] sm:$0xff]
    %v3456 = vld [vmem:[#allocation7 + $0x558] sm:$0xff]
    %v3457 = vld [vmem:[#allocation7 + $0x560] sm:$0xff]
    %v3458 = vld [vmem:[#allocation7 + $0x568] sm:$0xff]
    %v3459 = vld [vmem:[#allocation7 + $0x570] sm:$0xff]
    %v3460 = vld [vmem:[#allocation7 + $0x578] sm:$0xff]
    %v3461 = vld [vmem:[#allocation7 + $0x580] sm:$0xff]
    %v3462 = vld [vmem:[#allocation7 + $0x588] sm:$0xff]
    %v3463 = vld [vmem:[#allocation7 + $0x590] sm:$0xff]
    %v3464 = vld [vmem:[#allocation7 + $0x598] sm:$0xff]
    %v3465 = vld [vmem:[#allocation7 + $0x5a0] sm:$0xff]
    %v3466 = vld [vmem:[#allocation7 + $0x5a8] sm:$0xff]
    %v3467 = vld [vmem:[#allocation7 + $0x5b0] sm:$0xff]
    %v3468 = vld [vmem:[#allocation7 + $0x5b8] sm:$0xff]
    %v3469 = vld [vmem:[#allocation7 + $0x5c0] sm:$0xff]
    %v3470 = vld [vmem:[#allocation7 + $0x5c8] sm:$0xff]
    %v3471 = vld [vmem:[#allocation7 + $0x5d0] sm:$0xff]
    %v3472 = vld [vmem:[#allocation7 + $0x5d8] sm:$0xff]
    %v3473 = vld [vmem:[#allocation7 + $0x5e0] sm:$0xff]
    %v3474 = vld [vmem:[#allocation7 + $0x5e8] sm:$0xff]
    %v3475 = vld [vmem:[#allocation7 + $0x5f0] sm:$0xff]
    %v3476 = vld [vmem:[#allocation7 + $0x5f8] sm:$0xff]
    %v3477 = vld [vmem:[#allocation7 + $0x600] sm:$0xff]
    %v3478 = vld [vmem:[#allocation7 + $0x608] sm:$0xff]
    %v3479 = vld [vmem:[#allocation7 + $0x610] sm:$0xff]
    %v3480 = vld [vmem:[#allocation7 + $0x618] sm:$0xff]
    %v3481 = vld [vmem:[#allocation7 + $0x620] sm:$0xff]
    %v3482 = vld [vmem:[#allocation7 + $0x628] sm:$0xff]
    %v3483 = vld [vmem:[#allocation7 + $0x630] sm:$0xff]
    %v3484 = vld [vmem:[#allocation7 + $0x638] sm:$0xff]
    %v3485 = vld [vmem:[#allocation7 + $0x640] sm:$0xff]
    %v3486 = vld [vmem:[#allocation7 + $0x648] sm:$0xff]
    %v3487 = vld [vmem:[#allocation7 + $0x650] sm:$0xff]
    %v3488 = vld [vmem:[#allocation7 + $0x658] sm:$0xff]
    %v3489 = vld [vmem:[#allocation7 + $0x660] sm:$0xff]
    %v3490 = vld [vmem:[#allocation7 + $0x668] sm:$0xff]
    %v3491 = vld [vmem:[#allocation7 + $0x670] sm:$0xff]
    %v3492 = vld [vmem:[#allocation7 + $0x678] sm:$0xff]
    %v3493 = vld [vmem:[#allocation7 + $0x680] sm:$0xff]
    %v3494 = vld [vmem:[#allocation7 + $0x688] sm:$0xff]
    %v3495 = vld [vmem:[#allocation7 + $0x690] sm:$0xff]
    %v3496 = vld [vmem:[#allocation7 + $0x698] sm:$0xff]
    %v3497 = vld [vmem:[#allocation7 + $0x6a0] sm:$0xff]
    %v3498 = vld [vmem:[#allocation7 + $0x6a8] sm:$0xff]
    %v3499 = vld [vmem:[#allocation7 + $0x6b0] sm:$0xff]
    %v3500 = vld [vmem:[#allocation7 + $0x6b8] sm:$0xff]
    %v3501 = vld [vmem:[#allocation7 + $0x6c0] sm:$0xff]
    %v3502 = vld [vmem:[#allocation7 + $0x6c8] sm:$0xff]
    %v3503 = vld [vmem:[#allocation7 + $0x6d0] sm:$0xff]
    %v3504 = vld [vmem:[#allocation7 + $0x6d8] sm:$0xff]
    %v3505 = vld [vmem:[#allocation7 + $0x6e0] sm:$0xff]
    %v3506 = vld [vmem:[#allocation7 + $0x6e8] sm:$0xff]
    %v3507 = vld [vmem:[#allocation7 + $0x6f0] sm:$0xff]
    %v3508 = vld [vmem:[#allocation7 + $0x6f8] sm:$0xff]
    %v3509 = vld [vmem:[#allocation7 + $0x700] sm:$0xff]
    %v3510 = vld [vmem:[#allocation7 + $0x708] sm:$0xff]
    %v3511 = vld [vmem:[#allocation7 + $0x710] sm:$0xff]
    %v3512 = vld [vmem:[#allocation7 + $0x718] sm:$0xff]
    %v3513 = vld [vmem:[#allocation7 + $0x720] sm:$0xff]
    %v3514 = vld [vmem:[#allocation7 + $0x728] sm:$0xff]
    %v3515 = vld [vmem:[#allocation7 + $0x730] sm:$0xff]
    %v3516 = vld [vmem:[#allocation7 + $0x738] sm:$0xff]
    %v3517 = vld [vmem:[#allocation7 + $0x740] sm:$0xff]
    %v3518 = vld [vmem:[#allocation7 + $0x748] sm:$0xff]
    %v3519 = vld [vmem:[#allocation7 + $0x750] sm:$0xff]
    %v3520 = vld [vmem:[#allocation7 + $0x758] sm:$0xff]
    %v3521 = vld [vmem:[#allocation7 + $0x760] sm:$0xff]
    %v3522 = vld [vmem:[#allocation7 + $0x768] sm:$0xff]
    %v3523 = vld [vmem:[#allocation7 + $0x770] sm:$0xff]
    %v3524 = vld [vmem:[#allocation7 + $0x778] sm:$0xff]
    %v3525 = vld [vmem:[#allocation7 + $0x780] sm:$0xff]
    %v3526 = vld [vmem:[#allocation7 + $0x788] sm:$0xff]
    %v3527 = vld [vmem:[#allocation7 + $0x790] sm:$0xff]
    %v3528 = vld [vmem:[#allocation7 + $0x798] sm:$0xff]
    %v3529 = vld [vmem:[#allocation7 + $0x7a0] sm:$0xff]
    %v3530 = vld [vmem:[#allocation7 + $0x7a8] sm:$0xff]
    %v3531 = vld [vmem:[#allocation7 + $0x7b0] sm:$0xff]
    %v3532 = vld [vmem:[#allocation7 + $0x7b8] sm:$0xff]
    %v3533 = vld [vmem:[#allocation7 + $0x7c0] sm:$0xff]
    %v3534 = vld [vmem:[#allocation7 + $0x7c8] sm:$0xff]
    %v3535 = vld [vmem:[#allocation7 + $0x7d0] sm:$0xff]
    %v3536 = vld [vmem:[#allocation7 + $0x7d8] sm:$0xff]
    %v3537 = vld [vmem:[#allocation7 + $0x7e0] sm:$0xff]
    %v3538 = vld [vmem:[#allocation7 + $0x7e8] sm:$0xff]
    %v3539 = vld [vmem:[#allocation7 + $0x7f0] sm:$0xff]
    %v3540 = vld [vmem:[#allocation7 + $0x7f8] sm:$0xff]
    %v3541 = vld [vmem:[#allocation8] sm:$0xf]
    %v3543 = vlaneseq
    %v3544 = vshrl.u32 %v3543, 7
    %v3545 = vsub.s32 0, %v3544
    %v3546 = vrot.slane %v3541, %v3545
    %v3547 = vlaneseq
    %v3548 = vshrl.u32 %v3547, 7
    %v3549 = vsub.s32 1, %v3548
    %v3550 = vrot.slane %v3541, %v3549
    %v3551 = vlaneseq
    %v3552 = vshrl.u32 %v3551, 7
    %v3553 = vsub.s32 2, %v3552
    %v3554 = vrot.slane %v3541, %v3553
    %v3555 = vlaneseq
    %v3556 = vshrl.u32 %v3555, 7
    %v3557 = vsub.s32 3, %v3556
    %v3558 = vrot.slane %v3541, %v3557
    %v3819 = vunpack.c.l.b16 %v3285
    %v3820 = vunpack.c.h.b16 %v3285
    %v3821 = vunpack.c.l.b16 %v3286
    %v3822 = vunpack.c.h.b16 %v3286
    %v3823 = vunpack.c.l.b16 %v3287
    %v3824 = vunpack.c.h.b16 %v3287
    %v3825 = vunpack.c.l.b16 %v3288
    %v3826 = vunpack.c.h.b16 %v3288
    %v3827 = vunpack.c.l.b16 %v3289
    %v3828 = vunpack.c.h.b16 %v3289
    %v3829 = vunpack.c.l.b16 %v3290
    %v3830 = vunpack.c.h.b16 %v3290
    %v3831 = vunpack.c.l.b16 %v3291
    %v3832 = vunpack.c.h.b16 %v3291
    %v3833 = vunpack.c.l.b16 %v3292
    %v3834 = vunpack.c.h.b16 %v3292
    %v3835 = vunpack.c.l.b16 %v3293
    %v3836 = vunpack.c.h.b16 %v3293
    %v3837 = vunpack.c.l.b16 %v3294
    %v3838 = vunpack.c.h.b16 %v3294
    %v3839 = vunpack.c.l.b16 %v3295
    %v3840 = vunpack.c.h.b16 %v3295
    %v3841 = vunpack.c.l.b16 %v3296
    %v3842 = vunpack.c.h.b16 %v3296
    %v3843 = vunpack.c.l.b16 %v3297
    %v3844 = vunpack.c.h.b16 %v3297
    %v3845 = vunpack.c.l.b16 %v3298
    %v3846 = vunpack.c.h.b16 %v3298
    %v3847 = vunpack.c.l.b16 %v3299
    %v3848 = vunpack.c.h.b16 %v3299
    %v3849 = vunpack.c.l.b16 %v3300
    %v3850 = vunpack.c.h.b16 %v3300
    %v3851 = vunpack.c.l.b16 %v3301
    %v3852 = vunpack.c.h.b16 %v3301
    %v3853 = vunpack.c.l.b16 %v3302
    %v3854 = vunpack.c.h.b16 %v3302
    %v3855 = vunpack.c.l.b16 %v3303
    %v3856 = vunpack.c.h.b16 %v3303
    %v3857 = vunpack.c.l.b16 %v3304
    %v3858 = vunpack.c.h.b16 %v3304
    %v3859 = vunpack.c.l.b16 %v3305
    %v3860 = vunpack.c.h.b16 %v3305
    %v3861 = vunpack.c.l.b16 %v3306
    %v3862 = vunpack.c.h.b16 %v3306
    %v3863 = vunpack.c.l.b16 %v3307
    %v3864 = vunpack.c.h.b16 %v3307
    %v3865 = vunpack.c.l.b16 %v3308
    %v3866 = vunpack.c.h.b16 %v3308
    %v3867 = vunpack.c.l.b16 %v3309
    %v3868 = vunpack.c.h.b16 %v3309
    %v3869 = vunpack.c.l.b16 %v3310
    %v3870 = vunpack.c.h.b16 %v3310
    %v3871 = vunpack.c.l.b16 %v3311
    %v3872 = vunpack.c.h.b16 %v3311
    %v3873 = vunpack.c.l.b16 %v3312
    %v3874 = vunpack.c.h.b16 %v3312
    %v3875 = vunpack.c.l.b16 %v3313
    %v3876 = vunpack.c.h.b16 %v3313
    %v3877 = vunpack.c.l.b16 %v3314
    %v3878 = vunpack.c.h.b16 %v3314
    %v3879 = vunpack.c.l.b16 %v3315
    %v3880 = vunpack.c.h.b16 %v3315
    %v3881 = vunpack.c.l.b16 %v3316
    %v3882 = vunpack.c.h.b16 %v3316
    %v3883 = vunpack.c.l.b16 %v3317
    %v3884 = vunpack.c.h.b16 %v3317
    %v3885 = vunpack.c.l.b16 %v3318
    %v3886 = vunpack.c.h.b16 %v3318
    %v3887 = vunpack.c.l.b16 %v3319
    %v3888 = vunpack.c.h.b16 %v3319
    %v3889 = vunpack.c.l.b16 %v3320
    %v3890 = vunpack.c.h.b16 %v3320
    %v3891 = vunpack.c.l.b16 %v3321
    %v3892 = vunpack.c.h.b16 %v3321
    %v3893 = vunpack.c.l.b16 %v3322
    %v3894 = vunpack.c.h.b16 %v3322
    %v3895 = vunpack.c.l.b16 %v3323
    %v3896 = vunpack.c.h.b16 %v3323
    %v3897 = vunpack.c.l.b16 %v3324
    %v3898 = vunpack.c.h.b16 %v3324
    %v3899 = vunpack.c.l.b16 %v3325
    %v3900 = vunpack.c.h.b16 %v3325
    %v3901 = vunpack.c.l.b16 %v3326
    %v3902 = vunpack.c.h.b16 %v3326
    %v3903 = vunpack.c.l.b16 %v3327
    %v3904 = vunpack.c.h.b16 %v3327
    %v3905 = vunpack.c.l.b16 %v3328
    %v3906 = vunpack.c.h.b16 %v3328
    %v3907 = vunpack.c.l.b16 %v3329
    %v3908 = vunpack.c.h.b16 %v3329
    %v3909 = vunpack.c.l.b16 %v3330
    %v3910 = vunpack.c.h.b16 %v3330
    %v3911 = vunpack.c.l.b16 %v3331
    %v3912 = vunpack.c.h.b16 %v3331
    %v3913 = vunpack.c.l.b16 %v3332
    %v3914 = vunpack.c.h.b16 %v3332
    %v3915 = vunpack.c.l.b16 %v3333
    %v3916 = vunpack.c.h.b16 %v3333
    %v3917 = vunpack.c.l.b16 %v3334
    %v3918 = vunpack.c.h.b16 %v3334
    %v3919 = vunpack.c.l.b16 %v3335
    %v3920 = vunpack.c.h.b16 %v3335
    %v3921 = vunpack.c.l.b16 %v3336
    %v3922 = vunpack.c.h.b16 %v3336
    %v3923 = vunpack.c.l.b16 %v3337
    %v3924 = vunpack.c.h.b16 %v3337
    %v3925 = vunpack.c.l.b16 %v3338
    %v3926 = vunpack.c.h.b16 %v3338
    %v3927 = vunpack.c.l.b16 %v3339
    %v3928 = vunpack.c.h.b16 %v3339
    %v3929 = vunpack.c.l.b16 %v3340
    %v3930 = vunpack.c.h.b16 %v3340
    %v3931 = vunpack.c.l.b16 %v3341
    %v3932 = vunpack.c.h.b16 %v3341
    %v3933 = vunpack.c.l.b16 %v3342
    %v3934 = vunpack.c.h.b16 %v3342
    %v3935 = vunpack.c.l.b16 %v3343
    %v3936 = vunpack.c.h.b16 %v3343
    %v3937 = vunpack.c.l.b16 %v3344
    %v3938 = vunpack.c.h.b16 %v3344
    %v3939 = vunpack.c.l.b16 %v3345
    %v3940 = vunpack.c.h.b16 %v3345
    %v3941 = vunpack.c.l.b16 %v3346
    %v3942 = vunpack.c.h.b16 %v3346
    %v3943 = vunpack.c.l.b16 %v3347
    %v3944 = vunpack.c.h.b16 %v3347
    %v3945 = vunpack.c.l.b16 %v3348
    %v3946 = vunpack.c.h.b16 %v3348
    %v3947 = vunpack.c.l.b16 %v3349
    %v3948 = vunpack.c.h.b16 %v3349
    %v3949 = vunpack.c.l.b16 %v3350
    %v3950 = vunpack.c.h.b16 %v3350
    %v3951 = vunpack.c.l.b16 %v3351
    %v3952 = vunpack.c.h.b16 %v3351
    %v3953 = vunpack.c.l.b16 %v3352
    %v3954 = vunpack.c.h.b16 %v3352
    %v3955 = vunpack.c.l.b16 %v3353
    %v3956 = vunpack.c.h.b16 %v3353
    %v3957 = vunpack.c.l.b16 %v3354
    %v3958 = vunpack.c.h.b16 %v3354
    %v3959 = vunpack.c.l.b16 %v3355
    %v3960 = vunpack.c.h.b16 %v3355
    %v3961 = vunpack.c.l.b16 %v3356
    %v3962 = vunpack.c.h.b16 %v3356
    %v3963 = vunpack.c.l.b16 %v3357
    %v3964 = vunpack.c.h.b16 %v3357
    %v3965 = vunpack.c.l.b16 %v3358
    %v3966 = vunpack.c.h.b16 %v3358
    %v3967 = vunpack.c.l.b16 %v3359
    %v3968 = vunpack.c.h.b16 %v3359
    %v3969 = vunpack.c.l.b16 %v3360
    %v3970 = vunpack.c.h.b16 %v3360
    %v3971 = vunpack.c.l.b16 %v3361
    %v3972 = vunpack.c.h.b16 %v3361
    %v3973 = vunpack.c.l.b16 %v3362
    %v3974 = vunpack.c.h.b16 %v3362
    %v3975 = vunpack.c.l.b16 %v3363
    %v3976 = vunpack.c.h.b16 %v3363
    %v3977 = vunpack.c.l.b16 %v3364
    %v3978 = vunpack.c.h.b16 %v3364
    %v3979 = vunpack.c.l.b16 %v3365
    %v3980 = vunpack.c.h.b16 %v3365
    %v3981 = vunpack.c.l.b16 %v3366
    %v3982 = vunpack.c.h.b16 %v3366
    %v3983 = vunpack.c.l.b16 %v3367
    %v3984 = vunpack.c.h.b16 %v3367
    %v3985 = vunpack.c.l.b16 %v3368
    %v3986 = vunpack.c.h.b16 %v3368
    %v3987 = vunpack.c.l.b16 %v3369
    %v3988 = vunpack.c.h.b16 %v3369
    %v3989 = vunpack.c.l.b16 %v3370
    %v3990 = vunpack.c.h.b16 %v3370
    %v3991 = vunpack.c.l.b16 %v3371
    %v3992 = vunpack.c.h.b16 %v3371
    %v3993 = vunpack.c.l.b16 %v3372
    %v3994 = vunpack.c.h.b16 %v3372
    %v3995 = vunpack.c.l.b16 %v3373
    %v3996 = vunpack.c.h.b16 %v3373
    %v3997 = vunpack.c.l.b16 %v3374
    %v3998 = vunpack.c.h.b16 %v3374
    %v3999 = vunpack.c.l.b16 %v3375
    %v4000 = vunpack.c.h.b16 %v3375
    %v4001 = vunpack.c.l.b16 %v3376
    %v4002 = vunpack.c.h.b16 %v3376
    %v4003 = vunpack.c.l.b16 %v3377
    %v4004 = vunpack.c.h.b16 %v3377
    %v4005 = vunpack.c.l.b16 %v3378
    %v4006 = vunpack.c.h.b16 %v3378
    %v4007 = vunpack.c.l.b16 %v3379
    %v4008 = vunpack.c.h.b16 %v3379
    %v4009 = vunpack.c.l.b16 %v3380
    %v4010 = vunpack.c.h.b16 %v3380
    %v4011 = vunpack.c.l.b16 %v3381
    %v4012 = vunpack.c.h.b16 %v3381
    %v4013 = vunpack.c.l.b16 %v3382
    %v4014 = vunpack.c.h.b16 %v3382
    %v4015 = vunpack.c.l.b16 %v3383
    %v4016 = vunpack.c.h.b16 %v3383
    %v4017 = vunpack.c.l.b16 %v3384
    %v4018 = vunpack.c.h.b16 %v3384
    %v4019 = vunpack.c.l.b16 %v3385
    %v4020 = vunpack.c.h.b16 %v3385
    %v4021 = vunpack.c.l.b16 %v3386
    %v4022 = vunpack.c.h.b16 %v3386
    %v4023 = vunpack.c.l.b16 %v3387
    %v4024 = vunpack.c.h.b16 %v3387
    %v4025 = vunpack.c.l.b16 %v3388
    %v4026 = vunpack.c.h.b16 %v3388
    %v4027 = vunpack.c.l.b16 %v3389
    %v4028 = vunpack.c.h.b16 %v3389
    %v4029 = vunpack.c.l.b16 %v3390
    %v4030 = vunpack.c.h.b16 %v3390
    %v4031 = vunpack.c.l.b16 %v3391
    %v4032 = vunpack.c.h.b16 %v3391
    %v4033 = vunpack.c.l.b16 %v3392
    %v4034 = vunpack.c.h.b16 %v3392
    %v4035 = vunpack.c.l.b16 %v3393
    %v4036 = vunpack.c.h.b16 %v3393
    %v4037 = vunpack.c.l.b16 %v3394
    %v4038 = vunpack.c.h.b16 %v3394
    %v4039 = vunpack.c.l.b16 %v3395
    %v4040 = vunpack.c.h.b16 %v3395
    %v4041 = vunpack.c.l.b16 %v3396
    %v4042 = vunpack.c.h.b16 %v3396
    %v4043 = vunpack.c.l.b16 %v3397
    %v4044 = vunpack.c.h.b16 %v3397
    %v4045 = vunpack.c.l.b16 %v3398
    %v4046 = vunpack.c.h.b16 %v3398
    %v4047 = vunpack.c.l.b16 %v3399
    %v4048 = vunpack.c.h.b16 %v3399
    %v4049 = vunpack.c.l.b16 %v3400
    %v4050 = vunpack.c.h.b16 %v3400
    %v4051 = vunpack.c.l.b16 %v3401
    %v4052 = vunpack.c.h.b16 %v3401
    %v4053 = vunpack.c.l.b16 %v3402
    %v4054 = vunpack.c.h.b16 %v3402
    %v4055 = vunpack.c.l.b16 %v3403
    %v4056 = vunpack.c.h.b16 %v3403
    %v4057 = vunpack.c.l.b16 %v3404
    %v4058 = vunpack.c.h.b16 %v3404
    %v4059 = vunpack.c.l.b16 %v3405
    %v4060 = vunpack.c.h.b16 %v3405
    %v4061 = vunpack.c.l.b16 %v3406
    %v4062 = vunpack.c.h.b16 %v3406
    %v4063 = vunpack.c.l.b16 %v3407
    %v4064 = vunpack.c.h.b16 %v3407
    %v4065 = vunpack.c.l.b16 %v3408
    %v4066 = vunpack.c.h.b16 %v3408
    %v4067 = vunpack.c.l.b16 %v3409
    %v4068 = vunpack.c.h.b16 %v3409
    %v4069 = vunpack.c.l.b16 %v3410
    %v4070 = vunpack.c.h.b16 %v3410
    %v4071 = vunpack.c.l.b16 %v3411
    %v4072 = vunpack.c.h.b16 %v3411
    %v4073 = vunpack.c.l.b16 %v3412
    %v4074 = vunpack.c.h.b16 %v3412
    %v4075 = vunpack.c.l.b16 %v3413
    %v4076 = vunpack.c.h.b16 %v3413
    %v4077 = vunpack.c.l.b16 %v3414
    %v4078 = vunpack.c.h.b16 %v3414
    %v4079 = vunpack.c.l.b16 %v3415
    %v4080 = vunpack.c.h.b16 %v3415
    %v4081 = vunpack.c.l.b16 %v3416
    %v4082 = vunpack.c.h.b16 %v3416
    %v4083 = vunpack.c.l.b16 %v3417
    %v4084 = vunpack.c.h.b16 %v3417
    %v4085 = vunpack.c.l.b16 %v3418
    %v4086 = vunpack.c.h.b16 %v3418
    %v4087 = vunpack.c.l.b16 %v3419
    %v4088 = vunpack.c.h.b16 %v3419
    %v4089 = vunpack.c.l.b16 %v3420
    %v4090 = vunpack.c.h.b16 %v3420
    %v4091 = vunpack.c.l.b16 %v3421
    %v4092 = vunpack.c.h.b16 %v3421
    %v4093 = vunpack.c.l.b16 %v3422
    %v4094 = vunpack.c.h.b16 %v3422
    %v4095 = vunpack.c.l.b16 %v3423
    %v4096 = vunpack.c.h.b16 %v3423
    %v4097 = vunpack.c.l.b16 %v3424
    %v4098 = vunpack.c.h.b16 %v3424
    %v4099 = vunpack.c.l.b16 %v3425
    %v4100 = vunpack.c.h.b16 %v3425
    %v4101 = vunpack.c.l.b16 %v3426
    %v4102 = vunpack.c.h.b16 %v3426
    %v4103 = vunpack.c.l.b16 %v3427
    %v4104 = vunpack.c.h.b16 %v3427
    %v4105 = vunpack.c.l.b16 %v3428
    %v4106 = vunpack.c.h.b16 %v3428
    %v4107 = vunpack.c.l.b16 %v3429
    %v4108 = vunpack.c.h.b16 %v3429
    %v4109 = vunpack.c.l.b16 %v3430
    %v4110 = vunpack.c.h.b16 %v3430
    %v4111 = vunpack.c.l.b16 %v3431
    %v4112 = vunpack.c.h.b16 %v3431
    %v4113 = vunpack.c.l.b16 %v3432
    %v4114 = vunpack.c.h.b16 %v3432
    %v4115 = vunpack.c.l.b16 %v3433
    %v4116 = vunpack.c.h.b16 %v3433
    %v4117 = vunpack.c.l.b16 %v3434
    %v4118 = vunpack.c.h.b16 %v3434
    %v4119 = vunpack.c.l.b16 %v3435
    %v4120 = vunpack.c.h.b16 %v3435
    %v4121 = vunpack.c.l.b16 %v3436
    %v4122 = vunpack.c.h.b16 %v3436
    %v4123 = vunpack.c.l.b16 %v3437
    %v4124 = vunpack.c.h.b16 %v3437
    %v4125 = vunpack.c.l.b16 %v3438
    %v4126 = vunpack.c.h.b16 %v3438
    %v4127 = vunpack.c.l.b16 %v3439
    %v4128 = vunpack.c.h.b16 %v3439
    %v4129 = vunpack.c.l.b16 %v3440
    %v4130 = vunpack.c.h.b16 %v3440
    %v4131 = vunpack.c.l.b16 %v3441
    %v4132 = vunpack.c.h.b16 %v3441
    %v4133 = vunpack.c.l.b16 %v3442
    %v4134 = vunpack.c.h.b16 %v3442
    %v4135 = vunpack.c.l.b16 %v3443
    %v4136 = vunpack.c.h.b16 %v3443
    %v4137 = vunpack.c.l.b16 %v3444
    %v4138 = vunpack.c.h.b16 %v3444
    %v4139 = vunpack.c.l.b16 %v3445
    %v4140 = vunpack.c.h.b16 %v3445
    %v4141 = vunpack.c.l.b16 %v3446
    %v4142 = vunpack.c.h.b16 %v3446
    %v4143 = vunpack.c.l.b16 %v3447
    %v4144 = vunpack.c.h.b16 %v3447
    %v4145 = vunpack.c.l.b16 %v3448
    %v4146 = vunpack.c.h.b16 %v3448
    %v4147 = vunpack.c.l.b16 %v3449
    %v4148 = vunpack.c.h.b16 %v3449
    %v4149 = vunpack.c.l.b16 %v3450
    %v4150 = vunpack.c.h.b16 %v3450
    %v4151 = vunpack.c.l.b16 %v3451
    %v4152 = vunpack.c.h.b16 %v3451
    %v4153 = vunpack.c.l.b16 %v3452
    %v4154 = vunpack.c.h.b16 %v3452
    %v4155 = vunpack.c.l.b16 %v3453
    %v4156 = vunpack.c.h.b16 %v3453
    %v4157 = vunpack.c.l.b16 %v3454
    %v4158 = vunpack.c.h.b16 %v3454
    %v4159 = vunpack.c.l.b16 %v3455
    %v4160 = vunpack.c.h.b16 %v3455
    %v4161 = vunpack.c.l.b16 %v3456
    %v4162 = vunpack.c.h.b16 %v3456
    %v4163 = vunpack.c.l.b16 %v3457
    %v4164 = vunpack.c.h.b16 %v3457
    %v4165 = vunpack.c.l.b16 %v3458
    %v4166 = vunpack.c.h.b16 %v3458
    %v4167 = vunpack.c.l.b16 %v3459
    %v4168 = vunpack.c.h.b16 %v3459
    %v4169 = vunpack.c.l.b16 %v3460
    %v4170 = vunpack.c.h.b16 %v3460
    %v4171 = vunpack.c.l.b16 %v3461
    %v4172 = vunpack.c.h.b16 %v3461
    %v4173 = vunpack.c.l.b16 %v3462
    %v4174 = vunpack.c.h.b16 %v3462
    %v4175 = vunpack.c.l.b16 %v3463
    %v4176 = vunpack.c.h.b16 %v3463
    %v4177 = vunpack.c.l.b16 %v3464
    %v4178 = vunpack.c.h.b16 %v3464
    %v4179 = vunpack.c.l.b16 %v3465
    %v4180 = vunpack.c.h.b16 %v3465
    %v4181 = vunpack.c.l.b16 %v3466
    %v4182 = vunpack.c.h.b16 %v3466
    %v4183 = vunpack.c.l.b16 %v3467
    %v4184 = vunpack.c.h.b16 %v3467
    %v4185 = vunpack.c.l.b16 %v3468
    %v4186 = vunpack.c.h.b16 %v3468
    %v4187 = vunpack.c.l.b16 %v3469
    %v4188 = vunpack.c.h.b16 %v3469
    %v4189 = vunpack.c.l.b16 %v3470
    %v4190 = vunpack.c.h.b16 %v3470
    %v4191 = vunpack.c.l.b16 %v3471
    %v4192 = vunpack.c.h.b16 %v3471
    %v4193 = vunpack.c.l.b16 %v3472
    %v4194 = vunpack.c.h.b16 %v3472
    %v4195 = vunpack.c.l.b16 %v3473
    %v4196 = vunpack.c.h.b16 %v3473
    %v4197 = vunpack.c.l.b16 %v3474
    %v4198 = vunpack.c.h.b16 %v3474
    %v4199 = vunpack.c.l.b16 %v3475
    %v4200 = vunpack.c.h.b16 %v3475
    %v4201 = vunpack.c.l.b16 %v3476
    %v4202 = vunpack.c.h.b16 %v3476
    %v4203 = vunpack.c.l.b16 %v3477
    %v4204 = vunpack.c.h.b16 %v3477
    %v4205 = vunpack.c.l.b16 %v3478
    %v4206 = vunpack.c.h.b16 %v3478
    %v4207 = vunpack.c.l.b16 %v3479
    %v4208 = vunpack.c.h.b16 %v3479
    %v4209 = vunpack.c.l.b16 %v3480
    %v4210 = vunpack.c.h.b16 %v3480
    %v4211 = vunpack.c.l.b16 %v3481
    %v4212 = vunpack.c.h.b16 %v3481
    %v4213 = vunpack.c.l.b16 %v3482
    %v4214 = vunpack.c.h.b16 %v3482
    %v4215 = vunpack.c.l.b16 %v3483
    %v4216 = vunpack.c.h.b16 %v3483
    %v4217 = vunpack.c.l.b16 %v3484
    %v4218 = vunpack.c.h.b16 %v3484
    %v4219 = vunpack.c.l.b16 %v3485
    %v4220 = vunpack.c.h.b16 %v3485
    %v4221 = vunpack.c.l.b16 %v3486
    %v4222 = vunpack.c.h.b16 %v3486
    %v4223 = vunpack.c.l.b16 %v3487
    %v4224 = vunpack.c.h.b16 %v3487
    %v4225 = vunpack.c.l.b16 %v3488
    %v4226 = vunpack.c.h.b16 %v3488
    %v4227 = vunpack.c.l.b16 %v3489
    %v4228 = vunpack.c.h.b16 %v3489
    %v4229 = vunpack.c.l.b16 %v3490
    %v4230 = vunpack.c.h.b16 %v3490
    %v4231 = vunpack.c.l.b16 %v3491
    %v4232 = vunpack.c.h.b16 %v3491
    %v4233 = vunpack.c.l.b16 %v3492
    %v4234 = vunpack.c.h.b16 %v3492
    %v4235 = vunpack.c.l.b16 %v3493
    %v4236 = vunpack.c.h.b16 %v3493
    %v4237 = vunpack.c.l.b16 %v3494
    %v4238 = vunpack.c.h.b16 %v3494
    %v4239 = vunpack.c.l.b16 %v3495
    %v4240 = vunpack.c.h.b16 %v3495
    %v4241 = vunpack.c.l.b16 %v3496
    %v4242 = vunpack.c.h.b16 %v3496
    %v4243 = vunpack.c.l.b16 %v3497
    %v4244 = vunpack.c.h.b16 %v3497
    %v4245 = vunpack.c.l.b16 %v3498
    %v4246 = vunpack.c.h.b16 %v3498
    %v4247 = vunpack.c.l.b16 %v3499
    %v4248 = vunpack.c.h.b16 %v3499
    %v4249 = vunpack.c.l.b16 %v3500
    %v4250 = vunpack.c.h.b16 %v3500
    %v4251 = vunpack.c.l.b16 %v3501
    %v4252 = vunpack.c.h.b16 %v3501
    %v4253 = vunpack.c.l.b16 %v3502
    %v4254 = vunpack.c.h.b16 %v3502
    %v4255 = vunpack.c.l.b16 %v3503
    %v4256 = vunpack.c.h.b16 %v3503
    %v4257 = vunpack.c.l.b16 %v3504
    %v4258 = vunpack.c.h.b16 %v3504
    %v4259 = vunpack.c.l.b16 %v3505
    %v4260 = vunpack.c.h.b16 %v3505
    %v4261 = vunpack.c.l.b16 %v3506
    %v4262 = vunpack.c.h.b16 %v3506
    %v4263 = vunpack.c.l.b16 %v3507
    %v4264 = vunpack.c.h.b16 %v3507
    %v4265 = vunpack.c.l.b16 %v3508
    %v4266 = vunpack.c.h.b16 %v3508
    %v4267 = vunpack.c.l.b16 %v3509
    %v4268 = vunpack.c.h.b16 %v3509
    %v4269 = vunpack.c.l.b16 %v3510
    %v4270 = vunpack.c.h.b16 %v3510
    %v4271 = vunpack.c.l.b16 %v3511
    %v4272 = vunpack.c.h.b16 %v3511
    %v4273 = vunpack.c.l.b16 %v3512
    %v4274 = vunpack.c.h.b16 %v3512
    %v4275 = vunpack.c.l.b16 %v3513
    %v4276 = vunpack.c.h.b16 %v3513
    %v4277 = vunpack.c.l.b16 %v3514
    %v4278 = vunpack.c.h.b16 %v3514
    %v4279 = vunpack.c.l.b16 %v3515
    %v4280 = vunpack.c.h.b16 %v3515
    %v4281 = vunpack.c.l.b16 %v3516
    %v4282 = vunpack.c.h.b16 %v3516
    %v4283 = vunpack.c.l.b16 %v3517
    %v4284 = vunpack.c.h.b16 %v3517
    %v4285 = vunpack.c.l.b16 %v3518
    %v4286 = vunpack.c.h.b16 %v3518
    %v4287 = vunpack.c.l.b16 %v3519
    %v4288 = vunpack.c.h.b16 %v3519
    %v4289 = vunpack.c.l.b16 %v3520
    %v4290 = vunpack.c.h.b16 %v3520
    %v4291 = vunpack.c.l.b16 %v3521
    %v4292 = vunpack.c.h.b16 %v3521
    %v4293 = vunpack.c.l.b16 %v3522
    %v4294 = vunpack.c.h.b16 %v3522
    %v4295 = vunpack.c.l.b16 %v3523
    %v4296 = vunpack.c.h.b16 %v3523
    %v4297 = vunpack.c.l.b16 %v3524
    %v4298 = vunpack.c.h.b16 %v3524
    %v4299 = vunpack.c.l.b16 %v3525
    %v4300 = vunpack.c.h.b16 %v3525
    %v4301 = vunpack.c.l.b16 %v3526
    %v4302 = vunpack.c.h.b16 %v3526
    %v4303 = vunpack.c.l.b16 %v3527
    %v4304 = vunpack.c.h.b16 %v3527
    %v4305 = vunpack.c.l.b16 %v3528
    %v4306 = vunpack.c.h.b16 %v3528
    %v4307 = vunpack.c.l.b16 %v3529
    %v4308 = vunpack.c.h.b16 %v3529
    %v4309 = vunpack.c.l.b16 %v3530
    %v4310 = vunpack.c.h.b16 %v3530
    %v4311 = vunpack.c.l.b16 %v3531
    %v4312 = vunpack.c.h.b16 %v3531
    %v4313 = vunpack.c.l.b16 %v3532
    %v4314 = vunpack.c.h.b16 %v3532
    %v4315 = vunpack.c.l.b16 %v3533
    %v4316 = vunpack.c.h.b16 %v3533
    %v4317 = vunpack.c.l.b16 %v3534
    %v4318 = vunpack.c.h.b16 %v3534
    %v4319 = vunpack.c.l.b16 %v3535
    %v4320 = vunpack.c.h.b16 %v3535
    %v4321 = vunpack.c.l.b16 %v3536
    %v4322 = vunpack.c.h.b16 %v3536
    %v4323 = vunpack.c.l.b16 %v3537
    %v4324 = vunpack.c.h.b16 %v3537
    %v4325 = vunpack.c.l.b16 %v3538
    %v4326 = vunpack.c.h.b16 %v3538
    %v4327 = vunpack.c.l.b16 %v3539
    %v4328 = vunpack.c.h.b16 %v3539
    %v4329 = vunpack.c.l.b16 %v3540
    %v4330 = vunpack.c.h.b16 %v3540
    %v4331 = vpack.c.b16 %v3823, %v3819
    %v4332 = vpack.c.b16 %v3824, %v3820
    %v4333 = vpack.c.b16 %v3825, %v3821
    %v4334 = vpack.c.b16 %v3826, %v3822
    %v4335 = vpack.c.b16 %v3831, %v3827
    %v4336 = vpack.c.b16 %v3832, %v3828
    %v4337 = vpack.c.b16 %v3833, %v3829
    %v4338 = vpack.c.b16 %v3834, %v3830
    %v4339 = vpack.c.b16 %v3839, %v3835
    %v4340 = vpack.c.b16 %v3840, %v3836
    %v4341 = vpack.c.b16 %v3841, %v3837
    %v4342 = vpack.c.b16 %v3842, %v3838
    %v4343 = vpack.c.b16 %v3847, %v3843
    %v4344 = vpack.c.b16 %v3848, %v3844
    %v4345 = vpack.c.b16 %v3849, %v3845
    %v4346 = vpack.c.b16 %v3850, %v3846
    %v4347 = vpack.c.b16 %v3855, %v3851
    %v4348 = vpack.c.b16 %v3856, %v3852
    %v4349 = vpack.c.b16 %v3857, %v3853
    %v4350 = vpack.c.b16 %v3858, %v3854
    %v4351 = vpack.c.b16 %v3863, %v3859
    %v4352 = vpack.c.b16 %v3864, %v3860
    %v4353 = vpack.c.b16 %v3865, %v3861
    %v4354 = vpack.c.b16 %v3866, %v3862
    %v4355 = vpack.c.b16 %v3871, %v3867
    %v4356 = vpack.c.b16 %v3872, %v3868
    %v4357 = vpack.c.b16 %v3873, %v3869
    %v4358 = vpack.c.b16 %v3874, %v3870
    %v4359 = vpack.c.b16 %v3879, %v3875
    %v4360 = vpack.c.b16 %v3880, %v3876
    %v4361 = vpack.c.b16 %v3881, %v3877
    %v4362 = vpack.c.b16 %v3882, %v3878
    %v4363 = vpack.c.b16 %v3887, %v3883
    %v4364 = vpack.c.b16 %v3888, %v3884
    %v4365 = vpack.c.b16 %v3889, %v3885
    %v4366 = vpack.c.b16 %v3890, %v3886
    %v4367 = vpack.c.b16 %v3895, %v3891
    %v4368 = vpack.c.b16 %v3896, %v3892
    %v4369 = vpack.c.b16 %v3897, %v3893
    %v4370 = vpack.c.b16 %v3898, %v3894
    %v4371 = vpack.c.b16 %v3903, %v3899
    %v4372 = vpack.c.b16 %v3904, %v3900
    %v4373 = vpack.c.b16 %v3905, %v3901
    %v4374 = vpack.c.b16 %v3906, %v3902
    %v4375 = vpack.c.b16 %v3911, %v3907
    %v4376 = vpack.c.b16 %v3912, %v3908
    %v4377 = vpack.c.b16 %v3913, %v3909
    %v4378 = vpack.c.b16 %v3914, %v3910
    %v4379 = vpack.c.b16 %v3919, %v3915
    %v4380 = vpack.c.b16 %v3920, %v3916
    %v4381 = vpack.c.b16 %v3921, %v3917
    %v4382 = vpack.c.b16 %v3922, %v3918
    %v4383 = vpack.c.b16 %v3927, %v3923
    %v4384 = vpack.c.b16 %v3928, %v3924
    %v4385 = vpack.c.b16 %v3929, %v3925
    %v4386 = vpack.c.b16 %v3930, %v3926
    %v4387 = vpack.c.b16 %v3935, %v3931
    %v4388 = vpack.c.b16 %v3936, %v3932
    %v4389 = vpack.c.b16 %v3937, %v3933
    %v4390 = vpack.c.b16 %v3938, %v3934
    %v4391 = vpack.c.b16 %v3943, %v3939
    %v4392 = vpack.c.b16 %v3944, %v3940
    %v4393 = vpack.c.b16 %v3945, %v3941
    %v4394 = vpack.c.b16 %v3946, %v3942
    %v4395 = vpack.c.b16 %v3951, %v3947
    %v4396 = vpack.c.b16 %v3952, %v3948
    %v4397 = vpack.c.b16 %v3953, %v3949
    %v4398 = vpack.c.b16 %v3954, %v3950
    %v4399 = vpack.c.b16 %v3959, %v3955
    %v4400 = vpack.c.b16 %v3960, %v3956
    %v4401 = vpack.c.b16 %v3961, %v3957
    %v4402 = vpack.c.b16 %v3962, %v3958
    %v4403 = vpack.c.b16 %v3967, %v3963
    %v4404 = vpack.c.b16 %v3968, %v3964
    %v4405 = vpack.c.b16 %v3969, %v3965
    %v4406 = vpack.c.b16 %v3970, %v3966
    %v4407 = vpack.c.b16 %v3975, %v3971
    %v4408 = vpack.c.b16 %v3976, %v3972
    %v4409 = vpack.c.b16 %v3977, %v3973
    %v4410 = vpack.c.b16 %v3978, %v3974
    %v4411 = vpack.c.b16 %v3983, %v3979
    %v4412 = vpack.c.b16 %v3984, %v3980
    %v4413 = vpack.c.b16 %v3985, %v3981
    %v4414 = vpack.c.b16 %v3986, %v3982
    %v4415 = vpack.c.b16 %v3991, %v3987
    %v4416 = vpack.c.b16 %v3992, %v3988
    %v4417 = vpack.c.b16 %v3993, %v3989
    %v4418 = vpack.c.b16 %v3994, %v3990
    %v4419 = vpack.c.b16 %v3999, %v3995
    %v4420 = vpack.c.b16 %v4000, %v3996
    %v4421 = vpack.c.b16 %v4001, %v3997
    %v4422 = vpack.c.b16 %v4002, %v3998
    %v4423 = vpack.c.b16 %v4007, %v4003
    %v4424 = vpack.c.b16 %v4008, %v4004
    %v4425 = vpack.c.b16 %v4009, %v4005
    %v4426 = vpack.c.b16 %v4010, %v4006
    %v4427 = vpack.c.b16 %v4015, %v4011
    %v4428 = vpack.c.b16 %v4016, %v4012
    %v4429 = vpack.c.b16 %v4017, %v4013
    %v4430 = vpack.c.b16 %v4018, %v4014
    %v4431 = vpack.c.b16 %v4023, %v4019
    %v4432 = vpack.c.b16 %v4024, %v4020
    %v4433 = vpack.c.b16 %v4025, %v4021
    %v4434 = vpack.c.b16 %v4026, %v4022
    %v4435 = vpack.c.b16 %v4031, %v4027
    %v4436 = vpack.c.b16 %v4032, %v4028
    %v4437 = vpack.c.b16 %v4033, %v4029
    %v4438 = vpack.c.b16 %v4034, %v4030
    %v4439 = vpack.c.b16 %v4039, %v4035
    %v4440 = vpack.c.b16 %v4040, %v4036
    %v4441 = vpack.c.b16 %v4041, %v4037
    %v4442 = vpack.c.b16 %v4042, %v4038
    %v4443 = vpack.c.b16 %v4047, %v4043
    %v4444 = vpack.c.b16 %v4048, %v4044
    %v4445 = vpack.c.b16 %v4049, %v4045
    %v4446 = vpack.c.b16 %v4050, %v4046
    %v4447 = vpack.c.b16 %v4055, %v4051
    %v4448 = vpack.c.b16 %v4056, %v4052
    %v4449 = vpack.c.b16 %v4057, %v4053
    %v4450 = vpack.c.b16 %v4058, %v4054
    %v4451 = vpack.c.b16 %v4063, %v4059
    %v4452 = vpack.c.b16 %v4064, %v4060
    %v4453 = vpack.c.b16 %v4065, %v4061
    %v4454 = vpack.c.b16 %v4066, %v4062
    %v4455 = vpack.c.b16 %v4071, %v4067
    %v4456 = vpack.c.b16 %v4072, %v4068
    %v4457 = vpack.c.b16 %v4073, %v4069
    %v4458 = vpack.c.b16 %v4074, %v4070
    %v4459 = vpack.c.b16 %v4079, %v4075
    %v4460 = vpack.c.b16 %v4080, %v4076
    %v4461 = vpack.c.b16 %v4081, %v4077
    %v4462 = vpack.c.b16 %v4082, %v4078
    %v4463 = vpack.c.b16 %v4087, %v4083
    %v4464 = vpack.c.b16 %v4088, %v4084
    %v4465 = vpack.c.b16 %v4089, %v4085
    %v4466 = vpack.c.b16 %v4090, %v4086
    %v4467 = vpack.c.b16 %v4095, %v4091
    %v4468 = vpack.c.b16 %v4096, %v4092
    %v4469 = vpack.c.b16 %v4097, %v4093
    %v4470 = vpack.c.b16 %v4098, %v4094
    %v4471 = vpack.c.b16 %v4103, %v4099
    %v4472 = vpack.c.b16 %v4104, %v4100
    %v4473 = vpack.c.b16 %v4105, %v4101
    %v4474 = vpack.c.b16 %v4106, %v4102
    %v4475 = vpack.c.b16 %v4111, %v4107
    %v4476 = vpack.c.b16 %v4112, %v4108
    %v4477 = vpack.c.b16 %v4113, %v4109
    %v4478 = vpack.c.b16 %v4114, %v4110
    %v4479 = vpack.c.b16 %v4119, %v4115
    %v4480 = vpack.c.b16 %v4120, %v4116
    %v4481 = vpack.c.b16 %v4121, %v4117
    %v4482 = vpack.c.b16 %v4122, %v4118
    %v4483 = vpack.c.b16 %v4127, %v4123
    %v4484 = vpack.c.b16 %v4128, %v4124
    %v4485 = vpack.c.b16 %v4129, %v4125
    %v4486 = vpack.c.b16 %v4130, %v4126
    %v4487 = vpack.c.b16 %v4135, %v4131
    %v4488 = vpack.c.b16 %v4136, %v4132
    %v4489 = vpack.c.b16 %v4137, %v4133
    %v4490 = vpack.c.b16 %v4138, %v4134
    %v4491 = vpack.c.b16 %v4143, %v4139
    %v4492 = vpack.c.b16 %v4144, %v4140
    %v4493 = vpack.c.b16 %v4145, %v4141
    %v4494 = vpack.c.b16 %v4146, %v4142
    %v4495 = vpack.c.b16 %v4151, %v4147
    %v4496 = vpack.c.b16 %v4152, %v4148
    %v4497 = vpack.c.b16 %v4153, %v4149
    %v4498 = vpack.c.b16 %v4154, %v4150
    %v4499 = vpack.c.b16 %v4159, %v4155
    %v4500 = vpack.c.b16 %v4160, %v4156
    %v4501 = vpack.c.b16 %v4161, %v4157
    %v4502 = vpack.c.b16 %v4162, %v4158
    %v4503 = vpack.c.b16 %v4167, %v4163
    %v4504 = vpack.c.b16 %v4168, %v4164
    %v4505 = vpack.c.b16 %v4169, %v4165
    %v4506 = vpack.c.b16 %v4170, %v4166
    %v4507 = vpack.c.b16 %v4175, %v4171
    %v4508 = vpack.c.b16 %v4176, %v4172
    %v4509 = vpack.c.b16 %v4177, %v4173
    %v4510 = vpack.c.b16 %v4178, %v4174
    %v4511 = vpack.c.b16 %v4183, %v4179
    %v4512 = vpack.c.b16 %v4184, %v4180
    %v4513 = vpack.c.b16 %v4185, %v4181
    %v4514 = vpack.c.b16 %v4186, %v4182
    %v4515 = vpack.c.b16 %v4191, %v4187
    %v4516 = vpack.c.b16 %v4192, %v4188
    %v4517 = vpack.c.b16 %v4193, %v4189
    %v4518 = vpack.c.b16 %v4194, %v4190
    %v4519 = vpack.c.b16 %v4199, %v4195
    %v4520 = vpack.c.b16 %v4200, %v4196
    %v4521 = vpack.c.b16 %v4201, %v4197
    %v4522 = vpack.c.b16 %v4202, %v4198
    %v4523 = vpack.c.b16 %v4207, %v4203
    %v4524 = vpack.c.b16 %v4208, %v4204
    %v4525 = vpack.c.b16 %v4209, %v4205
    %v4526 = vpack.c.b16 %v4210, %v4206
    %v4527 = vpack.c.b16 %v4215, %v4211
    %v4528 = vpack.c.b16 %v4216, %v4212
    %v4529 = vpack.c.b16 %v4217, %v4213
    %v4530 = vpack.c.b16 %v4218, %v4214
    %v4531 = vpack.c.b16 %v4223, %v4219
    %v4532 = vpack.c.b16 %v4224, %v4220
    %v4533 = vpack.c.b16 %v4225, %v4221
    %v4534 = vpack.c.b16 %v4226, %v4222
    %v4535 = vpack.c.b16 %v4231, %v4227
    %v4536 = vpack.c.b16 %v4232, %v4228
    %v4537 = vpack.c.b16 %v4233, %v4229
    %v4538 = vpack.c.b16 %v4234, %v4230
    %v4539 = vpack.c.b16 %v4239, %v4235
    %v4540 = vpack.c.b16 %v4240, %v4236
    %v4541 = vpack.c.b16 %v4241, %v4237
    %v4542 = vpack.c.b16 %v4242, %v4238
    %v4543 = vpack.c.b16 %v4247, %v4243
    %v4544 = vpack.c.b16 %v4248, %v4244
    %v4545 = vpack.c.b16 %v4249, %v4245
    %v4546 = vpack.c.b16 %v4250, %v4246
    %v4547 = vpack.c.b16 %v4255, %v4251
    %v4548 = vpack.c.b16 %v4256, %v4252
    %v4549 = vpack.c.b16 %v4257, %v4253
    %v4550 = vpack.c.b16 %v4258, %v4254
    %v4551 = vpack.c.b16 %v4263, %v4259
    %v4552 = vpack.c.b16 %v4264, %v4260
    %v4553 = vpack.c.b16 %v4265, %v4261
    %v4554 = vpack.c.b16 %v4266, %v4262
    %v4555 = vpack.c.b16 %v4271, %v4267
    %v4556 = vpack.c.b16 %v4272, %v4268
    %v4557 = vpack.c.b16 %v4273, %v4269
    %v4558 = vpack.c.b16 %v4274, %v4270
    %v4559 = vpack.c.b16 %v4279, %v4275
    %v4560 = vpack.c.b16 %v4280, %v4276
    %v4561 = vpack.c.b16 %v4281, %v4277
    %v4562 = vpack.c.b16 %v4282, %v4278
    %v4563 = vpack.c.b16 %v4287, %v4283
    %v4564 = vpack.c.b16 %v4288, %v4284
    %v4565 = vpack.c.b16 %v4289, %v4285
    %v4566 = vpack.c.b16 %v4290, %v4286
    %v4567 = vpack.c.b16 %v4295, %v4291
    %v4568 = vpack.c.b16 %v4296, %v4292
    %v4569 = vpack.c.b16 %v4297, %v4293
    %v4570 = vpack.c.b16 %v4298, %v4294
    %v4571 = vpack.c.b16 %v4303, %v4299
    %v4572 = vpack.c.b16 %v4304, %v4300
    %v4573 = vpack.c.b16 %v4305, %v4301
    %v4574 = vpack.c.b16 %v4306, %v4302
    %v4575 = vpack.c.b16 %v4311, %v4307
    %v4576 = vpack.c.b16 %v4312, %v4308
    %v4577 = vpack.c.b16 %v4313, %v4309
    %v4578 = vpack.c.b16 %v4314, %v4310
    %v4579 = vpack.c.b16 %v4319, %v4315
    %v4580 = vpack.c.b16 %v4320, %v4316
    %v4581 = vpack.c.b16 %v4321, %v4317
    %v4582 = vpack.c.b16 %v4322, %v4318
    %v4583 = vpack.c.b16 %v4327, %v4323
    %v4584 = vpack.c.b16 %v4328, %v4324
    %v4585 = vpack.c.b16 %v4329, %v4325
    %v4586 = vpack.c.b16 %v4330, %v4326
    %4843 = vmatprep.subr.bf16.mxu0 %v4332
    %4844 = vmatpush1.bf16.msra.mxu0 %v4331
    %4845 = vmatprep.subr.bf16.mxu0 %v4336
    %4846 = vmatpush1.bf16.msra.mxu0 %v4335
    %4847 = vmatprep.subr.bf16.mxu0 %v4340
    %4848 = vmatpush1.bf16.msra.mxu0 %v4339
    %4849 = vmatprep.subr.bf16.mxu0 %v4344
    %4850 = vmatpush1.bf16.msra.mxu0 %v4343
    %4851 = vmatprep.subr.bf16.mxu0 %v4348
    %4852 = vmatpush1.bf16.msra.mxu0 %v4347
    %4853 = vmatprep.subr.bf16.mxu0 %v4352
    %4854 = vmatpush1.bf16.msra.mxu0 %v4351
    %4855 = vmatprep.subr.bf16.mxu0 %v4356
    %4856 = vmatpush1.bf16.msra.mxu0 %v4355
    %4857 = vmatprep.subr.bf16.mxu0 %v4360
    %4858 = vmatpush1.bf16.msra.mxu0 %v4359
    %4859 = vmatprep.subr.bf16.mxu0 %v4364
    %4860 = vmatpush1.bf16.msra.mxu0 %v4363
    %4861 = vmatprep.subr.bf16.mxu0 %v4368
    %4862 = vmatpush1.bf16.msra.mxu0 %v4367
    %4863 = vmatprep.subr.bf16.mxu0 %v4372
    %4864 = vmatpush1.bf16.msra.mxu0 %v4371
    %4865 = vmatprep.subr.bf16.mxu0 %v4376
    %4866 = vmatpush1.bf16.msra.mxu0 %v4375
    %4867 = vmatprep.subr.bf16.mxu0 %v4380
    %4868 = vmatpush1.bf16.msra.mxu0 %v4379
    %4869 = vmatprep.subr.bf16.mxu0 %v4384
    %4870 = vmatpush1.bf16.msra.mxu0 %v4383
    %4871 = vmatprep.subr.bf16.mxu0 %v4388
    %4872 = vmatpush1.bf16.msra.mxu0 %v4387
    %4873 = vmatprep.subr.bf16.mxu0 %v4392
    %4874 = vmatpush1.bf16.msra.mxu0 %v4391
    %4875 = vmatprep.mubr.bf16.mxu0 %v3278
    %4876 = vmatmul.mubr.bf16.gmra.mrb[0].mxu0 %v3277
    %v4877 = vpop.f32.mrb[0].mxu0
    %v4878 = vadd.f32 %v3546, %v4877
    %v4879 = vpop.f32.mrb[0].mxu0
    %v4880 = vadd.f32 %v3550, %v4879
    %v4881 = vpop.f32.mrb[0].mxu0
    %v4882 = vadd.f32 %v3546, %v4881
    %v4883 = vpop.f32.mrb[0].mxu0
    %v4884 = vadd.f32 %v3550, %v4883
    %4885 = vdwg.mxu0
    %4886 = vmatprep.subr.bf16.mxu0 %v4396
    %4887 = vmatpush1.bf16.msra.mxu0 %v4395
    %4888 = vmatprep.subr.bf16.mxu0 %v4400
    %4889 = vmatpush1.bf16.msra.mxu0 %v4399
    %4890 = vmatprep.subr.bf16.mxu0 %v4404
    %4891 = vmatpush1.bf16.msra.mxu0 %v4403
    %4892 = vmatprep.subr.bf16.mxu0 %v4408
    %4893 = vmatpush1.bf16.msra.mxu0 %v4407
    %4894 = vmatprep.subr.bf16.mxu0 %v4412
    %4895 = vmatpush1.bf16.msra.mxu0 %v4411
    %4896 = vmatprep.subr.bf16.mxu0 %v4416
    %4897 = vmatpush1.bf16.msra.mxu0 %v4415
    %4898 = vmatprep.subr.bf16.mxu0 %v4420
    %4899 = vmatpush1.bf16.msra.mxu0 %v4419
    %4900 = vmatprep.subr.bf16.mxu0 %v4424
    %4901 = vmatpush1.bf16.msra.mxu0 %v4423
    %4902 = vmatprep.subr.bf16.mxu0 %v4428
    %4903 = vmatpush1.bf16.msra.mxu0 %v4427
    %4904 = vmatprep.subr.bf16.mxu0 %v4432
    %4905 = vmatpush1.bf16.msra.mxu0 %v4431
    %4906 = vmatprep.subr.bf16.mxu0 %v4436
    %4907 = vmatpush1.bf16.msra.mxu0 %v4435
    %4908 = vmatprep.subr.bf16.mxu0 %v4440
    %4909 = vmatpush1.bf16.msra.mxu0 %v4439
    %4910 = vmatprep.subr.bf16.mxu0 %v4444
    %4911 = vmatpush1.bf16.msra.mxu0 %v4443
    %4912 = vmatprep.subr.bf16.mxu0 %v4448
    %4913 = vmatpush1.bf16.msra.mxu0 %v4447
    %4914 = vmatprep.subr.bf16.mxu0 %v4452
    %4915 = vmatpush1.bf16.msra.mxu0 %v4451
    %4916 = vmatprep.subr.bf16.mxu0 %v4456
    %4917 = vmatpush1.bf16.msra.mxu0 %v4455
    %4918 = vmatprep.mubr.bf16.mxu0 %v3280
    %4919 = vmatmul.mubr.bf16.gmra.mrb[0].mxu0 %v3279
    %v4920 = vpop.f32.mrb[0].mxu0
    %v4921 = vadd.f32 %v4878, %v4920
    %v4922 = vpop.f32.mrb[0].mxu0
    %v4923 = vadd.f32 %v4880, %v4922
    %v4924 = vpop.f32.mrb[0].mxu0
    %v4925 = vadd.f32 %v4882, %v4924
    %v4926 = vpop.f32.mrb[0].mxu0
    %v4927 = vadd.f32 %v4884, %v4926
    %4928 = vdwg.mxu0
    %4929 = vmatprep.subr.bf16.mxu0 %v4460
    %4930 = vmatpush1.bf16.msra.mxu0 %v4459
    %4931 = vmatprep.subr.bf16.mxu0 %v4464
    %4932 = vmatpush1.bf16.msra.mxu0 %v4463
    %4933 = vmatprep.subr.bf16.mxu0 %v4468
    %4934 = vmatpush1.bf16.msra.mxu0 %v4467
    %4935 = vmatprep.subr.bf16.mxu0 %v4472
    %4936 = vmatpush1.bf16.msra.mxu0 %v4471
    %4937 = vmatprep.subr.bf16.mxu0 %v4476
    %4938 = vmatpush1.bf16.msra.mxu0 %v4475
    %4939 = vmatprep.subr.bf16.mxu0 %v4480
    %4940 = vmatpush1.bf16.msra.mxu0 %v4479
    %4941 = vmatprep.subr.bf16.mxu0 %v4484
    %4942 = vmatpush1.bf16.msra.mxu0 %v4483
    %4943 = vmatprep.subr.bf16.mxu0 %v4488
    %4944 = vmatpush1.bf16.msra.mxu0 %v4487
    %4945 = vmatprep.subr.bf16.mxu0 %v4492
    %4946 = vmatpush1.bf16.msra.mxu0 %v4491
    %4947 = vmatprep.subr.bf16.mxu0 %v4496
    %4948 = vmatpush1.bf16.msra.mxu0 %v4495
    %4949 = vmatprep.subr.bf16.mxu0 %v4500
    %4950 = vmatpush1.bf16.msra.mxu0 %v4499
    %4951 = vmatprep.subr.bf16.mxu0 %v4504
    %4952 = vmatpush1.bf16.msra.mxu0 %v4503
    %4953 = vmatprep.subr.bf16.mxu0 %v4508
    %4954 = vmatpush1.bf16.msra.mxu0 %v4507
    %4955 = vmatprep.subr.bf16.mxu0 %v4512
    %4956 = vmatpush1.bf16.msra.mxu0 %v4511
    %4957 = vmatprep.subr.bf16.mxu0 %v4516
    %4958 = vmatpush1.bf16.msra.mxu0 %v4515
    %4959 = vmatprep.subr.bf16.mxu0 %v4520
    %4960 = vmatpush1.bf16.msra.mxu0 %v4519
    %4961 = vmatprep.mubr.bf16.mxu0 %v3282
    %4962 = vmatmul.mubr.bf16.gmra.mrb[0].mxu0 %v3281
    %v4963 = vpop.f32.mrb[0].mxu0
    %v4964 = vadd.f32 %v4921, %v4963
    %v4965 = vpop.f32.mrb[0].mxu0
    %v4966 = vadd.f32 %v4923, %v4965
    %v4967 = vpop.f32.mrb[0].mxu0
    %v4968 = vadd.f32 %v4925, %v4967
    %v4969 = vpop.f32.mrb[0].mxu0
    %v4970 = vadd.f32 %v4927, %v4969
    %4971 = vdwg.mxu0
    %4972 = vmatprep.subr.bf16.mxu0 %v4524
    %4973 = vmatpush1.bf16.msra.mxu0 %v4523
    %4974 = vmatprep.subr.bf16.mxu0 %v4528
    %4975 = vmatpush1.bf16.msra.mxu0 %v4527
    %4976 = vmatprep.subr.bf16.mxu0 %v4532
    %4977 = vmatpush1.bf16.msra.mxu0 %v4531
    %4978 = vmatprep.subr.bf16.mxu0 %v4536
    %4979 = vmatpush1.bf16.msra.mxu0 %v4535
    %4980 = vmatprep.subr.bf16.mxu0 %v4540
    %4981 = vmatpush1.bf16.msra.mxu0 %v4539
    %4982 = vmatprep.subr.bf16.mxu0 %v4544
    %4983 = vmatpush1.bf16.msra.mxu0 %v4543
    %4984 = vmatprep.subr.bf16.mxu0 %v4548
    %4985 = vmatpush1.bf16.msra.mxu0 %v4547
    %4986 = vmatprep.subr.bf16.mxu0 %v4552
    %4987 = vmatpush1.bf16.msra.mxu0 %v4551
    %4988 = vmatprep.subr.bf16.mxu0 %v4556
    %4989 = vmatpush1.bf16.msra.mxu0 %v4555
    %4990 = vmatprep.subr.bf16.mxu0 %v4560
    %4991 = vmatpush1.bf16.msra.mxu0 %v4559
    %4992 = vmatprep.subr.bf16.mxu0 %v4564
    %4993 = vmatpush1.bf16.msra.mxu0 %v4563
    %4994 = vmatprep.subr.bf16.mxu0 %v4568
    %4995 = vmatpush1.bf16.msra.mxu0 %v4567
    %4996 = vmatprep.subr.bf16.mxu0 %v4572
    %4997 = vmatpush1.bf16.msra.mxu0 %v4571
    %4998 = vmatprep.subr.bf16.mxu0 %v4576
    %4999 = vmatpush1.bf16.msra.mxu0 %v4575
    %5000 = vmatprep.subr.bf16.mxu0 %v4580
    %5001 = vmatpush1.bf16.msra.mxu0 %v4579
    %5002 = vmatprep.subr.bf16.mxu0 %v4584
    %5003 = vmatpush1.bf16.msra.mxu0 %v4583
    %5004 = vmatprep.mubr.bf16.mxu0 %v3284
    %5005 = vmatmul.mubr.bf16.gmra.mrb[0].mxu0 %v3283
    %v5006 = vpop.f32.mrb[0].mxu0
    %v5007 = vadd.f32 %v4964, %v5006
    %v5008 = vpop.f32.mrb[0].mxu0
    %v5009 = vadd.f32 %v4966, %v5008
    %v5010 = vpop.f32.mrb[0].mxu0
    %v5011 = vadd.f32 %v4968, %v5010
    %v5012 = vpop.f32.mrb[0].mxu0
    %v5013 = vadd.f32 %v4970, %v5012
    %5014 = vdwg.mxu0
    %5015 = vmatprep.subr.bf16.mxu0 %v4334
    %5016 = vmatpush1.bf16.msra.mxu0 %v4333
    %5017 = vmatprep.subr.bf16.mxu0 %v4338
    %5018 = vmatpush1.bf16.msra.mxu0 %v4337
    %5019 = vmatprep.subr.bf16.mxu0 %v4342
    %5020 = vmatpush1.bf16.msra.mxu0 %v4341
    %5021 = vmatprep.subr.bf16.mxu0 %v4346
    %5022 = vmatpush1.bf16.msra.mxu0 %v4345
    %5023 = vmatprep.subr.bf16.mxu0 %v4350
    %5024 = vmatpush1.bf16.msra.mxu0 %v4349
    %5025 = vmatprep.subr.bf16.mxu0 %v4354
    %5026 = vmatpush1.bf16.msra.mxu0 %v4353
    %5027 = vmatprep.subr.bf16.mxu0 %v4358
    %5028 = vmatpush1.bf16.msra.mxu0 %v4357
    %5029 = vmatprep.subr.bf16.mxu0 %v4362
    %5030 = vmatpush1.bf16.msra.mxu0 %v4361
    %5031 = vmatprep.subr.bf16.mxu0 %v4366
    %5032 = vmatpush1.bf16.msra.mxu0 %v4365
    %5033 = vmatprep.subr.bf16.mxu0 %v4370
    %5034 = vmatpush1.bf16.msra.mxu0 %v4369
    %5035 = vmatprep.subr.bf16.mxu0 %v4374
    %5036 = vmatpush1.bf16.msra.mxu0 %v4373
    %5037 = vmatprep.subr.bf16.mxu0 %v4378
    %5038 = vmatpush1.bf16.msra.mxu0 %v4377
    %5039 = vmatprep.subr.bf16.mxu0 %v4382
    %5040 = vmatpush1.bf16.msra.mxu0 %v4381
    %5041 = vmatprep.subr.bf16.mxu0 %v4386
    %5042 = vmatpush1.bf16.msra.mxu0 %v4385
    %5043 = vmatprep.subr.bf16.mxu0 %v4390
    %5044 = vmatpush1.bf16.msra.mxu0 %v4389
    %5045 = vmatprep.subr.bf16.mxu0 %v4394
    %5046 = vmatpush1.bf16.msra.mxu0 %v4393
    %5047 = vmatprep.mubr.bf16.mxu0 %v3278
    %5048 = vmatmul.mubr.bf16.gmra.mrb[0].mxu0 %v3277
    %v5049 = vpop.f32.mrb[0].mxu0
    %v5050 = vadd.f32 %v3554, %v5049
    %v5051 = vpop.f32.mrb[0].mxu0
    %v5052 = vadd.f32 %v3558, %v5051
    %v5053 = vpop.f32.mrb[0].mxu0
    %v5054 = vadd.f32 %v3554, %v5053
    %v5055 = vpop.f32.mrb[0].mxu0
    %v5056 = vadd.f32 %v3558, %v5055
    %5057 = vdwg.mxu0
    %5058 = vmatprep.subr.bf16.mxu0 %v4398
    %5059 = vmatpush1.bf16.msra.mxu0 %v4397
    %5060 = vmatprep.subr.bf16.mxu0 %v4402
    %5061 = vmatpush1.bf16.msra.mxu0 %v4401
    %5062 = vmatprep.subr.bf16.mxu0 %v4406
    %5063 = vmatpush1.bf16.msra.mxu0 %v4405
    %5064 = vmatprep.subr.bf16.mxu0 %v4410
    %5065 = vmatpush1.bf16.msra.mxu0 %v4409
    %5066 = vmatprep.subr.bf16.mxu0 %v4414
    %5067 = vmatpush1.bf16.msra.mxu0 %v4413
    %5068 = vmatprep.subr.bf16.mxu0 %v4418
    %5069 = vmatpush1.bf16.msra.mxu0 %v4417
    %5070 = vmatprep.subr.bf16.mxu0 %v4422
    %5071 = vmatpush1.bf16.msra.mxu0 %v4421
    %5072 = vmatprep.subr.bf16.mxu0 %v4426
    %5073 = vmatpush1.bf16.msra.mxu0 %v4425
    %5074 = vmatprep.subr.bf16.mxu0 %v4430
    %5075 = vmatpush1.bf16.msra.mxu0 %v4429
    %5076 = vmatprep.subr.bf16.mxu0 %v4434
    %5077 = vmatpush1.bf16.msra.mxu0 %v4433
    %5078 = vmatprep.subr.bf16.mxu0 %v4438
    %5079 = vmatpush1.bf16.msra.mxu0 %v4437
    %5080 = vmatprep.subr.bf16.mxu0 %v4442
    %5081 = vmatpush1.bf16.msra.mxu0 %v4441
    %5082 = vmatprep.subr.bf16.mxu0 %v4446
    %5083 = vmatpush1.bf16.msra.mxu0 %v4445
    %5084 = vmatprep.subr.bf16.mxu0 %v4450
    %5085 = vmatpush1.bf16.msra.mxu0 %v4449
    %5086 = vmatprep.subr.bf16.mxu0 %v4454
    %5087 = vmatpush1.bf16.msra.mxu0 %v4453
    %5088 = vmatprep.subr.bf16.mxu0 %v4458
    %5089 = vmatpush1.bf16.msra.mxu0 %v4457
    %5090 = vmatprep.mubr.bf16.mxu0 %v3280
    %5091 = vmatmul.mubr.bf16.gmra.mrb[0].mxu0 %v3279
    %v5092 = vpop.f32.mrb[0].mxu0
    %v5093 = vadd.f32 %v5050, %v5092
    %v5094 = vpop.f32.mrb[0].mxu0
    %v5095 = vadd.f32 %v5052, %v5094
    %v5096 = vpop.f32.mrb[0].mxu0
    %v5097 = vadd.f32 %v5054, %v5096
    %v5098 = vpop.f32.mrb[0].mxu0
    %v5099 = vadd.f32 %v5056, %v5098
    %5100 = vdwg.mxu0
    %5101 = vmatprep.subr.bf16.mxu0 %v4462
    %5102 = vmatpush1.bf16.msra.mxu0 %v4461
    %5103 = vmatprep.subr.bf16.mxu0 %v4466
    %5104 = vmatpush1.bf16.msra.mxu0 %v4465
    %5105 = vmatprep.subr.bf16.mxu0 %v4470
    %5106 = vmatpush1.bf16.msra.mxu0 %v4469
    %5107 = vmatprep.subr.bf16.mxu0 %v4474
    %5108 = vmatpush1.bf16.msra.mxu0 %v4473
    %5109 = vmatprep.subr.bf16.mxu0 %v4478
    %5110 = vmatpush1.bf16.msra.mxu0 %v4477
    %5111 = vmatprep.subr.bf16.mxu0 %v4482
    %5112 = vmatpush1.bf16.msra.mxu0 %v4481
    %5113 = vmatprep.subr.bf16.mxu0 %v4486
    %5114 = vmatpush1.bf16.msra.mxu0 %v4485
    %5115 = vmatprep.subr.bf16.mxu0 %v4490
    %5116 = vmatpush1.bf16.msra.mxu0 %v4489
    %5117 = vmatprep.subr.bf16.mxu0 %v4494
    %5118 = vmatpush1.bf16.msra.mxu0 %v4493
    %5119 = vmatprep.subr.bf16.mxu0 %v4498
    %5120 = vmatpush1.bf16.msra.mxu0 %v4497
    %5121 = vmatprep.subr.bf16.mxu0 %v4502
    %5122 = vmatpush1.bf16.msra.mxu0 %v4501
    %5123 = vmatprep.subr.bf16.mxu0 %v4506
    %5124 = vmatpush1.bf16.msra.mxu0 %v4505
    %5125 = vmatprep.subr.bf16.mxu0 %v4510
    %5126 = vmatpush1.bf16.msra.mxu0 %v4509
    %5127 = vmatprep.subr.bf16.mxu0 %v4514
    %5128 = vmatpush1.bf16.msra.mxu0 %v4513
    %5129 = vmatprep.subr.bf16.mxu0 %v4518
    %5130 = vmatpush1.bf16.msra.mxu0 %v4517
    %5131 = vmatprep.subr.bf16.mxu0 %v4522
    %5132 = vmatpush1.bf16.msra.mxu0 %v4521
    %5133 = vmatprep.mubr.bf16.mxu0 %v3282
    %5134 = vmatmul.mubr.bf16.gmra.mrb[0].mxu0 %v3281
    %v5135 = vpop.f32.mrb[0].mxu0
    %v5136 = vadd.f32 %v5093, %v5135
    %v5137 = vpop.f32.mrb[0].mxu0
    %v5138 = vadd.f32 %v5095, %v5137
    %v5139 = vpop.f32.mrb[0].mxu0
    %v5140 = vadd.f32 %v5097, %v5139
    %v5141 = vpop.f32.mrb[0].mxu0
    %v5142 = vadd.f32 %v5099, %v5141
    %5143 = vdwg.mxu0
    %5144 = vmatprep.subr.bf16.mxu0 %v4526
    %5145 = vmatpush1.bf16.msra.mxu0 %v4525
    %5146 = vmatprep.subr.bf16.mxu0 %v4530
    %5147 = vmatpush1.bf16.msra.mxu0 %v4529
    %5148 = vmatprep.subr.bf16.mxu0 %v4534
    %5149 = vmatpush1.bf16.msra.mxu0 %v4533
    %5150 = vmatprep.subr.bf16.mxu0 %v4538
    %5151 = vmatpush1.bf16.msra.mxu0 %v4537
    %5152 = vmatprep.subr.bf16.mxu0 %v4542
    %5153 = vmatpush1.bf16.msra.mxu0 %v4541
    %5154 = vmatprep.subr.bf16.mxu0 %v4546
    %5155 = vmatpush1.bf16.msra.mxu0 %v4545
    %5156 = vmatprep.subr.bf16.mxu0 %v4550
    %5157 = vmatpush1.bf16.msra.mxu0 %v4549
    %5158 = vmatprep.subr.bf16.mxu0 %v4554
    %5159 = vmatpush1.bf16.msra.mxu0 %v4553
    %5160 = vmatprep.subr.bf16.mxu0 %v4558
    %5161 = vmatpush1.bf16.msra.mxu0 %v4557
    %5162 = vmatprep.subr.bf16.mxu0 %v4562
    %5163 = vmatpush1.bf16.msra.mxu0 %v4561
    %5164 = vmatprep.subr.bf16.mxu0 %v4566
    %5165 = vmatpush1.bf16.msra.mxu0 %v4565
    %5166 = vmatprep.subr.bf16.mxu0 %v4570
    %5167 = vmatpush1.bf16.msra.mxu0 %v4569
    %5168 = vmatprep.subr.bf16.mxu0 %v4574
    %5169 = vmatpush1.bf16.msra.mxu0 %v4573
    %5170 = vmatprep.subr.bf16.mxu0 %v4578
    %5171 = vmatpush1.bf16.msra.mxu0 %v4577
    %5172 = vmatprep.subr.bf16.mxu0 %v4582
    %5173 = vmatpush1.bf16.msra.mxu0 %v4581
    %5174 = vmatprep.subr.bf16.mxu0 %v4586
    %5175 = vmatpush1.bf16.msra.mxu0 %v4585
    %5176 = vmatprep.mubr.bf16.mxu0 %v3284
    %5177 = vmatmul.mubr.bf16.gmra.mrb[0].mxu0 %v3283
    %v5178 = vpop.f32.mrb[0].mxu0
    %v5179 = vadd.f32 %v5136, %v5178
    %v5180 = vpop.f32.mrb[0].mxu0
    %v5181 = vadd.f32 %v5138, %v5180
    %v5182 = vpop.f32.mrb[0].mxu0
    %v5183 = vadd.f32 %v5140, %v5182
    %v5184 = vpop.f32.mrb[0].mxu0
    %v5185 = vadd.f32 %v5142, %v5184
    %5186 = vdwg.mxu0
    %vm5187 = vcmp.gt.f32.partialorder %v5007, 0.0
    %vm5188 = vcmp.gt.f32.partialorder %v5009, 0.0
    %vm5189 = vcmp.gt.f32.partialorder %v5179, 0.0
    %vm5190 = vcmp.gt.f32.partialorder %v5181, 0.0
    %vm5191 = vcmp.gt.f32.partialorder %v5011, 0.0
    %vm5192 = vcmp.gt.f32.partialorder %v5013, 0.0
    %vm5193 = vcmp.gt.f32.partialorder %v5183, 0.0
    %vm5194 = vcmp.gt.f32.partialorder %v5185, 0.0
    %v5195 = vmul.f32 %v5007, 0.2
    %v5196 = vmul.f32 %v5009, 0.2
    %v5197 = vmul.f32 %v5179, 0.2
    %v5198 = vmul.f32 %v5181, 0.2
    %v5199 = vmul.f32 %v5011, 0.2
    %v5200 = vmul.f32 %v5013, 0.2
    %v5201 = vmul.f32 %v5183, 0.2
    %v5202 = vmul.f32 %v5185, 0.2
    %v5203 = vsel %vm5187, %v5007, %v5195
    %v5204 = vsel %vm5188, %v5009, %v5196
    %v5205 = vsel %vm5189, %v5179, %v5197
    %v5206 = vsel %vm5190, %v5181, %v5198
    %v5207 = vsel %vm5191, %v5011, %v5199
    %v5208 = vsel %vm5192, %v5013, %v5200
    %v5209 = vsel %vm5193, %v5183, %v5201
    %v5210 = vsel %vm5194, %v5185, %v5202
    %v5211 = vpack.c.bf16 %v5207, %v5203
    %v5212 = vpack.c.bf16 %v5208, %v5204
    %v5213 = vpack.c.bf16 %v5209, %v5205
    %v5214 = vpack.c.bf16 %v5210, %v5206
    %v5215 = vld [vmem:[#allocation10] sm:$0xff]
    %v5216 = vld [vmem:[#allocation10 + $0x8] sm:$0xff]
    %v5217 = vld [vmem:[#allocation10 + $0x10] sm:$0xff]
    %v5218 = vld [vmem:[#allocation10 + $0x18] sm:$0xff]
    %v5219 = vld [vmem:[#allocation10 + $0x20] sm:$0xff]
    %v5220 = vld [vmem:[#allocation10 + $0x28] sm:$0xff]
    %v5221 = vld [vmem:[#allocation10 + $0x30] sm:$0xff]
    %v5222 = vld [vmem:[#allocation10 + $0x38] sm:$0xff]
    %v5223 = vld [vmem:[#allocation10 + $0x40] sm:$0xff]
    %v5224 = vld [vmem:[#allocation10 + $0x48] sm:$0xff]
    %v5225 = vld [vmem:[#allocation10 + $0x50] sm:$0xff]
    %v5226 = vld [vmem:[#allocation10 + $0x58] sm:$0xff]
    %v5227 = vld [vmem:[#allocation10 + $0x60] sm:$0xff]
    %v5228 = vld [vmem:[#allocation10 + $0x68] sm:$0xff]
    %v5229 = vld [vmem:[#allocation10 + $0x70] sm:$0xff]
    %v5230 = vld [vmem:[#allocation10 + $0x78] sm:$0xff]
    %v5231 = vld [vmem:[#allocation10 + $0x80] sm:$0xff]
    %v5232 = vld [vmem:[#allocation10 + $0x88] sm:$0xff]
    %v5233 = vld [vmem:[#allocation10 + $0x90] sm:$0xff]
    %v5234 = vld [vmem:[#allocation10 + $0x98] sm:$0xff]
    %v5235 = vld [vmem:[#allocation10 + $0xa0] sm:$0xff]
    %v5236 = vld [vmem:[#allocation10 + $0xa8] sm:$0xff]
    %v5237 = vld [vmem:[#allocation10 + $0xb0] sm:$0xff]
    %v5238 = vld [vmem:[#allocation10 + $0xb8] sm:$0xff]
    %v5239 = vld [vmem:[#allocation10 + $0xc0] sm:$0xff]
    %v5240 = vld [vmem:[#allocation10 + $0xc8] sm:$0xff]
    %v5241 = vld [vmem:[#allocation10 + $0xd0] sm:$0xff]
    %v5242 = vld [vmem:[#allocation10 + $0xd8] sm:$0xff]
    %v5243 = vld [vmem:[#allocation10 + $0xe0] sm:$0xff]
    %v5244 = vld [vmem:[#allocation10 + $0xe8] sm:$0xff]
    %v5245 = vld [vmem:[#allocation10 + $0xf0] sm:$0xff]
    %v5246 = vld [vmem:[#allocation10 + $0xf8] sm:$0xff]
    %v5247 = vld [vmem:[#allocation10 + $0x100] sm:$0xff]
    %v5248 = vld [vmem:[#allocation10 + $0x108] sm:$0xff]
    %v5249 = vld [vmem:[#allocation10 + $0x110] sm:$0xff]
    %v5250 = vld [vmem:[#allocation10 + $0x118] sm:$0xff]
    %v5251 = vld [vmem:[#allocation10 + $0x120] sm:$0xff]
    %v5252 = vld [vmem:[#allocation10 + $0x128] sm:$0xff]
    %v5253 = vld [vmem:[#allocation10 + $0x130] sm:$0xff]
    %v5254 = vld [vmem:[#allocation10 + $0x138] sm:$0xff]
    %v5255 = vld [vmem:[#allocation10 + $0x140] sm:$0xff]
    %v5256 = vld [vmem:[#allocation10 + $0x148] sm:$0xff]
    %v5257 = vld [vmem:[#allocation10 + $0x150] sm:$0xff]
    %v5258 = vld [vmem:[#allocation10 + $0x158] sm:$0xff]
    %v5259 = vld [vmem:[#allocation10 + $0x160] sm:$0xff]
    %v5260 = vld [vmem:[#allocation10 + $0x168] sm:$0xff]
    %v5261 = vld [vmem:[#allocation10 + $0x170] sm:$0xff]
    %v5262 = vld [vmem:[#allocation10 + $0x178] sm:$0xff]
    %v5263 = vld [vmem:[#allocation10 + $0x180] sm:$0xff]
    %v5264 = vld [vmem:[#allocation10 + $0x188] sm:$0xff]
    %v5265 = vld [vmem:[#allocation10 + $0x190] sm:$0xff]
    %v5266 = vld [vmem:[#allocation10 + $0x198] sm:$0xff]
    %v5267 = vld [vmem:[#allocation10 + $0x1a0] sm:$0xff]
    %v5268 = vld [vmem:[#allocation10 + $0x1a8] sm:$0xff]
    %v5269 = vld [vmem:[#allocation10 + $0x1b0] sm:$0xff]
    %v5270 = vld [vmem:[#allocation10 + $0x1b8] sm:$0xff]
    %v5271 = vld [vmem:[#allocation10 + $0x1c0] sm:$0xff]
    %v5272 = vld [vmem:[#allocation10 + $0x1c8] sm:$0xff]
    %v5273 = vld [vmem:[#allocation10 + $0x1d0] sm:$0xff]
    %v5274 = vld [vmem:[#allocation10 + $0x1d8] sm:$0xff]
    %v5275 = vld [vmem:[#allocation10 + $0x1e0] sm:$0xff]
    %v5276 = vld [vmem:[#allocation10 + $0x1e8] sm:$0xff]
    %v5277 = vld [vmem:[#allocation10 + $0x1f0] sm:$0xff]
    %v5278 = vld [vmem:[#allocation10 + $0x1f8] sm:$0xff]
    %v5279 = vld [vmem:[#allocation11] sm:$0x3]
    %v5281 = vlaneseq
    %v5282 = vshrl.u32 %v5281, 7
    %v5283 = vsub.s32 0, %v5282
    %v5284 = vrot.slane %v5279, %v5283
    %v5285 = vlaneseq
    %v5286 = vshrl.u32 %v5285, 7
    %v5287 = vsub.s32 1, %v5286
    %v5288 = vrot.slane %v5279, %v5287
    %v5355 = vunpack.c.l.b16 %v5215
    %v5356 = vunpack.c.h.b16 %v5215
    %v5357 = vunpack.c.l.b16 %v5216
    %v5358 = vunpack.c.h.b16 %v5216
    %v5359 = vunpack.c.l.b16 %v5217
    %v5360 = vunpack.c.h.b16 %v5217
    %v5361 = vunpack.c.l.b16 %v5218
    %v5362 = vunpack.c.h.b16 %v5218
    %v5363 = vunpack.c.l.b16 %v5219
    %v5364 = vunpack.c.h.b16 %v5219
    %v5365 = vunpack.c.l.b16 %v5220
    %v5366 = vunpack.c.h.b16 %v5220
    %v5367 = vunpack.c.l.b16 %v5221
    %v5368 = vunpack.c.h.b16 %v5221
    %v5369 = vunpack.c.l.b16 %v5222
    %v5370 = vunpack.c.h.b16 %v5222
    %v5371 = vunpack.c.l.b16 %v5223
    %v5372 = vunpack.c.h.b16 %v5223
    %v5373 = vunpack.c.l.b16 %v5224
    %v5374 = vunpack.c.h.b16 %v5224
    %v5375 = vunpack.c.l.b16 %v5225
    %v5376 = vunpack.c.h.b16 %v5225
    %v5377 = vunpack.c.l.b16 %v5226
    %v5378 = vunpack.c.h.b16 %v5226
    %v5379 = vunpack.c.l.b16 %v5227
    %v5380 = vunpack.c.h.b16 %v5227
    %v5381 = vunpack.c.l.b16 %v5228
    %v5382 = vunpack.c.h.b16 %v5228
    %v5383 = vunpack.c.l.b16 %v5229
    %v5384 = vunpack.c.h.b16 %v5229
    %v5385 = vunpack.c.l.b16 %v5230
    %v5386 = vunpack.c.h.b16 %v5230
    %v5387 = vunpack.c.l.b16 %v5231
    %v5388 = vunpack.c.h.b16 %v5231
    %v5389 = vunpack.c.l.b16 %v5232
    %v5390 = vunpack.c.h.b16 %v5232
    %v5391 = vunpack.c.l.b16 %v5233
    %v5392 = vunpack.c.h.b16 %v5233
    %v5393 = vunpack.c.l.b16 %v5234
    %v5394 = vunpack.c.h.b16 %v5234
    %v5395 = vunpack.c.l.b16 %v5235
    %v5396 = vunpack.c.h.b16 %v5235
    %v5397 = vunpack.c.l.b16 %v5236
    %v5398 = vunpack.c.h.b16 %v5236
    %v5399 = vunpack.c.l.b16 %v5237
    %v5400 = vunpack.c.h.b16 %v5237
    %v5401 = vunpack.c.l.b16 %v5238
    %v5402 = vunpack.c.h.b16 %v5238
    %v5403 = vunpack.c.l.b16 %v5239
    %v5404 = vunpack.c.h.b16 %v5239
    %v5405 = vunpack.c.l.b16 %v5240
    %v5406 = vunpack.c.h.b16 %v5240
    %v5407 = vunpack.c.l.b16 %v5241
    %v5408 = vunpack.c.h.b16 %v5241
    %v5409 = vunpack.c.l.b16 %v5242
    %v5410 = vunpack.c.h.b16 %v5242
    %v5411 = vunpack.c.l.b16 %v5243
    %v5412 = vunpack.c.h.b16 %v5243
    %v5413 = vunpack.c.l.b16 %v5244
    %v5414 = vunpack.c.h.b16 %v5244
    %v5415 = vunpack.c.l.b16 %v5245
    %v5416 = vunpack.c.h.b16 %v5245
    %v5417 = vunpack.c.l.b16 %v5246
    %v5418 = vunpack.c.h.b16 %v5246
    %v5419 = vunpack.c.l.b16 %v5247
    %v5420 = vunpack.c.h.b16 %v5247
    %v5421 = vunpack.c.l.b16 %v5248
    %v5422 = vunpack.c.h.b16 %v5248
    %v5423 = vunpack.c.l.b16 %v5249
    %v5424 = vunpack.c.h.b16 %v5249
    %v5425 = vunpack.c.l.b16 %v5250
    %v5426 = vunpack.c.h.b16 %v5250
    %v5427 = vunpack.c.l.b16 %v5251
    %v5428 = vunpack.c.h.b16 %v5251
    %v5429 = vunpack.c.l.b16 %v5252
    %v5430 = vunpack.c.h.b16 %v5252
    %v5431 = vunpack.c.l.b16 %v5253
    %v5432 = vunpack.c.h.b16 %v5253
    %v5433 = vunpack.c.l.b16 %v5254
    %v5434 = vunpack.c.h.b16 %v5254
    %v5435 = vunpack.c.l.b16 %v5255
    %v5436 = vunpack.c.h.b16 %v5255
    %v5437 = vunpack.c.l.b16 %v5256
    %v5438 = vunpack.c.h.b16 %v5256
    %v5439 = vunpack.c.l.b16 %v5257
    %v5440 = vunpack.c.h.b16 %v5257
    %v5441 = vunpack.c.l.b16 %v5258
    %v5442 = vunpack.c.h.b16 %v5258
    %v5443 = vunpack.c.l.b16 %v5259
    %v5444 = vunpack.c.h.b16 %v5259
    %v5445 = vunpack.c.l.b16 %v5260
    %v5446 = vunpack.c.h.b16 %v5260
    %v5447 = vunpack.c.l.b16 %v5261
    %v5448 = vunpack.c.h.b16 %v5261
    %v5449 = vunpack.c.l.b16 %v5262
    %v5450 = vunpack.c.h.b16 %v5262
    %v5451 = vunpack.c.l.b16 %v5263
    %v5452 = vunpack.c.h.b16 %v5263
    %v5453 = vunpack.c.l.b16 %v5264
    %v5454 = vunpack.c.h.b16 %v5264
    %v5455 = vunpack.c.l.b16 %v5265
    %v5456 = vunpack.c.h.b16 %v5265
    %v5457 = vunpack.c.l.b16 %v5266
    %v5458 = vunpack.c.h.b16 %v5266
    %v5459 = vunpack.c.l.b16 %v5267
    %v5460 = vunpack.c.h.b16 %v5267
    %v5461 = vunpack.c.l.b16 %v5268
    %v5462 = vunpack.c.h.b16 %v5268
    %v5463 = vunpack.c.l.b16 %v5269
    %v5464 = vunpack.c.h.b16 %v5269
    %v5465 = vunpack.c.l.b16 %v5270
    %v5466 = vunpack.c.h.b16 %v5270
    %v5467 = vunpack.c.l.b16 %v5271
    %v5468 = vunpack.c.h.b16 %v5271
    %v5469 = vunpack.c.l.b16 %v5272
    %v5470 = vunpack.c.h.b16 %v5272
    %v5471 = vunpack.c.l.b16 %v5273
    %v5472 = vunpack.c.h.b16 %v5273
    %v5473 = vunpack.c.l.b16 %v5274
    %v5474 = vunpack.c.h.b16 %v5274
    %v5475 = vunpack.c.l.b16 %v5275
    %v5476 = vunpack.c.h.b16 %v5275
    %v5477 = vunpack.c.l.b16 %v5276
    %v5478 = vunpack.c.h.b16 %v5276
    %v5479 = vunpack.c.l.b16 %v5277
    %v5480 = vunpack.c.h.b16 %v5277
    %v5481 = vunpack.c.l.b16 %v5278
    %v5482 = vunpack.c.h.b16 %v5278
    %v5483 = vpack.c.b16 %v5357, %v5355
    %v5484 = vpack.c.b16 %v5358, %v5356
    %v5485 = vpack.c.b16 %v5361, %v5359
    %v5486 = vpack.c.b16 %v5362, %v5360
    %v5487 = vpack.c.b16 %v5365, %v5363
    %v5488 = vpack.c.b16 %v5366, %v5364
    %v5489 = vpack.c.b16 %v5369, %v5367
    %v5490 = vpack.c.b16 %v5370, %v5368
    %v5491 = vpack.c.b16 %v5373, %v5371
    %v5492 = vpack.c.b16 %v5374, %v5372
    %v5493 = vpack.c.b16 %v5377, %v5375
    %v5494 = vpack.c.b16 %v5378, %v5376
    %v5495 = vpack.c.b16 %v5381, %v5379
    %v5496 = vpack.c.b16 %v5382, %v5380
    %v5497 = vpack.c.b16 %v5385, %v5383
    %v5498 = vpack.c.b16 %v5386, %v5384
    %v5499 = vpack.c.b16 %v5389, %v5387
    %v5500 = vpack.c.b16 %v5390, %v5388
    %v5501 = vpack.c.b16 %v5393, %v5391
    %v5502 = vpack.c.b16 %v5394, %v5392
    %v5503 = vpack.c.b16 %v5397, %v5395
    %v5504 = vpack.c.b16 %v5398, %v5396
    %v5505 = vpack.c.b16 %v5401, %v5399
    %v5506 = vpack.c.b16 %v5402, %v5400
    %v5507 = vpack.c.b16 %v5405, %v5403
    %v5508 = vpack.c.b16 %v5406, %v5404
    %v5509 = vpack.c.b16 %v5409, %v5407
    %v5510 = vpack.c.b16 %v5410, %v5408
    %v5511 = vpack.c.b16 %v5413, %v5411
    %v5512 = vpack.c.b16 %v5414, %v5412
    %v5513 = vpack.c.b16 %v5417, %v5415
    %v5514 = vpack.c.b16 %v5418, %v5416
    %v5515 = vpack.c.b16 %v5421, %v5419
    %v5516 = vpack.c.b16 %v5422, %v5420
    %v5517 = vpack.c.b16 %v5425, %v5423
    %v5518 = vpack.c.b16 %v5426, %v5424
    %v5519 = vpack.c.b16 %v5429, %v5427
    %v5520 = vpack.c.b16 %v5430, %v5428
    %v5521 = vpack.c.b16 %v5433, %v5431
    %v5522 = vpack.c.b16 %v5434, %v5432
    %v5523 = vpack.c.b16 %v5437, %v5435
    %v5524 = vpack.c.b16 %v5438, %v5436
    %v5525 = vpack.c.b16 %v5441, %v5439
    %v5526 = vpack.c.b16 %v5442, %v5440
    %v5527 = vpack.c.b16 %v5445, %v5443
    %v5528 = vpack.c.b16 %v5446, %v5444
    %v5529 = vpack.c.b16 %v5449, %v5447
    %v5530 = vpack.c.b16 %v5450, %v5448
    %v5531 = vpack.c.b16 %v5453, %v5451
    %v5532 = vpack.c.b16 %v5454, %v5452
    %v5533 = vpack.c.b16 %v5457, %v5455
    %v5534 = vpack.c.b16 %v5458, %v5456
    %v5535 = vpack.c.b16 %v5461, %v5459
    %v5536 = vpack.c.b16 %v5462, %v5460
    %v5537 = vpack.c.b16 %v5465, %v5463
    %v5538 = vpack.c.b16 %v5466, %v5464
    %v5539 = vpack.c.b16 %v5469, %v5467
    %v5540 = vpack.c.b16 %v5470, %v5468
    %v5541 = vpack.c.b16 %v5473, %v5471
    %v5542 = vpack.c.b16 %v5474, %v5472
    %v5543 = vpack.c.b16 %v5477, %v5475
    %v5544 = vpack.c.b16 %v5478, %v5476
    %v5545 = vpack.c.b16 %v5481, %v5479
    %v5546 = vpack.c.b16 %v5482, %v5480
    %5611 = vmatprep.subr.bf16.mxu0 %v5484
    %5612 = vmatpush1.bf16.msra.mxu0 %v5483
    %5613 = vmatprep.subr.bf16.mxu0 %v5486
    %5614 = vmatpush1.bf16.msra.mxu0 %v5485
    %5615 = vmatprep.subr.bf16.mxu0 %v5488
    %5616 = vmatpush1.bf16.msra.mxu0 %v5487
    %5617 = vmatprep.subr.bf16.mxu0 %v5490
    %5618 = vmatpush1.bf16.msra.mxu0 %v5489
    %5619 = vmatprep.subr.bf16.mxu0 %v5492
    %5620 = vmatpush1.bf16.msra.mxu0 %v5491
    %5621 = vmatprep.subr.bf16.mxu0 %v5494
    %5622 = vmatpush1.bf16.msra.mxu0 %v5493
    %5623 = vmatprep.subr.bf16.mxu0 %v5496
    %5624 = vmatpush1.bf16.msra.mxu0 %v5495
    %5625 = vmatprep.subr.bf16.mxu0 %v5498
    %5626 = vmatpush1.bf16.msra.mxu0 %v5497
    %5627 = vmatprep.subr.bf16.mxu0 %v5500
    %5628 = vmatpush1.bf16.msra.mxu0 %v5499
    %5629 = vmatprep.subr.bf16.mxu0 %v5502
    %5630 = vmatpush1.bf16.msra.mxu0 %v5501
    %5631 = vmatprep.subr.bf16.mxu0 %v5504
    %5632 = vmatpush1.bf16.msra.mxu0 %v5503
    %5633 = vmatprep.subr.bf16.mxu0 %v5506
    %5634 = vmatpush1.bf16.msra.mxu0 %v5505
    %5635 = vmatprep.subr.bf16.mxu0 %v5508
    %5636 = vmatpush1.bf16.msra.mxu0 %v5507
    %5637 = vmatprep.subr.bf16.mxu0 %v5510
    %5638 = vmatpush1.bf16.msra.mxu0 %v5509
    %5639 = vmatprep.subr.bf16.mxu0 %v5512
    %5640 = vmatpush1.bf16.msra.mxu0 %v5511
    %5641 = vmatprep.subr.bf16.mxu0 %v5514
    %5642 = vmatpush1.bf16.msra.mxu0 %v5513
    %5643 = vmatprep.mubr.bf16.mxu0 %v5212
    %5644 = vmatmul.mubr.bf16.gmra.mrb[0].mxu0 %v5211
    %v5645 = vpop.f32.mrb[0].mxu0
    %v5646 = vadd.f32 %v5284, %v5645
    %v5647 = vpop.f32.mrb[0].mxu0
    %v5648 = vadd.f32 %v5288, %v5647
    %v5649 = vpop.f32.mrb[0].mxu0
    %v5650 = vadd.f32 %v5284, %v5649
    %v5651 = vpop.f32.mrb[0].mxu0
    %v5652 = vadd.f32 %v5288, %v5651
    %5653 = vdwg.mxu0
    %5654 = vmatprep.subr.bf16.mxu0 %v5516
    %5655 = vmatpush1.bf16.msra.mxu0 %v5515
    %5656 = vmatprep.subr.bf16.mxu0 %v5518
    %5657 = vmatpush1.bf16.msra.mxu0 %v5517
    %5658 = vmatprep.subr.bf16.mxu0 %v5520
    %5659 = vmatpush1.bf16.msra.mxu0 %v5519
    %5660 = vmatprep.subr.bf16.mxu0 %v5522
    %5661 = vmatpush1.bf16.msra.mxu0 %v5521
    %5662 = vmatprep.subr.bf16.mxu0 %v5524
    %5663 = vmatpush1.bf16.msra.mxu0 %v5523
    %5664 = vmatprep.subr.bf16.mxu0 %v5526
    %5665 = vmatpush1.bf16.msra.mxu0 %v5525
    %5666 = vmatprep.subr.bf16.mxu0 %v5528
    %5667 = vmatpush1.bf16.msra.mxu0 %v5527
    %5668 = vmatprep.subr.bf16.mxu0 %v5530
    %5669 = vmatpush1.bf16.msra.mxu0 %v5529
    %5670 = vmatprep.subr.bf16.mxu0 %v5532
    %5671 = vmatpush1.bf16.msra.mxu0 %v5531
    %5672 = vmatprep.subr.bf16.mxu0 %v5534
    %5673 = vmatpush1.bf16.msra.mxu0 %v5533
    %5674 = vmatprep.subr.bf16.mxu0 %v5536
    %5675 = vmatpush1.bf16.msra.mxu0 %v5535
    %5676 = vmatprep.subr.bf16.mxu0 %v5538
    %5677 = vmatpush1.bf16.msra.mxu0 %v5537
    %5678 = vmatprep.subr.bf16.mxu0 %v5540
    %5679 = vmatpush1.bf16.msra.mxu0 %v5539
    %5680 = vmatprep.subr.bf16.mxu0 %v5542
    %5681 = vmatpush1.bf16.msra.mxu0 %v5541
    %5682 = vmatprep.subr.bf16.mxu0 %v5544
    %5683 = vmatpush1.bf16.msra.mxu0 %v5543
    %5684 = vmatprep.subr.bf16.mxu0 %v5546
    %5685 = vmatpush1.bf16.msra.mxu0 %v5545
    %5686 = vmatprep.mubr.bf16.mxu0 %v5214
    %5687 = vmatmul.mubr.bf16.gmra.mrb[0].mxu0 %v5213
    %v5688 = vpop.f32.mrb[0].mxu0
    %v5689 = vadd.f32 %v5646, %v5688
    %v5690 = vpop.f32.mrb[0].mxu0
    %v5691 = vadd.f32 %v5648, %v5690
    %v5692 = vpop.f32.mrb[0].mxu0
    %v5693 = vadd.f32 %v5650, %v5692
    %v5694 = vpop.f32.mrb[0].mxu0
    %v5695 = vadd.f32 %v5652, %v5694
    %5696 = vdwg.mxu0
    %vm5697 = vcmp.gt.f32.partialorder %v5689, 0.0
    %vm5698 = vcmp.gt.f32.partialorder %v5691, 0.0
    %vm5699 = vcmp.gt.f32.partialorder %v5693, 0.0
    %vm5700 = vcmp.gt.f32.partialorder %v5695, 0.0
    %v5701 = vmul.f32 %v5689, 0.2
    %v5702 = vmul.f32 %v5691, 0.2
    %v5703 = vmul.f32 %v5693, 0.2
    %v5704 = vmul.f32 %v5695, 0.2
    %v5705 = vsel %vm5697, %v5689, %v5701
    %v5706 = vsel %vm5698, %v5691, %v5702
    %v5707 = vsel %vm5699, %v5693, %v5703
    %v5708 = vsel %vm5700, %v5695, %v5704
    %v5709 = vld [vmem:[#allocation13] sm:$0x3]
    %v5710 = vpack.c.bf16 %v5707, %v5705
    %v5711 = vpack.c.bf16 %v5708, %v5706
    %v5712 = vld [vmem:[#allocation2] sm:$0x1]
    %5714 = vset.pattern.permute.xlu0 0
    %5715 = vperm.xlu0 %5714, %v5712
    %v5716 = vpop.permute.xlu0 %5715
    %v5718 = vlaneseq
    %v5719 = vshrl.u32 %v5718, 7
    %v5720 = vsub.s32 0, %v5719
    %v5721 = vrot.slane %v5716, %v5720
    %v5724 = vunpack.c.l.s4 1966171168
    %v5725 = vunpack.c.0.s8 %v5724
    %v5726 = vlaneseq
    %v5727 = vshrl.u32 %v5726, 7
    %v5728 = vsub.s32 %v5725, %v5727
    %v5729 = vrot.slane %v5709, %v5728
    %v5730 = vcombine.high %v5729, %v5729
    %v5732 = vunpack.c.l.s4 1966171168
    %v5733 = vunpack.c.0.s8 %v5732
    %v5734 = vlaneseq
    %v5735 = vshrl.u32 %v5734, 7
    %v5736 = vsub.s32 %v5733, %v5735
    %v5737 = vrot.slane %v5729, %v5736
    %v5739 = vunpack.c.l.s4 1966171168
    %v5740 = vunpack.c.0.s8 %v5739
    %v5741 = vlaneseq
    %v5742 = vshrl.u32 %v5741, 7
    %v5743 = vsub.s32 %v5740, %v5742
    %v5744 = vrot.slane %v5730, %v5743
    %5747 = vmatprep.subr.bf16.mxu0 %v5711
    %5748 = vmatpush1.bf16.xpose.msra.mxu0 %v5710
    %5749 = vmatprep.subr.bf16.mxu0 0
    %5750 = vmatpush1.bf16.xpose.msra.mxu0 0
    %5751 = vmatprep.subr.bf16.mxu0 0
    %5752 = vmatpush1.bf16.xpose.msra.mxu0 0
    %5753 = vmatprep.subr.bf16.mxu0 0
    %5754 = vmatpush1.bf16.xpose.msra.mxu0 0
    %5755 = vmatprep.subr.bf16.mxu0 0
    %5756 = vmatpush1.bf16.xpose.msra.mxu0 0
    %5757 = vmatprep.subr.bf16.mxu0 0
    %5758 = vmatpush1.bf16.xpose.msra.mxu0 0
    %5759 = vmatprep.subr.bf16.mxu0 0
    %5760 = vmatpush1.bf16.xpose.msra.mxu0 0
    %5761 = vmatprep.subr.bf16.mxu0 0
    %5762 = vmatpush1.bf16.xpose.msra.mxu0 0
    %5763 = vmatprep.subr.bf16.mxu0 0
    %5764 = vmatpush1.bf16.xpose.msra.mxu0 0
    %5765 = vmatprep.subr.bf16.mxu0 0
    %5766 = vmatpush1.bf16.xpose.msra.mxu0 0
    %5767 = vmatprep.subr.bf16.mxu0 0
    %5768 = vmatpush1.bf16.xpose.msra.mxu0 0
    %5769 = vmatprep.subr.bf16.mxu0 0
    %5770 = vmatpush1.bf16.xpose.msra.mxu0 0
    %5771 = vmatprep.subr.bf16.mxu0 0
    %5772 = vmatpush1.bf16.xpose.msra.mxu0 0
    %5773 = vmatprep.subr.bf16.mxu0 0
    %5774 = vmatpush1.bf16.xpose.msra.mxu0 0
    %5775 = vmatprep.subr.bf16.mxu0 0
    %5776 = vmatpush1.bf16.xpose.msra.mxu0 0
    %5777 = vmatprep.subr.bf16.mxu0 0
    %5778 = vmatpush1.bf16.xpose.msra.mxu0 0
    %5779 = vmatprep.mubr.bf16.mxu0 %v5744
    %5780 = vmatmul.mubr.bf16.gmra.mrb[0].mxu0 %v5737
    %v5781 = vpop.f32.mrb[0].mxu0
    %v5782 = vadd.f32 %v5721, %v5781
    %v5783 = vpop.f32.mrb[0].mxu0
    %v5784 = vpop.f32.mrb[0].mxu0
    %v5785 = vpop.f32.mrb[0].mxu0
    %5786 = vdwg.mxu0
    %v5787 = vxor.u32 %v5782, 2147483648
    %v5788 = vmul.f32 %v5787, 1.442695
    %v5789 = vpow.pop %v5788
    %v5790 = vadd.f32 %v5789, 1.0
    %v5791 = vrcp.pop %v5790
    %v5792 = vmul.f32 1.0, %v5791
    %vm5793 = vcmask 122880
    %5794 = vst.msk [vmem:[%s9] sm:$0x1] %vm5793, %v5792
    // Predicated region
    $region66: #{discriminator_forward.1} parent=1 // pred_check
      _
    $region67: #{discriminator_forward.1} parent=1 // pred_check_branch
      %5796 = sbr.rel (0) target = $region69
    $region68: #{discriminator_forward.1} parent=1 // pred_region
      _
    $region69: #{discriminator_forward.1} parent=1 // pred_fallthru
      _
    // Predicated region
    $region70: #{discriminator_forward.1} parent=1 // pred_check
      _
    $region71: #{discriminator_forward.1} parent=1 // pred_check_branch
      %5798 = sbr.rel (0) target = $region73
    $region72: #{discriminator_forward.1} parent=1 // pred_region
      _
    $region73: #{discriminator_forward.1} parent=1 // pred_fallthru
      _
    %5799 = vsyncpa [#allocation4], 1
    %5800 = vsyncpa [#allocation6], 1
    %5801 = vsyncpa [#allocation9], 1
    %5802 = vsyncpa [#allocation12], 1

</llo_original>
